<compile_context>
chip_gen: v7x
topology: tpu7x:2x2x1
jax: 0.10.0
libtpu: 0.0.40
codegen_flags: <defaults>
</compile_context>

<pallas_src>
import functools

import jax
import jax.numpy as jnp
from jax import lax
from jax.experimental import pallas as pl
from jax.experimental.pallas import tpu as pltpu

# CRF hyper-parameters (module __init__ defaults).
ITERATIONS = 5
BILATERAL_WEIGHT = 1.0
GAUSSIAN_WEIGHT = 1.0
BILATERAL_SPATIAL_SIGMA = 5.0
BILATERAL_COLOR_SIGMA = 0.5
GAUSSIAN_SPATIAL_SIGMA = 5.0
UPDATE_FACTOR = 3.0

_FEATURE_PAD = 8  # zero-pad feature dims (zeros don't change pairwise distances)


def _pick_row_tile(n):
    """Largest power-of-two row tile (<=1024) dividing n whose f32 build
    temporaries (~4 * tile * n * 4 B) stay within a few MiB."""
    budget_rows = max(128, (6 * 1024 * 1024) // max(16 * n, 1))
    for cand in (1024, 512, 256, 128):
        if cand <= budget_rows and n % cand == 0:
            return cand
    return n


def _crf_kernel(logits_ref, bil_nf_ref, bil_fn_ref, gau_nf_ref, gau_fn_ref,
                compat_ut_ref, out_ref, k_ref, *, iterations, bilateral_weight,
                gaussian_weight, row_tile):
    n = k_ref.shape[0]
    x = logits_ref[0]               # [C, N] f32 (lane-dense on N)
    compat_ut = compat_ut_ref[...]  # [C, C] = update_factor * compat^T

    # -0.5 * ||f_j||^2 row vectors ([1, N], f32), computed once per batch step
    # from the bf16 feature values (same values the Gram sees -> consistent
    # cancellation, so arg <= 0 holds up to f32 rounding; the clamp covers it).
    def nhalf_row(fn_ref):
        f = fn_ref[0].astype(jnp.float32)                       # [F, N]
        return -0.5 * jnp.sum(f * f, axis=0, keepdims=True)     # [1, N]

    nh_row_bil = nhalf_row(bil_fn_ref)
    nh_row_gau = nhalf_row(gau_fn_ref)

    def k_tile(start):
        # One [row_tile, N] slab of K_comb, all temporaries tile-sized f32.
        def one(nf_ref, fn_ref, nh_row):
            lhs = nf_ref[0, pl.ds(start, row_tile), :]          # [tile, F] bf16
            rhs = fn_ref[0]                                     # [F, N]    bf16
            gram = jnp.dot(lhs, rhs, preferred_element_type=jnp.float32)
            lf = lhs.astype(jnp.float32)
            nh_col = -0.5 * jnp.sum(lf * lf, axis=1, keepdims=True)   # [tile, 1]
            arg = (gram + nh_col) + nh_row                      # = -0.5 * d2
            return jnp.exp(jnp.minimum(arg, 0.0))               # clamp: d2 >= 0
        return (bilateral_weight * one(bil_nf_ref, bil_fn_ref, nh_row_bil) +
                gaussian_weight * one(gau_nf_ref, gau_fn_ref, nh_row_gau))

    num_tiles = n // row_tile
    if num_tiles == 1:
        k_ref[...] = k_tile(0).astype(jnp.bfloat16)
    else:
        def build_body(t, carry):
            start = pl.multiple_of(t * row_tile, row_tile)
            k_ref[pl.ds(start, row_tile), :] = k_tile(start).astype(jnp.bfloat16)
            return carry
        lax.fori_loop(0, num_tiles, build_body, 0)

    def softmax_classes(z):  # softmax over the class (sublane) axis of [C, N]
        z = z - jnp.max(z, axis=0, keepdims=True)
        e = jnp.exp(z)
        return e * pl.reciprocal(jnp.sum(e, axis=0, keepdims=True), approx=False)

    q = softmax_classes(x)
    # Static unroll of the short fixed-count refinement loop (lets the scheduler
    # overlap VPU/EUP softmax of step i with the MXU matmul of step i+1).
    for _ in range(iterations):
        # K_comb is symmetric, so message passing in [C, N] layout is q @ K.
        msg = jnp.dot(q.astype(jnp.bfloat16), k_ref[...],
                      preferred_element_type=jnp.float32)               # [C, N]
        upd = jnp.dot(compat_ut, msg, preferred_element_type=jnp.float32)
        q = softmax_classes(x + upd)

    out_ref[0] = q.astype(out_ref.dtype)


def _prepare_features(input_logits, reference):
    """Pure-JAX glue: coordinate tensor + feature construction + layout change.
    Features are quantized to bf16 ONCE here, so both layouts carry identical
    values (and the in-kernel norms match the Gram operands exactly)."""
    b, c, h, w = input_logits.shape
    n = h * w
    dt = jnp.float32

    # _create_coordinate_tensor: meshgrid_ij over spatial dims, stacked, batched.
    yy, xx = jnp.meshgrid(jnp.arange(h, dtype=dt), jnp.arange(w, dtype=dt),
                          indexing="ij")
    coords = jnp.broadcast_to(jnp.stack([yy, xx], axis=0)[None], (b, 2, h, w))

    ref = reference.astype(dt)
    bil = jnp.concatenate(
        [coords / BILATERAL_SPATIAL_SIGMA, ref / BILATERAL_COLOR_SIGMA], axis=1)
    gau = coords / GAUSSIAN_SPATIAL_SIGMA

    def pad_f(t):  # zero-pad feature channels to _FEATURE_PAD (distance-preserving)
        f = t.shape[1]
        return jnp.pad(t, ((0, 0), (0, max(_FEATURE_PAD - f, 0)), (0, 0), (0, 0)))

    bil = pad_f(bil).astype(jnp.bfloat16)
    gau = pad_f(gau).astype(jnp.bfloat16)

    def to_fn(t):  # [B, F, H, W] -> [B, F, N]  (lane-dense on N, no transpose)
        return t.reshape(b, t.shape[1], n)

    def to_nf(t):  # [B, F, H, W] -> [B, N, F]  (MXU LHS layout for the Gram)
        return jnp.transpose(t.reshape(b, t.shape[1], n), (0, 2, 1))

    logits_cn = input_logits.reshape(b, c, n).astype(jnp.float32)
    return logits_cn, to_nf(bil), to_fn(bil), to_nf(gau), to_fn(gau)


def crf_forward(input_logits, reference, compatibility_matrix):
    b, c, h, w = input_logits.shape
    n = h * w
    logits, bil_nf, bil_fn, gau_nf, gau_fn = _prepare_features(input_logits, reference)

    # PyTorch does flat[N,C] @ compat; transposed to [C,N] layout that is
    # (update_factor * compat^T) @ msg. Fold the scalar update factor in too.
    compat_ut = (UPDATE_FACTOR * compatibility_matrix.astype(jnp.float32)).T
    fb, fg = bil_nf.shape[-1], gau_nf.shape[-1]
    row_tile = _pick_row_tile(n)

    kernel = functools.partial(_crf_kernel, iterations=ITERATIONS,
                               bilateral_weight=BILATERAL_WEIGHT,
                               gaussian_weight=GAUSSIAN_WEIGHT,
                               row_tile=row_tile)

    # VMEM budget: resident bf16 K scratch + f32 tile temporaries + lane-padded,
    # double-buffered feature / logit / q / output buffers, 2x headroom, capped
    # at ~72% of this chip's physical VMEM (v7x: ~46 MiB, v5e/v6e: ~92 MiB).
    est = (n * n * 2                              # bf16 K scratch
           + 4 * row_tile * n * 4                 # f32 tile temporaries
           + 2 * 2 * (128 * n + 16 * n) * 2       # [N,F] (lane-padded) + [F,N] bf16, dbl-buf
           + 8 * 8 * n * 4)                       # logits / q / msg / out class slabs
    try:
        vmem_cap = int(pltpu.get_tpu_info().vmem_capacity_bytes)
    except Exception:
        vmem_cap = 64 * 1024 * 1024
    vmem_limit = int(min(max(2 * est, 32 * 1024 * 1024), int(0.72 * vmem_cap)))

    out_cn = pl.pallas_call(
        kernel,
        out_shape=jax.ShapeDtypeStruct((b, c, n), jnp.float32),
        grid=(b,),
        in_specs=[
            pl.BlockSpec((1, c, n), lambda i: (i, 0, 0)),
            pl.BlockSpec((1, n, fb), lambda i: (i, 0, 0)),
            pl.BlockSpec((1, fb, n), lambda i: (i, 0, 0)),
            pl.BlockSpec((1, n, fg), lambda i: (i, 0, 0)),
            pl.BlockSpec((1, fg, n), lambda i: (i, 0, 0)),
            pl.BlockSpec((c, c), lambda i: (0, 0)),
        ],
        out_specs=pl.BlockSpec((1, c, n), lambda i: (i, 0, 0)),
        scratch_shapes=[pltpu.VMEM((n, n), jnp.bfloat16)],
        compiler_params=pltpu.CompilerParams(
            dimension_semantics=("parallel",),
            vmem_limit_bytes=vmem_limit),
    )(logits, bil_nf, bil_fn, gau_nf, gau_fn, compat_ut)

    # [B, C, N] -> NCHW is a pure reshape (no transpose needed).
    return out_cn.reshape(b, c, h, w)


def crf_reference(input_logits, reference, compat):
    """Pure-JAX reference of the same (dense brute-force) math. The deliberate
    bf16 quantization of the features, of K_comb, and of q for the message
    matmul is mirrored so the comparison isolates kernel-implementation error
    from the intended precision choices."""
    logits_cn, bil_nf, _, gau_nf, _ = _prepare_features(input_logits, reference)
    hp = lax.Precision.HIGHEST

    def kmat(f_bf16):  # f: [B, N, F] bf16
        f = f_bf16.astype(jnp.float32)
        gram = jnp.einsum("bif,bjf->bij", f, f, precision=hp)
        nh = -0.5 * jnp.sum(f * f, axis=-1)
        arg = gram + nh[:, :, None] + nh[:, None, :]
        return jnp.exp(jnp.minimum(arg, 0.0))

    k_comb = BILATERAL_WEIGHT * kmat(bil_nf) + GAUSSIAN_WEIGHT * kmat(gau_nf)
    k_comb = k_comb.astype(jnp.bfloat16).astype(jnp.float32)
    compat_ut = (UPDATE_FACTOR * compat.astype(jnp.float32)).T

    x = logits_cn                       # [B, C, N]
    q = jax.nn.softmax(x, axis=1)
    for _ in range(ITERATIONS):
        qb = q.astype(jnp.bfloat16).astype(jnp.float32)
        msg = jnp.einsum("bcn,bnm->bcm", qb, k_comb, precision=hp)
        upd = jnp.einsum("dc,bcm->bdm", compat_ut, msg, precision=hp)
        q = jax.nn.softmax(x + upd, axis=1)
    b, c, h, w = input_logits.shape
    return q.reshape(b, c, h, w)


if __name__ == "__main__":
    key = jax.random.PRNGKey(0)
    k1, k2 = jax.random.split(key)
    B, C, CR, H, W = 2, 4, 3, 16, 16
    input_logits = jax.random.normal(k1, (B, C, H, W), dtype=jnp.float32)
    reference = jax.random.uniform(k2, (B, CR, H, W), dtype=jnp.float32)
    # Deterministic, Potts-like but mildly ASYMMETRIC compatibility matrix so the
    # compat-orientation in the kernel is actually exercised.
    compat = (-jnp.eye(C, dtype=jnp.float32)
              + 0.02 * jnp.arange(C * C, dtype=jnp.float32).reshape(C, C) / (C * C))

    out = jax.block_until_ready(crf_forward(input_logits, reference, compat))

    assert out.shape == input_logits.shape and out.dtype == jnp.float32
    assert bool(jnp.all(jnp.isfinite(out)))
    # outputs are per-pixel class distributions
    assert float(jnp.max(jnp.abs(jnp.sum(out, axis=1) - 1.0))) < 1e-3

    ref = crf_reference(input_logits, reference, compat)
    err = jnp.abs(out - ref)
    max_err = float(jnp.max(err))
    mean_err = float(jnp.mean(err))
    # The mean-field CRF update has gain update_factor * sum_j K_ij = O(10^2),
    # so pixels near class-decision boundaries are sensitive to tiny numerical
    # differences; bound the max error loosely and the mean error tightly.
    assert max_err < 1e-1, f"max abs error too large: {max_err}"
    assert mean_err < 5e-3, f"mean abs error too large: {mean_err}"

    print("KERNEL_OK")
</pallas_src>

<mosaic_0001>
module attributes {stable_mosaic.version = 11 : i64} {
  func.func @_crf_kernel(%arg0: i32, %arg1: memref<1x4x256xf32, #tpu.memory_space<vmem>>, %arg2: memref<1x256x8xbf16, #tpu.memory_space<vmem>>, %arg3: memref<1x8x256xbf16, #tpu.memory_space<vmem>>, %arg4: memref<1x256x8xbf16, #tpu.memory_space<vmem>>, %arg5: memref<1x8x256xbf16, #tpu.memory_space<vmem>>, %arg6: memref<4x4xf32, #tpu.memory_space<vmem>>, %arg7: memref<1x4x256xf32, #tpu.memory_space<vmem>>, %arg8: memref<256x256xbf16, #tpu.memory_space<vmem>>) attributes {dimension_semantics = [#tpu.dimension_semantics<parallel>], iteration_bounds = array<i64: 2>, scalar_prefetch = 0 : i64, scratch_operands = 1 : i64, tpu.core_type = #tpu.core_type<tc>, window_params = [{transform_indices = @transform_0, window_bounds = array<i64: 1, 4, 256>}, {transform_indices = @transform_1, window_bounds = array<i64: 1, 256, 8>}, {transform_indices = @transform_2, window_bounds = array<i64: 1, 8, 256>}, {transform_indices = @transform_3, window_bounds = array<i64: 1, 256, 8>}, {transform_indices = @transform_4, window_bounds = array<i64: 1, 8, 256>}, {pipeline_mode = #tpu.pipeline_mode<synchronous>, transform_indices = @transform_5, window_bounds = array<i64: 4, 4>}, {transform_indices = @transform_6, window_bounds = array<i64: 1, 4, 256>}]} {
    %c0 = arith.constant 0 : index
    %c0_0 = arith.constant 0 : index
    %c0_1 = arith.constant 0 : index
    %0 = vector.load %arg1[%c0, %c0_0, %c0_1] : memref<1x4x256xf32, #tpu.memory_space<vmem>>, vector<1x4x256xf32>
    %1 = vector.shape_cast %0 : vector<1x4x256xf32> to vector<4x256xf32>
    %c0_2 = arith.constant 0 : index
    %c0_3 = arith.constant 0 : index
    %2 = vector.load %arg6[%c0_2, %c0_3] : memref<4x4xf32, #tpu.memory_space<vmem>>, vector<4x4xf32>
    %c0_4 = arith.constant 0 : index
    %c0_5 = arith.constant 0 : index
    %c0_6 = arith.constant 0 : index
    %3 = vector.load %arg3[%c0_4, %c0_5, %c0_6] : memref<1x8x256xbf16, #tpu.memory_space<vmem>>, vector<1x8x256xbf16>
    %4 = vector.shape_cast %3 : vector<1x8x256xbf16> to vector<8x256xbf16>
    %5 = arith.extf %4 : vector<8x256xbf16> to vector<8x256xf32>
    %6 = arith.mulf %5, %5 : vector<8x256xf32>
    %cst = arith.constant dense<0.000000e+00> : vector<256xf32>
    %7 = vector.multi_reduction <add>, %6, %cst [0] : vector<8x256xf32> to vector<256xf32>
    %8 = vector.shape_cast %7 : vector<256xf32> to vector<1x256xf32>
    %cst_7 = arith.constant -5.000000e-01 : f32
    %9 = vector.broadcast %cst_7 : f32 to vector<1x256xf32>
    %10 = arith.mulf %9, %8 : vector<1x256xf32>
    %c0_8 = arith.constant 0 : index
    %c0_9 = arith.constant 0 : index
    %c0_10 = arith.constant 0 : index
    %11 = vector.load %arg5[%c0_8, %c0_9, %c0_10] : memref<1x8x256xbf16, #tpu.memory_space<vmem>>, vector<1x8x256xbf16>
    %12 = vector.shape_cast %11 : vector<1x8x256xbf16> to vector<8x256xbf16>
    %13 = arith.extf %12 : vector<8x256xbf16> to vector<8x256xf32>
    %14 = arith.mulf %13, %13 : vector<8x256xf32>
    %cst_11 = arith.constant dense<0.000000e+00> : vector<256xf32>
    %15 = vector.multi_reduction <add>, %14, %cst_11 [0] : vector<8x256xf32> to vector<256xf32>
    %16 = vector.shape_cast %15 : vector<256xf32> to vector<1x256xf32>
    %cst_12 = arith.constant -5.000000e-01 : f32
    %17 = vector.broadcast %cst_12 : f32 to vector<1x256xf32>
    %18 = arith.mulf %17, %16 : vector<1x256xf32>
    %c0_13 = arith.constant 0 : index
    %c0_14 = arith.constant 0 : index
    %c0_15 = arith.constant 0 : index
    %19 = vector.load %arg2[%c0_13, %c0_14, %c0_15] : memref<1x256x8xbf16, #tpu.memory_space<vmem>>, vector<1x256x8xbf16>
    %20 = vector.shape_cast %19 : vector<1x256x8xbf16> to vector<256x8xbf16>
    %c0_16 = arith.constant 0 : index
    %c0_17 = arith.constant 0 : index
    %c0_18 = arith.constant 0 : index
    %21 = vector.load %arg3[%c0_16, %c0_17, %c0_18] : memref<1x8x256xbf16, #tpu.memory_space<vmem>>, vector<1x8x256xbf16>
    %22 = vector.shape_cast %21 : vector<1x8x256xbf16> to vector<8x256xbf16>
    %cst_19 = arith.constant dense<0.000000e+00> : vector<256x256xf32>
    %23 = tpu.matmul %20, %22, %cst_19 {dimension_numbers = #tpu.dot_dimension_numbers<[1], [0], [0], [1], [0, 0, 1, 1], [], []>} : vector<256x8xbf16>, vector<8x256xbf16>, vector<256x256xf32> -> vector<256x256xf32>
    %24 = arith.extf %20 : vector<256x8xbf16> to vector<256x8xf32>
    %25 = arith.mulf %24, %24 : vector<256x8xf32>
    %cst_20 = arith.constant dense<0.000000e+00> : vector<256xf32>
    %26 = vector.multi_reduction <add>, %25, %cst_20 [1] : vector<256x8xf32> to vector<256xf32>
    %27 = vector.shape_cast %26 : vector<256xf32> to vector<256x1xf32>
    %cst_21 = arith.constant -5.000000e-01 : f32
    %28 = vector.broadcast %cst_21 : f32 to vector<256x1xf32>
    %29 = arith.mulf %28, %27 : vector<256x1xf32>
    %30 = vector.broadcast %29 : vector<256x1xf32> to vector<256x256xf32>
    %31 = arith.addf %23, %30 : vector<256x256xf32>
    %32 = vector.broadcast %10 : vector<1x256xf32> to vector<256x256xf32>
    %33 = arith.addf %31, %32 : vector<256x256xf32>
    %cst_22 = arith.constant 0.000000e+00 : f32
    %34 = vector.broadcast %cst_22 : f32 to vector<256x256xf32>
    %35 = arith.minimumf %33, %34 : vector<256x256xf32>
    %36 = math.exp %35 : vector<256x256xf32>
    %cst_23 = arith.constant 1.000000e+00 : f32
    %37 = vector.broadcast %cst_23 : f32 to vector<256x256xf32>
    %38 = arith.mulf %37, %36 : vector<256x256xf32>
    %c0_24 = arith.constant 0 : index
    %c0_25 = arith.constant 0 : index
    %c0_26 = arith.constant 0 : index
    %39 = vector.load %arg4[%c0_24, %c0_25, %c0_26] : memref<1x256x8xbf16, #tpu.memory_space<vmem>>, vector<1x256x8xbf16>
    %40 = vector.shape_cast %39 : vector<1x256x8xbf16> to vector<256x8xbf16>
    %c0_27 = arith.constant 0 : index
    %c0_28 = arith.constant 0 : index
    %c0_29 = arith.constant 0 : index
    %41 = vector.load %arg5[%c0_27, %c0_28, %c0_29] : memref<1x8x256xbf16, #tpu.memory_space<vmem>>, vector<1x8x256xbf16>
    %42 = vector.shape_cast %41 : vector<1x8x256xbf16> to vector<8x256xbf16>
    %cst_30 = arith.constant dense<0.000000e+00> : vector<256x256xf32>
    %43 = tpu.matmul %40, %42, %cst_30 {dimension_numbers = #tpu.dot_dimension_numbers<[1], [0], [0], [1], [0, 0, 1, 1], [], []>} : vector<256x8xbf16>, vector<8x256xbf16>, vector<256x256xf32> -> vector<256x256xf32>
    %44 = arith.extf %40 : vector<256x8xbf16> to vector<256x8xf32>
    %45 = arith.mulf %44, %44 : vector<256x8xf32>
    %cst_31 = arith.constant dense<0.000000e+00> : vector<256xf32>
    %46 = vector.multi_reduction <add>, %45, %cst_31 [1] : vector<256x8xf32> to vector<256xf32>
    %47 = vector.shape_cast %46 : vector<256xf32> to vector<256x1xf32>
    %cst_32 = arith.constant -5.000000e-01 : f32
    %48 = vector.broadcast %cst_32 : f32 to vector<256x1xf32>
    %49 = arith.mulf %48, %47 : vector<256x1xf32>
    %50 = vector.broadcast %49 : vector<256x1xf32> to vector<256x256xf32>
    %51 = arith.addf %43, %50 : vector<256x256xf32>
    %52 = vector.broadcast %18 : vector<1x256xf32> to vector<256x256xf32>
    %53 = arith.addf %51, %52 : vector<256x256xf32>
    %cst_33 = arith.constant 0.000000e+00 : f32
    %54 = vector.broadcast %cst_33 : f32 to vector<256x256xf32>
    %55 = arith.minimumf %53, %54 : vector<256x256xf32>
    %56 = math.exp %55 : vector<256x256xf32>
    %cst_34 = arith.constant 1.000000e+00 : f32
    %57 = vector.broadcast %cst_34 : f32 to vector<256x256xf32>
    %58 = arith.mulf %57, %56 : vector<256x256xf32>
    %59 = arith.addf %38, %58 : vector<256x256xf32>
    %60 = arith.truncf %59 : vector<256x256xf32> to vector<256x256xbf16>
    %c0_35 = arith.constant 0 : index
    %c0_36 = arith.constant 0 : index
    %61 = vector.load %arg8[%c0_35, %c0_36] : memref<256x256xbf16, #tpu.memory_space<vmem>>, vector<256x256xbf16>
    tpu.vector_store %arg8[%c0_35, %c0_36], %60 {strides = array<i32>} : memref<256x256xbf16, #tpu.memory_space<vmem>>, vector<256x256xbf16>,
    %cst_37 = arith.constant dense<0xFF800000> : vector<256xf32>
    %62 = vector.multi_reduction <maximumf>, %1, %cst_37 [0] : vector<4x256xf32> to vector<256xf32>
    %63 = vector.shape_cast %62 : vector<256xf32> to vector<1x256xf32>
    %64 = vector.broadcast %63 : vector<1x256xf32> to vector<4x256xf32>
    %65 = arith.subf %1, %64 : vector<4x256xf32>
    %66 = math.exp %65 : vector<4x256xf32>
    %cst_38 = arith.constant dense<0.000000e+00> : vector<256xf32>
    %67 = vector.multi_reduction <add>, %66, %cst_38 [0] : vector<4x256xf32> to vector<256xf32>
    %68 = vector.shape_cast %67 : vector<256xf32> to vector<1x256xf32>
    %69 = tpu.reciprocal %68 : vector<1x256xf32> -> vector<1x256xf32>
    %70 = vector.broadcast %69 : vector<1x256xf32> to vector<4x256xf32>
    %71 = arith.mulf %66, %70 : vector<4x256xf32>
    %72 = arith.truncf %71 : vector<4x256xf32> to vector<4x256xbf16>
    %c0_39 = arith.constant 0 : index
    %c0_40 = arith.constant 0 : index
    %73 = vector.load %arg8[%c0_39, %c0_40] : memref<256x256xbf16, #tpu.memory_space<vmem>>, vector<256x256xbf16>
    %cst_41 = arith.constant dense<0.000000e+00> : vector<4x256xf32>
    %74 = tpu.matmul %72, %73, %cst_41 {dimension_numbers = #tpu.dot_dimension_numbers<[1], [0], [0], [1], [0, 0, 1, 1], [], []>} : vector<4x256xbf16>, vector<256x256xbf16>, vector<4x256xf32> -> vector<4x256xf32>
    %cst_42 = arith.constant dense<0.000000e+00> : vector<4x256xf32>
    %75 = tpu.matmul %2, %74, %cst_42 {dimension_numbers = #tpu.dot_dimension_numbers<[1], [0], [0], [1], [0, 0, 1, 1], [], []>} : vector<4x4xf32>, vector<4x256xf32>, vector<4x256xf32> -> vector<4x256xf32>
    %76 = arith.addf %1, %75 : vector<4x256xf32>
    %cst_43 = arith.constant dense<0xFF800000> : vector<256xf32>
    %77 = vector.multi_reduction <maximumf>, %76, %cst_43 [0] : vector<4x256xf32> to vector<256xf32>
    %78 = vector.shape_cast %77 : vector<256xf32> to vector<1x256xf32>
    %79 = vector.broadcast %78 : vector<1x256xf32> to vector<4x256xf32>
    %80 = arith.subf %76, %79 : vector<4x256xf32>
    %81 = math.exp %80 : vector<4x256xf32>
    %cst_44 = arith.constant dense<0.000000e+00> : vector<256xf32>
    %82 = vector.multi_reduction <add>, %81, %cst_44 [0] : vector<4x256xf32> to vector<256xf32>
    %83 = vector.shape_cast %82 : vector<256xf32> to vector<1x256xf32>
    %84 = tpu.reciprocal %83 : vector<1x256xf32> -> vector<1x256xf32>
    %85 = vector.broadcast %84 : vector<1x256xf32> to vector<4x256xf32>
    %86 = arith.mulf %81, %85 : vector<4x256xf32>
    %87 = arith.truncf %86 : vector<4x256xf32> to vector<4x256xbf16>
    %c0_45 = arith.constant 0 : index
    %c0_46 = arith.constant 0 : index
    %88 = vector.load %arg8[%c0_45, %c0_46] : memref<256x256xbf16, #tpu.memory_space<vmem>>, vector<256x256xbf16>
    %cst_47 = arith.constant dense<0.000000e+00> : vector<4x256xf32>
    %89 = tpu.matmul %87, %88, %cst_47 {dimension_numbers = #tpu.dot_dimension_numbers<[1], [0], [0], [1], [0, 0, 1, 1], [], []>} : vector<4x256xbf16>, vector<256x256xbf16>, vector<4x256xf32> -> vector<4x256xf32>
    %cst_48 = arith.constant dense<0.000000e+00> : vector<4x256xf32>
    %90 = tpu.matmul %2, %89, %cst_48 {dimension_numbers = #tpu.dot_dimension_numbers<[1], [0], [0], [1], [0, 0, 1, 1], [], []>} : vector<4x4xf32>, vector<4x256xf32>, vector<4x256xf32> -> vector<4x256xf32>
    %91 = arith.addf %1, %90 : vector<4x256xf32>
    %cst_49 = arith.constant dense<0xFF800000> : vector<256xf32>
    %92 = vector.multi_reduction <maximumf>, %91, %cst_49 [0] : vector<4x256xf32> to vector<256xf32>
    %93 = vector.shape_cast %92 : vector<256xf32> to vector<1x256xf32>
    %94 = vector.broadcast %93 : vector<1x256xf32> to vector<4x256xf32>
    %95 = arith.subf %91, %94 : vector<4x256xf32>
    %96 = math.exp %95 : vector<4x256xf32>
    %cst_50 = arith.constant dense<0.000000e+00> : vector<256xf32>
    %97 = vector.multi_reduction <add>, %96, %cst_50 [0] : vector<4x256xf32> to vector<256xf32>
    %98 = vector.shape_cast %97 : vector<256xf32> to vector<1x256xf32>
    %99 = tpu.reciprocal %98 : vector<1x256xf32> -> vector<1x256xf32>
    %100 = vector.broadcast %99 : vector<1x256xf32> to vector<4x256xf32>
    %101 = arith.mulf %96, %100 : vector<4x256xf32>
    %102 = arith.truncf %101 : vector<4x256xf32> to vector<4x256xbf16>
    %c0_51 = arith.constant 0 : index
    %c0_52 = arith.constant 0 : index
    %103 = vector.load %arg8[%c0_51, %c0_52] : memref<256x256xbf16, #tpu.memory_space<vmem>>, vector<256x256xbf16>
    %cst_53 = arith.constant dense<0.000000e+00> : vector<4x256xf32>
    %104 = tpu.matmul %102, %103, %cst_53 {dimension_numbers = #tpu.dot_dimension_numbers<[1], [0], [0], [1], [0, 0, 1, 1], [], []>} : vector<4x256xbf16>, vector<256x256xbf16>, vector<4x256xf32> -> vector<4x256xf32>
    %cst_54 = arith.constant dense<0.000000e+00> : vector<4x256xf32>
    %105 = tpu.matmul %2, %104, %cst_54 {dimension_numbers = #tpu.dot_dimension_numbers<[1], [0], [0], [1], [0, 0, 1, 1], [], []>} : vector<4x4xf32>, vector<4x256xf32>, vector<4x256xf32> -> vector<4x256xf32>
    %106 = arith.addf %1, %105 : vector<4x256xf32>
    %cst_55 = arith.constant dense<0xFF800000> : vector<256xf32>
    %107 = vector.multi_reduction <maximumf>, %106, %cst_55 [0] : vector<4x256xf32> to vector<256xf32>
    %108 = vector.shape_cast %107 : vector<256xf32> to vector<1x256xf32>
    %109 = vector.broadcast %108 : vector<1x256xf32> to vector<4x256xf32>
    %110 = arith.subf %106, %109 : vector<4x256xf32>
    %111 = math.exp %110 : vector<4x256xf32>
    %cst_56 = arith.constant dense<0.000000e+00> : vector<256xf32>
    %112 = vector.multi_reduction <add>, %111, %cst_56 [0] : vector<4x256xf32> to vector<256xf32>
    %113 = vector.shape_cast %112 : vector<256xf32> to vector<1x256xf32>
    %114 = tpu.reciprocal %113 : vector<1x256xf32> -> vector<1x256xf32>
    %115 = vector.broadcast %114 : vector<1x256xf32> to vector<4x256xf32>
    %116 = arith.mulf %111, %115 : vector<4x256xf32>
    %117 = arith.truncf %116 : vector<4x256xf32> to vector<4x256xbf16>
    %c0_57 = arith.constant 0 : index
    %c0_58 = arith.constant 0 : index
    %118 = vector.load %arg8[%c0_57, %c0_58] : memref<256x256xbf16, #tpu.memory_space<vmem>>, vector<256x256xbf16>
    %cst_59 = arith.constant dense<0.000000e+00> : vector<4x256xf32>
    %119 = tpu.matmul %117, %118, %cst_59 {dimension_numbers = #tpu.dot_dimension_numbers<[1], [0], [0], [1], [0, 0, 1, 1], [], []>} : vector<4x256xbf16>, vector<256x256xbf16>, vector<4x256xf32> -> vector<4x256xf32>
    %cst_60 = arith.constant dense<0.000000e+00> : vector<4x256xf32>
    %120 = tpu.matmul %2, %119, %cst_60 {dimension_numbers = #tpu.dot_dimension_numbers<[1], [0], [0], [1], [0, 0, 1, 1], [], []>} : vector<4x4xf32>, vector<4x256xf32>, vector<4x256xf32> -> vector<4x256xf32>
    %121 = arith.addf %1, %120 : vector<4x256xf32>
    %cst_61 = arith.constant dense<0xFF800000> : vector<256xf32>
    %122 = vector.multi_reduction <maximumf>, %121, %cst_61 [0] : vector<4x256xf32> to vector<256xf32>
    %123 = vector.shape_cast %122 : vector<256xf32> to vector<1x256xf32>
    %124 = vector.broadcast %123 : vector<1x256xf32> to vector<4x256xf32>
    %125 = arith.subf %121, %124 : vector<4x256xf32>
    %126 = math.exp %125 : vector<4x256xf32>
    %cst_62 = arith.constant dense<0.000000e+00> : vector<256xf32>
    %127 = vector.multi_reduction <add>, %126, %cst_62 [0] : vector<4x256xf32> to vector<256xf32>
    %128 = vector.shape_cast %127 : vector<256xf32> to vector<1x256xf32>
    %129 = tpu.reciprocal %128 : vector<1x256xf32> -> vector<1x256xf32>
    %130 = vector.broadcast %129 : vector<1x256xf32> to vector<4x256xf32>
    %131 = arith.mulf %126, %130 : vector<4x256xf32>
    %132 = arith.truncf %131 : vector<4x256xf32> to vector<4x256xbf16>
    %c0_63 = arith.constant 0 : index
    %c0_64 = arith.constant 0 : index
    %133 = vector.load %arg8[%c0_63, %c0_64] : memref<256x256xbf16, #tpu.memory_space<vmem>>, vector<256x256xbf16>
    %cst_65 = arith.constant dense<0.000000e+00> : vector<4x256xf32>
    %134 = tpu.matmul %132, %133, %cst_65 {dimension_numbers = #tpu.dot_dimension_numbers<[1], [0], [0], [1], [0, 0, 1, 1], [], []>} : vector<4x256xbf16>, vector<256x256xbf16>, vector<4x256xf32> -> vector<4x256xf32>
    %cst_66 = arith.constant dense<0.000000e+00> : vector<4x256xf32>
    %135 = tpu.matmul %2, %134, %cst_66 {dimension_numbers = #tpu.dot_dimension_numbers<[1], [0], [0], [1], [0, 0, 1, 1], [], []>} : vector<4x4xf32>, vector<4x256xf32>, vector<4x256xf32> -> vector<4x256xf32>
    %136 = arith.addf %1, %135 : vector<4x256xf32>
    %cst_67 = arith.constant dense<0xFF800000> : vector<256xf32>
    %137 = vector.multi_reduction <maximumf>, %136, %cst_67 [0] : vector<4x256xf32> to vector<256xf32>
    %138 = vector.shape_cast %137 : vector<256xf32> to vector<1x256xf32>
    %139 = vector.broadcast %138 : vector<1x256xf32> to vector<4x256xf32>
    %140 = arith.subf %136, %139 : vector<4x256xf32>
    %141 = math.exp %140 : vector<4x256xf32>
    %cst_68 = arith.constant dense<0.000000e+00> : vector<256xf32>
    %142 = vector.multi_reduction <add>, %141, %cst_68 [0] : vector<4x256xf32> to vector<256xf32>
    %143 = vector.shape_cast %142 : vector<256xf32> to vector<1x256xf32>
    %144 = tpu.reciprocal %143 : vector<1x256xf32> -> vector<1x256xf32>
    %145 = vector.broadcast %144 : vector<1x256xf32> to vector<4x256xf32>
    %146 = arith.mulf %141, %145 : vector<4x256xf32>
    %c0_69 = arith.constant 0 : index
    %c0_70 = arith.constant 0 : index
    %c0_71 = arith.constant 0 : index
    %147 = vector.load %arg7[%c0_69, %c0_70, %c0_71] : memref<1x4x256xf32, #tpu.memory_space<vmem>>, vector<1x4x256xf32>
    %148 = vector.shape_cast %147 : vector<1x4x256xf32> to vector<4x256xf32>
    %149 = vector.shape_cast %146 : vector<4x256xf32> to vector<1x4x256xf32>
    tpu.vector_store %arg7[%c0_69, %c0_70, %c0_71], %149 {strides = array<i32>} : memref<1x4x256xf32, #tpu.memory_space<vmem>>, vector<1x4x256xf32>,
    return
  }
  func.func @transform_0(%arg0: i32) -> (i32, i32, i32) {
    %c0_i32 = arith.constant 0 : i32
    %c0_i32_0 = arith.constant 0 : i32
    %c0_i32_1 = arith.constant 0 : i32
    return %arg0, %c0_i32, %c0_i32_0 : i32, i32, i32
  }
  func.func @transform_1(%arg0: i32) -> (i32, i32, i32) {
    %c0_i32 = arith.constant 0 : i32
    %c0_i32_0 = arith.constant 0 : i32
    %c0_i32_1 = arith.constant 0 : i32
    return %arg0, %c0_i32, %c0_i32_0 : i32, i32, i32
  }
  func.func @transform_2(%arg0: i32) -> (i32, i32, i32) {
    %c0_i32 = arith.constant 0 : i32
    %c0_i32_0 = arith.constant 0 : i32
    %c0_i32_1 = arith.constant 0 : i32
    return %arg0, %c0_i32, %c0_i32_0 : i32, i32, i32
  }
  func.func @transform_3(%arg0: i32) -> (i32, i32, i32) {
    %c0_i32 = arith.constant 0 : i32
    %c0_i32_0 = arith.constant 0 : i32
    %c0_i32_1 = arith.constant 0 : i32
    return %arg0, %c0_i32, %c0_i32_0 : i32, i32, i32
  }
  func.func @transform_4(%arg0: i32) -> (i32, i32, i32) {
    %c0_i32 = arith.constant 0 : i32
    %c0_i32_0 = arith.constant 0 : i32
    %c0_i32_1 = arith.constant 0 : i32
    return %arg0, %c0_i32, %c0_i32_0 : i32, i32, i32
  }
  func.func @transform_5(%arg0: i32) -> (i32, i32) {
    %c0_i32 = arith.constant 0 : i32
    %c0_i32_0 = arith.constant 0 : i32
    %c0_i32_1 = arith.constant 0 : i32
    return %c0_i32, %c0_i32_0 : i32, i32
  }
  func.func @transform_6(%arg0: i32) -> (i32, i32, i32) {
    %c0_i32 = arith.constant 0 : i32
    %c0_i32_0 = arith.constant 0 : i32
    %c0_i32_1 = arith.constant 0 : i32
    return %arg0, %c0_i32, %c0_i32_0 : i32, i32, i32
  }
}

</mosaic_0001>

<llo_original>
// kernel: tpu_custom_call.1
$region0: #{tpu_custom_call.1}
  #allocation0 [shape = 'u32[]', space=smem, size = 0x4, offset = 0x4, fixed_abs, tag = 'smem constant byte address 0x4 - core index']
  #allocation1 [shape = 'u32[144,128]{1,0:T(1,128)}', space=vmem, size = 0x12000, scoped, tag = 'internal scratch']
  #allocation2 [shape = 'bf16[256,256]{1,0:T(16,128)(2,1)}', space=vmem, size = 0x20000, scoped, tag = 'scratch operand']
  %s0 = inlined_call_operand.vmem [shape: f32[2,4,256], index: 0, kind: input, shape index: {}]
  %s1 = inlined_call_operand.vmem [shape: bf16[2,256,8], index: 1, kind: input, shape index: {}]
  %s2 = inlined_call_operand.vmem [shape: bf16[2,8,256], index: 2, kind: input, shape index: {}]
  %s3 = inlined_call_operand.vmem [shape: bf16[2,256,8], index: 3, kind: input, shape index: {}]
  %s4 = inlined_call_operand.vmem [shape: bf16[2,8,256], index: 4, kind: input, shape index: {}]
  %s5 = inlined_call_operand.vmem [shape: f32[4,4], index: 5, kind: input, shape index: {}]
  %s6 = inlined_call_operand.hbm [shape: f32[2,4,256], index: 6, kind: output, shape index: {}]
  %s7 = sld [smem:[#allocation0]]
  $region57: #{tpu_custom_call.1} parent=0
    _
  %s9 = ssub.s32 1, %s7
  %s10 = scalar_select 0, %s9, %s7
  $region1: #{tpu_custom_call.1} parent=0
    #allocation3 [shape = 'u8[8192]{0}', space=vmem, size = 0x2000, scoped, tag = 'output window, operand 0']
    #allocation4 [shape = 's32[2]{0}', space=sflag, size = 0x8, scoped, tag = 'scoped memory for tpu_custom_call.1']
    %11 = vsyncpa [#allocation4], 0
    %s12 = scalar_lea.sflag [#allocation4], 1
    %13 = vsyncpa %s12, 0
    loop: start=0, step=1, limit=4
    $region2: #{tpu_custom_call.1} parent=1 // loop_pre_header
      _
    $region3: #{tpu_custom_call.1} parent=1 // loop_header
      %s15 = sphi 0, %s19
      %p16 = scmp.ge.s32.totalorder %s15, 4
      %s25 = sphi 0, %s27
      %s28 = sphi 0, %s25
      %s29 = sphi 0, %s28
      %s45 = sphi 0, %s29
      %s51 = sphi 0, %s53
      %s54 = sphi 0, %s51
      %s55 = sphi 0, %s54
      %s71 = sphi 0, %s55
      %s77 = sphi 0, %s79
      %s80 = sphi 0, %s77
      %s81 = sphi 0, %s80
      %s97 = sphi 0, %s81
      %s103 = sphi 0, %s105
      %s106 = sphi 0, %s103
      %s107 = sphi 0, %s106
      %s123 = sphi 0, %s107
      %s129 = sphi 0, %s131
      %s132 = sphi 0, %s129
      %s133 = sphi 0, %s132
      %s149 = sphi 0, %s133
      %s153 = sphi 0, %s153
      %s155 = sphi 0, %s153
      %s156 = sphi 0, %s155
      %s170 = sphi 0, %s156
      %s176 = sphi 0, %s178
      %s179 = sphi 0, %s176
      %s180 = sphi 0, %s179
      %s196 = sphi 0, %s180
    $region4: #{tpu_custom_call.1} parent=1 // loop_header_branch
      %18 = sbr.rel (%p16) target = $region8
    $region5: #{tpu_custom_call.1} parent=1 // loop_body
      %s20 = ssub.s32 %s15, 1
      %s21 = ssub.s32 %s15, 2
      %s22 = sadd.s32 %s15, 1
      %s23 = ssub.s32 %s15, %s22
      %p24 = scmp.eq.s32.totalorder %s23, 0
      %s26 = sadd.s32 %s25, 1
      %s27 = scalar_select %p24, %s25, %s26
      %p30 = pneg %p24
      %p31 = scmp.eq.s32.totalorder %s15, 1
      %p32 = por %p30, %p31
      %p33 = scmp.ne.s32.totalorder %s25, %s28
      %p34 = scmp.eq.s32.totalorder %s15, 0
      %p35 = por %p33, %p34
      %p36 = scmp.ne.s32.totalorder %s25, %s28
      %p37 = scmp.eq.s32.totalorder %s20, 1
      %p38 = por %p36, %p37
      %p39 = scmp.ne.s32.totalorder %s28, %s29
      %p40 = scmp.eq.s32.totalorder %s20, 0
      %p41 = por %p39, %p40
      %p42 = scmp.ne.s32.totalorder %s28, %s29
      %p43 = scmp.eq.s32.totalorder %s21, 1
      %p44 = por %p42, %p43
      %p46 = scmp.ne.s32.totalorder %s29, %s45
      %p47 = scmp.eq.s32.totalorder %s21, 0
      %p48 = por %p46, %p47
      %s49 = ssub.s32 %s15, %s22
      %p50 = scmp.eq.s32.totalorder %s49, 0
      %s52 = sadd.s32 %s51, 1
      %s53 = scalar_select %p50, %s51, %s52
      %p56 = pneg %p50
      %p57 = scmp.eq.s32.totalorder %s15, 1
      %p58 = por %p56, %p57
      %p59 = scmp.ne.s32.totalorder %s51, %s54
      %p60 = scmp.eq.s32.totalorder %s15, 0
      %p61 = por %p59, %p60
      %p62 = scmp.ne.s32.totalorder %s51, %s54
      %p63 = scmp.eq.s32.totalorder %s20, 1
      %p64 = por %p62, %p63
      %p65 = scmp.ne.s32.totalorder %s54, %s55
      %p66 = scmp.eq.s32.totalorder %s20, 0
      %p67 = por %p65, %p66
      %p68 = scmp.ne.s32.totalorder %s54, %s55
      %p69 = scmp.eq.s32.totalorder %s21, 1
      %p70 = por %p68, %p69
      %p72 = scmp.ne.s32.totalorder %s55, %s71
      %p73 = scmp.eq.s32.totalorder %s21, 0
      %p74 = por %p72, %p73
      %s75 = ssub.s32 %s15, %s22
      %p76 = scmp.eq.s32.totalorder %s75, 0
      %s78 = sadd.s32 %s77, 1
      %s79 = scalar_select %p76, %s77, %s78
      %p82 = pneg %p76
      %p83 = scmp.eq.s32.totalorder %s15, 1
      %p84 = por %p82, %p83
      %p85 = scmp.ne.s32.totalorder %s77, %s80
      %p86 = scmp.eq.s32.totalorder %s15, 0
      %p87 = por %p85, %p86
      %p88 = scmp.ne.s32.totalorder %s77, %s80
      %p89 = scmp.eq.s32.totalorder %s20, 1
      %p90 = por %p88, %p89
      %p91 = scmp.ne.s32.totalorder %s80, %s81
      %p92 = scmp.eq.s32.totalorder %s20, 0
      %p93 = por %p91, %p92
      %p94 = scmp.ne.s32.totalorder %s80, %s81
      %p95 = scmp.eq.s32.totalorder %s21, 1
      %p96 = por %p94, %p95
      %p98 = scmp.ne.s32.totalorder %s81, %s97
      %p99 = scmp.eq.s32.totalorder %s21, 0
      %p100 = por %p98, %p99
      %s101 = ssub.s32 %s15, %s22
      %p102 = scmp.eq.s32.totalorder %s101, 0
      %s104 = sadd.s32 %s103, 1
      %s105 = scalar_select %p102, %s103, %s104
      %p108 = pneg %p102
      %p109 = scmp.eq.s32.totalorder %s15, 1
      %p110 = por %p108, %p109
      %p111 = scmp.ne.s32.totalorder %s103, %s106
      %p112 = scmp.eq.s32.totalorder %s15, 0
      %p113 = por %p111, %p112
      %p114 = scmp.ne.s32.totalorder %s103, %s106
      %p115 = scmp.eq.s32.totalorder %s20, 1
      %p116 = por %p114, %p115
      %p117 = scmp.ne.s32.totalorder %s106, %s107
      %p118 = scmp.eq.s32.totalorder %s20, 0
      %p119 = por %p117, %p118
      %p120 = scmp.ne.s32.totalorder %s106, %s107
      %p121 = scmp.eq.s32.totalorder %s21, 1
      %p122 = por %p120, %p121
      %p124 = scmp.ne.s32.totalorder %s107, %s123
      %p125 = scmp.eq.s32.totalorder %s21, 0
      %p126 = por %p124, %p125
      %s127 = ssub.s32 %s15, %s22
      %p128 = scmp.eq.s32.totalorder %s127, 0
      %s130 = sadd.s32 %s129, 1
      %s131 = scalar_select %p128, %s129, %s130
      %p134 = pneg %p128
      %p135 = scmp.eq.s32.totalorder %s15, 1
      %p136 = por %p134, %p135
      %p137 = scmp.ne.s32.totalorder %s129, %s132
      %p138 = scmp.eq.s32.totalorder %s15, 0
      %p139 = por %p137, %p138
      %p140 = scmp.ne.s32.totalorder %s129, %s132
      %p141 = scmp.eq.s32.totalorder %s20, 1
      %p142 = por %p140, %p141
      %p143 = scmp.ne.s32.totalorder %s132, %s133
      %p144 = scmp.eq.s32.totalorder %s20, 0
      %p145 = por %p143, %p144
      %p146 = scmp.ne.s32.totalorder %s132, %s133
      %p147 = scmp.eq.s32.totalorder %s21, 1
      %p148 = por %p146, %p147
      %p150 = scmp.ne.s32.totalorder %s133, %s149
      %p151 = scmp.eq.s32.totalorder %s21, 0
      %p152 = por %p150, %p151
      %s154 = sadd.s32 %s153, 1
      %p157 = scmp.eq.s32.totalorder %s15, 1
      %p158 = scmp.ne.s32.totalorder %s153, %s155
      %p159 = scmp.eq.s32.totalorder %s15, 0
      %p160 = por %p158, %p159
      %p161 = scmp.ne.s32.totalorder %s153, %s155
      %p162 = scmp.eq.s32.totalorder %s20, 1
      %p163 = por %p161, %p162
      %p164 = scmp.ne.s32.totalorder %s155, %s156
      %p165 = scmp.eq.s32.totalorder %s20, 0
      %p166 = por %p164, %p165
      %p167 = scmp.ne.s32.totalorder %s155, %s156
      %p168 = scmp.eq.s32.totalorder %s21, 1
      %p169 = por %p167, %p168
      %p171 = scmp.ne.s32.totalorder %s156, %s170
      %p172 = scmp.eq.s32.totalorder %s21, 0
      %p173 = por %p171, %p172
      %s174 = ssub.s32 %s15, %s22
      %p175 = scmp.eq.s32.totalorder %s174, 0
      %s177 = sadd.s32 %s176, 1
      %s178 = scalar_select %p175, %s176, %s177
      %p181 = pneg %p175
      %p182 = scmp.eq.s32.totalorder %s15, 1
      %p183 = por %p181, %p182
      %p184 = scmp.ne.s32.totalorder %s176, %s179
      %p185 = scmp.eq.s32.totalorder %s15, 0
      %p186 = por %p184, %p185
      %p187 = scmp.ne.s32.totalorder %s176, %s179
      %p188 = scmp.eq.s32.totalorder %s20, 1
      %p189 = por %p187, %p188
      %p190 = scmp.ne.s32.totalorder %s179, %s180
      %p191 = scmp.eq.s32.totalorder %s20, 0
      %p192 = por %p190, %p191
      %p193 = scmp.ne.s32.totalorder %s179, %s180
      %p194 = scmp.eq.s32.totalorder %s21, 1
      %p195 = por %p193, %p194
      %p197 = scmp.ne.s32.totalorder %s180, %s196
      %p198 = scmp.eq.s32.totalorder %s21, 0
      %p199 = por %p197, %p198
      %p200 = scmp.le.s32.totalorder 1, %s15
      %p201 = scmp.lt.s32.totalorder %s15, 3
      %p202 = pnand %p200, %p201
      %p203 = pneg %p202
      // Predicated region
      $region9: #{tpu_custom_call.1} parent=5 // pred_check
        _
      $region10: #{tpu_custom_call.1} parent=5 // pred_check_branch
        %205 = sbr.rel (%p202) target = $region12
      $region11: #{tpu_custom_call.1} parent=5 // pred_region
        %s206 = ssub.s32 %s15, 1
        // Predicated region
        $region13: #{tpu_custom_call.1} parent=11 // pred_check
          %p207 = pneg %p166
        $region14: #{tpu_custom_call.1} parent=11 // pred_check_branch
          %209 = sbr.rel (%p207) target = $region16
        $region15: #{tpu_custom_call.1} parent=11 // pred_region
          _
        $region16: #{tpu_custom_call.1} parent=11 // pred_fallthru
          _
      $region12: #{tpu_custom_call.1} parent=5 // pred_fallthru
        _
      %p210 = scmp.lt.s32.totalorder %s15, 2
      // Predicated region
      $region17: #{tpu_custom_call.1} parent=5 // pred_check
        %p211 = pneg %p210
      $region18: #{tpu_custom_call.1} parent=5 // pred_check_branch
        %213 = sbr.rel (%p211) target = $region20
      $region19: #{tpu_custom_call.1} parent=5 // pred_region
        // Predicated region
        $region21: #{tpu_custom_call.1} parent=19 // pred_check
          %p214 = pneg %p35
        $region22: #{tpu_custom_call.1} parent=19 // pred_check_branch
          %216 = sbr.rel (%p214) target = $region24
        $region23: #{tpu_custom_call.1} parent=19 // pred_region
          %p217 = scmp.lt.s32.totalorder %s15, 1
          %s218 = scalar_select %p217, %s15, 1
          %s219 = smul.addr %s218, 2
          %s220 = smul.addr %s219, 4
          %s221 = scalar_lea.vmem %s0, %s220
        $region24: #{tpu_custom_call.1} parent=19 // pred_fallthru
          _
        // Predicated region
        $region25: #{tpu_custom_call.1} parent=19 // pred_check
          %p222 = pneg %p61
        $region26: #{tpu_custom_call.1} parent=19 // pred_check_branch
          %224 = sbr.rel (%p222) target = $region28
        $region27: #{tpu_custom_call.1} parent=19 // pred_region
          %p225 = scmp.lt.s32.totalorder %s15, 1
          %s226 = scalar_select %p225, %s15, 1
          %s227 = smul.addr %s226, 32
          %s228 = smul.addr %s227, 4
          %s229 = scalar_lea.vmem %s1, %s228
        $region28: #{tpu_custom_call.1} parent=19 // pred_fallthru
          _
        // Predicated region
        $region29: #{tpu_custom_call.1} parent=19 // pred_check
          %p230 = pneg %p87
        $region30: #{tpu_custom_call.1} parent=19 // pred_check_branch
          %232 = sbr.rel (%p230) target = $region32
        $region31: #{tpu_custom_call.1} parent=19 // pred_region
          %p233 = scmp.lt.s32.totalorder %s15, 1
          %s234 = scalar_select %p233, %s15, 1
          %s235 = smul.addr %s234, 2
          %s236 = smul.addr %s235, 4
          %s237 = scalar_lea.vmem %s2, %s236
        $region32: #{tpu_custom_call.1} parent=19 // pred_fallthru
          _
        // Predicated region
        $region33: #{tpu_custom_call.1} parent=19 // pred_check
          %p238 = pneg %p113
        $region34: #{tpu_custom_call.1} parent=19 // pred_check_branch
          %240 = sbr.rel (%p238) target = $region36
        $region35: #{tpu_custom_call.1} parent=19 // pred_region
          %p241 = scmp.lt.s32.totalorder %s15, 1
          %s242 = scalar_select %p241, %s15, 1
          %s243 = smul.addr %s242, 32
          %s244 = smul.addr %s243, 4
          %s245 = scalar_lea.vmem %s3, %s244
        $region36: #{tpu_custom_call.1} parent=19 // pred_fallthru
          _
        // Predicated region
        $region37: #{tpu_custom_call.1} parent=19 // pred_check
          %p246 = pneg %p139
        $region38: #{tpu_custom_call.1} parent=19 // pred_check_branch
          %248 = sbr.rel (%p246) target = $region40
        $region39: #{tpu_custom_call.1} parent=19 // pred_region
          %p249 = scmp.lt.s32.totalorder %s15, 1
          %s250 = scalar_select %p249, %s15, 1
          %s251 = smul.addr %s250, 2
          %s252 = smul.addr %s251, 4
          %s253 = scalar_lea.vmem %s4, %s252
        $region40: #{tpu_custom_call.1} parent=19 // pred_fallthru
          _
      $region20: #{tpu_custom_call.1} parent=5 // pred_fallthru
        _
      %p254 = scmp.le.s32.totalorder 1, %s15
      %p255 = scmp.lt.s32.totalorder %s15, 3
      %p256 = pnand %p254, %p255
      %p257 = pneg %p256
      // Predicated region
      $region41: #{tpu_custom_call.1} parent=5 // pred_check
        _
      $region42: #{tpu_custom_call.1} parent=5 // pred_check_branch
        %259 = sbr.rel (%p256) target = $region44
      $region43: #{tpu_custom_call.1} parent=5 // pred_region
        %s260 = ssub.s32 %s15, 1
        %p261 = scmp.lt.s32.totalorder %s20, 1
        %s262 = scalar_select %p261, %s20, 1
        %s263 = smul.addr %s262, 2
        %s264 = smul.addr %s263, 4
        %s265 = scalar_lea.vmem %s0, %s264
        %p266 = pneg %p41
        %p267 = pneg %p38
        %p268 = scmp.lt.s32.totalorder %s20, 1
        %s269 = scalar_select %p268, %s20, 1
        %s270 = smul.addr %s269, 32
        %s271 = smul.addr %s270, 4
        %s272 = scalar_lea.vmem %s1, %s271
        %p273 = pneg %p67
        %p274 = pneg %p64
        %p275 = scmp.lt.s32.totalorder %s20, 1
        %s276 = scalar_select %p275, %s20, 1
        %s277 = smul.addr %s276, 2
        %s278 = smul.addr %s277, 4
        %s279 = scalar_lea.vmem %s2, %s278
        %p280 = pneg %p93
        %p281 = pneg %p90
        %p282 = scmp.lt.s32.totalorder %s20, 1
        %s283 = scalar_select %p282, %s20, 1
        %s284 = smul.addr %s283, 32
        %s285 = smul.addr %s284, 4
        %s286 = scalar_lea.vmem %s3, %s285
        %p287 = pneg %p119
        %p288 = pneg %p116
        %p289 = scmp.lt.s32.totalorder %s20, 1
        %s290 = scalar_select %p289, %s20, 1
        %s291 = smul.addr %s290, 2
        %s292 = smul.addr %s291, 4
        %s293 = scalar_lea.vmem %s4, %s292
        %p294 = pneg %p145
        %p295 = pneg %p142
        %p296 = pneg %p166
        %p297 = pneg %p163
        %p298 = pneg %p192
        %p299 = pneg %p189
        %s300 = sand.u32 %s179, 1
        %s301 = scalar_lea.sflag [#allocation4], %s300
        %s302 = sand.u32 %s179, 1
        %s303 = smul.addr %s302, 8
        %s304 = scalar_lea.vmem [#allocation3], %s303
        %p305 = scmp.lt.s32.totalorder %s20, 1
        %s306 = scalar_select %p305, %s20, 1
        %s307 = smul.addr %s306, 2
        %s308 = smul.addr %s307, 4
        %s309 = scalar_lea.vmem %s0, %s308
        %p310 = scmp.lt.s32.totalorder %s20, 1
        %s311 = scalar_select %p310, %s20, 1
        %s312 = smul.addr %s311, 32
        %s313 = smul.addr %s312, 4
        %s314 = scalar_lea.vmem %s1, %s313
        %p315 = scmp.lt.s32.totalorder %s20, 1
        %s316 = scalar_select %p315, %s20, 1
        %s317 = smul.addr %s316, 2
        %s318 = smul.addr %s317, 4
        %s319 = scalar_lea.vmem %s2, %s318
        %p320 = scmp.lt.s32.totalorder %s20, 1
        %s321 = scalar_select %p320, %s20, 1
        %s322 = smul.addr %s321, 32
        %s323 = smul.addr %s322, 4
        %s324 = scalar_lea.vmem %s3, %s323
        %p325 = scmp.lt.s32.totalorder %s20, 1
        %s326 = scalar_select %p325, %s20, 1
        %s327 = smul.addr %s326, 2
        %s328 = smul.addr %s327, 4
        %s329 = scalar_lea.vmem %s4, %s328
        %v331 = vld [vmem:[%s309] sm:$0xff]
        %v332 = vld [vmem:[%s5] sm:$0xf]
        %v333 = vld [vmem:[%s319] sm:$0xff]
        %v334 = vunpack.c.l.bf16 %v333
        %v335 = vunpack.c.h.bf16 %v333
        %v336 = vmul.f32 %v334, %v334
        %v337 = vmul.f32 %v335, %v335
        %v338 = vrot.slane %v336, 4
        %v339 = vadd.f32 %v336, %v338
        %v340 = vrot.slane %v339, 2
        %v341 = vadd.f32 %v339, %v340
        %v342 = vrot.slane %v341, 1
        %v343 = vadd.f32 %v341, %v342
        %v344 = vrot.slane %v337, 4
        %v345 = vadd.f32 %v337, %v344
        %v346 = vrot.slane %v345, 2
        %v347 = vadd.f32 %v345, %v346
        %v348 = vrot.slane %v347, 1
        %v349 = vadd.f32 %v347, %v348
        %v350 = vmul.f32 %v343, -0.5
        %v351 = vmul.f32 %v349, -0.5
        %v352 = vld [vmem:[%s329] sm:$0xff]
        %v353 = vunpack.c.l.bf16 %v352
        %v354 = vunpack.c.h.bf16 %v352
        %v355 = vmul.f32 %v353, %v353
        %v356 = vmul.f32 %v354, %v354
        %v357 = vrot.slane %v355, 4
        %v358 = vadd.f32 %v355, %v357
        %v359 = vrot.slane %v358, 2
        %v360 = vadd.f32 %v358, %v359
        %v361 = vrot.slane %v360, 1
        %v362 = vadd.f32 %v360, %v361
        %v363 = vrot.slane %v356, 4
        %v364 = vadd.f32 %v356, %v363
        %v365 = vrot.slane %v364, 2
        %v366 = vadd.f32 %v364, %v365
        %v367 = vrot.slane %v366, 1
        %v368 = vadd.f32 %v366, %v367
        %v369 = vmul.f32 %v362, -0.5
        %v370 = vmul.f32 %v368, -0.5
        %v371 = vld [vmem:[%s314] sm:$0xf]
        %v372 = vld [vmem:[%s314 + $0x4] sm:$0xf]
        %v373 = vld [vmem:[%s314 + $0x8] sm:$0xf]
        %v374 = vld [vmem:[%s314 + $0xc] sm:$0xf]
        %v375 = vld [vmem:[%s314 + $0x10] sm:$0xf]
        %v376 = vld [vmem:[%s314 + $0x14] sm:$0xf]
        %v377 = vld [vmem:[%s314 + $0x18] sm:$0xf]
        %v378 = vld [vmem:[%s314 + $0x1c] sm:$0xf]
        %v379 = vld [vmem:[%s314 + $0x20] sm:$0xf]
        %v380 = vld [vmem:[%s314 + $0x24] sm:$0xf]
        %v381 = vld [vmem:[%s314 + $0x28] sm:$0xf]
        %v382 = vld [vmem:[%s314 + $0x2c] sm:$0xf]
        %v383 = vld [vmem:[%s314 + $0x30] sm:$0xf]
        %v384 = vld [vmem:[%s314 + $0x34] sm:$0xf]
        %v385 = vld [vmem:[%s314 + $0x38] sm:$0xf]
        %v386 = vld [vmem:[%s314 + $0x3c] sm:$0xf]
        %v387 = vld [vmem:[%s314 + $0x40] sm:$0xf]
        %v388 = vld [vmem:[%s314 + $0x44] sm:$0xf]
        %v389 = vld [vmem:[%s314 + $0x48] sm:$0xf]
        %v390 = vld [vmem:[%s314 + $0x4c] sm:$0xf]
        %v391 = vld [vmem:[%s314 + $0x50] sm:$0xf]
        %v392 = vld [vmem:[%s314 + $0x54] sm:$0xf]
        %v393 = vld [vmem:[%s314 + $0x58] sm:$0xf]
        %v394 = vld [vmem:[%s314 + $0x5c] sm:$0xf]
        %v395 = vld [vmem:[%s314 + $0x60] sm:$0xf]
        %v396 = vld [vmem:[%s314 + $0x64] sm:$0xf]
        %v397 = vld [vmem:[%s314 + $0x68] sm:$0xf]
        %v398 = vld [vmem:[%s314 + $0x6c] sm:$0xf]
        %v399 = vld [vmem:[%s314 + $0x70] sm:$0xf]
        %v400 = vld [vmem:[%s314 + $0x74] sm:$0xf]
        %v401 = vld [vmem:[%s314 + $0x78] sm:$0xf]
        %v402 = vld [vmem:[%s314 + $0x7c] sm:$0xf]
        %v403 = vunpack.c.l.bf16 %v371
        %v404 = vunpack.c.l.bf16 %v372
        %v405 = vunpack.c.l.bf16 %v373
        %v406 = vunpack.c.l.bf16 %v374
        %v407 = vunpack.c.l.bf16 %v375
        %v408 = vunpack.c.l.bf16 %v376
        %v409 = vunpack.c.l.bf16 %v377
        %v410 = vunpack.c.l.bf16 %v378
        %v411 = vunpack.c.l.bf16 %v379
        %v412 = vunpack.c.l.bf16 %v380
        %v413 = vunpack.c.l.bf16 %v381
        %v414 = vunpack.c.l.bf16 %v382
        %v415 = vunpack.c.l.bf16 %v383
        %v416 = vunpack.c.l.bf16 %v384
        %v417 = vunpack.c.l.bf16 %v385
        %v418 = vunpack.c.l.bf16 %v386
        %v419 = vunpack.c.l.bf16 %v387
        %v420 = vunpack.c.l.bf16 %v388
        %v421 = vunpack.c.l.bf16 %v389
        %v422 = vunpack.c.l.bf16 %v390
        %v423 = vunpack.c.l.bf16 %v391
        %v424 = vunpack.c.l.bf16 %v392
        %v425 = vunpack.c.l.bf16 %v393
        %v426 = vunpack.c.l.bf16 %v394
        %v427 = vunpack.c.l.bf16 %v395
        %v428 = vunpack.c.l.bf16 %v396
        %v429 = vunpack.c.l.bf16 %v397
        %v430 = vunpack.c.l.bf16 %v398
        %v431 = vunpack.c.l.bf16 %v399
        %v432 = vunpack.c.l.bf16 %v400
        %v433 = vunpack.c.l.bf16 %v401
        %v434 = vunpack.c.l.bf16 %v402
        %v435 = vmul.f32 %v403, %v403
        %v436 = vmul.f32 %v404, %v404
        %v437 = vmul.f32 %v405, %v405
        %v438 = vmul.f32 %v406, %v406
        %v439 = vmul.f32 %v407, %v407
        %v440 = vmul.f32 %v408, %v408
        %v441 = vmul.f32 %v409, %v409
        %v442 = vmul.f32 %v410, %v410
        %v443 = vmul.f32 %v411, %v411
        %v444 = vmul.f32 %v412, %v412
        %v445 = vmul.f32 %v413, %v413
        %v446 = vmul.f32 %v414, %v414
        %v447 = vmul.f32 %v415, %v415
        %v448 = vmul.f32 %v416, %v416
        %v449 = vmul.f32 %v417, %v417
        %v450 = vmul.f32 %v418, %v418
        %v451 = vmul.f32 %v419, %v419
        %v452 = vmul.f32 %v420, %v420
        %v453 = vmul.f32 %v421, %v421
        %v454 = vmul.f32 %v422, %v422
        %v455 = vmul.f32 %v423, %v423
        %v456 = vmul.f32 %v424, %v424
        %v457 = vmul.f32 %v425, %v425
        %v458 = vmul.f32 %v426, %v426
        %v459 = vmul.f32 %v427, %v427
        %v460 = vmul.f32 %v428, %v428
        %v461 = vmul.f32 %v429, %v429
        %v462 = vmul.f32 %v430, %v430
        %v463 = vmul.f32 %v431, %v431
        %v464 = vmul.f32 %v432, %v432
        %v465 = vmul.f32 %v433, %v433
        %v466 = vmul.f32 %v434, %v434
        %vm467 = vcmask 64512
        %v468 = vsel %vm467, %v435, 0.0
        %469 = vadd.xlane.f32.xlu0 %v468
        %v470 = vpop.xlane.xlu0 %469
        %v471 = vsel %vm467, %v436, 0.0
        %472 = vadd.xlane.f32.xlu0 %v471
        %v473 = vpop.xlane.xlu0 %472
        %v474 = vsel %vm467, %v437, 0.0
        %475 = vadd.xlane.f32.xlu0 %v474
        %v476 = vpop.xlane.xlu0 %475
        %v477 = vsel %vm467, %v438, 0.0
        %478 = vadd.xlane.f32.xlu0 %v477
        %v479 = vpop.xlane.xlu0 %478
        %v480 = vsel %vm467, %v439, 0.0
        %481 = vadd.xlane.f32.xlu0 %v480
        %v482 = vpop.xlane.xlu0 %481
        %v483 = vsel %vm467, %v440, 0.0
        %484 = vadd.xlane.f32.xlu0 %v483
        %v485 = vpop.xlane.xlu0 %484
        %v486 = vsel %vm467, %v441, 0.0
        %487 = vadd.xlane.f32.xlu0 %v486
        %v488 = vpop.xlane.xlu0 %487
        %v489 = vsel %vm467, %v442, 0.0
        %490 = vadd.xlane.f32.xlu0 %v489
        %v491 = vpop.xlane.xlu0 %490
        %v492 = vsel %vm467, %v443, 0.0
        %493 = vadd.xlane.f32.xlu0 %v492
        %v494 = vpop.xlane.xlu0 %493
        %v495 = vsel %vm467, %v444, 0.0
        %496 = vadd.xlane.f32.xlu0 %v495
        %v497 = vpop.xlane.xlu0 %496
        %v498 = vsel %vm467, %v445, 0.0
        %499 = vadd.xlane.f32.xlu0 %v498
        %v500 = vpop.xlane.xlu0 %499
        %v501 = vsel %vm467, %v446, 0.0
        %502 = vadd.xlane.f32.xlu0 %v501
        %v503 = vpop.xlane.xlu0 %502
        %v504 = vsel %vm467, %v447, 0.0
        %505 = vadd.xlane.f32.xlu0 %v504
        %v506 = vpop.xlane.xlu0 %505
        %v507 = vsel %vm467, %v448, 0.0
        %508 = vadd.xlane.f32.xlu0 %v507
        %v509 = vpop.xlane.xlu0 %508
        %v510 = vsel %vm467, %v449, 0.0
        %511 = vadd.xlane.f32.xlu0 %v510
        %v512 = vpop.xlane.xlu0 %511
        %v513 = vsel %vm467, %v450, 0.0
        %514 = vadd.xlane.f32.xlu0 %v513
        %v515 = vpop.xlane.xlu0 %514
        %v516 = vsel %vm467, %v451, 0.0
        %517 = vadd.xlane.f32.xlu0 %v516
        %v518 = vpop.xlane.xlu0 %517
        %v519 = vsel %vm467, %v452, 0.0
        %520 = vadd.xlane.f32.xlu0 %v519
        %v521 = vpop.xlane.xlu0 %520
        %v522 = vsel %vm467, %v453, 0.0
        %523 = vadd.xlane.f32.xlu0 %v522
        %v524 = vpop.xlane.xlu0 %523
        %v525 = vsel %vm467, %v454, 0.0
        %526 = vadd.xlane.f32.xlu0 %v525
        %v527 = vpop.xlane.xlu0 %526
        %v528 = vsel %vm467, %v455, 0.0
        %529 = vadd.xlane.f32.xlu0 %v528
        %v530 = vpop.xlane.xlu0 %529
        %v531 = vsel %vm467, %v456, 0.0
        %532 = vadd.xlane.f32.xlu0 %v531
        %v533 = vpop.xlane.xlu0 %532
        %v534 = vsel %vm467, %v457, 0.0
        %535 = vadd.xlane.f32.xlu0 %v534
        %v536 = vpop.xlane.xlu0 %535
        %v537 = vsel %vm467, %v458, 0.0
        %538 = vadd.xlane.f32.xlu0 %v537
        %v539 = vpop.xlane.xlu0 %538
        %v540 = vsel %vm467, %v459, 0.0
        %541 = vadd.xlane.f32.xlu0 %v540
        %v542 = vpop.xlane.xlu0 %541
        %v543 = vsel %vm467, %v460, 0.0
        %544 = vadd.xlane.f32.xlu0 %v543
        %v545 = vpop.xlane.xlu0 %544
        %v546 = vsel %vm467, %v461, 0.0
        %547 = vadd.xlane.f32.xlu0 %v546
        %v548 = vpop.xlane.xlu0 %547
        %v549 = vsel %vm467, %v462, 0.0
        %550 = vadd.xlane.f32.xlu0 %v549
        %v551 = vpop.xlane.xlu0 %550
        %v552 = vsel %vm467, %v463, 0.0
        %553 = vadd.xlane.f32.xlu0 %v552
        %v554 = vpop.xlane.xlu0 %553
        %v555 = vsel %vm467, %v464, 0.0
        %556 = vadd.xlane.f32.xlu0 %v555
        %v557 = vpop.xlane.xlu0 %556
        %v558 = vsel %vm467, %v465, 0.0
        %559 = vadd.xlane.f32.xlu0 %v558
        %v560 = vpop.xlane.xlu0 %559
        %v561 = vsel %vm467, %v466, 0.0
        %562 = vadd.xlane.f32.xlu0 %v561
        %v563 = vpop.xlane.xlu0 %562
        %v564 = vmul.f32 %v470, -0.5
        %v565 = vmul.f32 %v473, -0.5
        %v566 = vmul.f32 %v476, -0.5
        %v567 = vmul.f32 %v479, -0.5
        %v568 = vmul.f32 %v482, -0.5
        %v569 = vmul.f32 %v485, -0.5
        %v570 = vmul.f32 %v488, -0.5
        %v571 = vmul.f32 %v491, -0.5
        %v572 = vmul.f32 %v494, -0.5
        %v573 = vmul.f32 %v497, -0.5
        %v574 = vmul.f32 %v500, -0.5
        %v575 = vmul.f32 %v503, -0.5
        %v576 = vmul.f32 %v506, -0.5
        %v577 = vmul.f32 %v509, -0.5
        %v578 = vmul.f32 %v512, -0.5
        %v579 = vmul.f32 %v515, -0.5
        %v580 = vmul.f32 %v518, -0.5
        %v581 = vmul.f32 %v521, -0.5
        %v582 = vmul.f32 %v524, -0.5
        %v583 = vmul.f32 %v527, -0.5
        %v584 = vmul.f32 %v530, -0.5
        %v585 = vmul.f32 %v533, -0.5
        %v586 = vmul.f32 %v536, -0.5
        %v587 = vmul.f32 %v539, -0.5
        %v588 = vmul.f32 %v542, -0.5
        %v589 = vmul.f32 %v545, -0.5
        %v590 = vmul.f32 %v548, -0.5
        %v591 = vmul.f32 %v551, -0.5
        %v592 = vmul.f32 %v554, -0.5
        %v593 = vmul.f32 %v557, -0.5
        %v594 = vmul.f32 %v560, -0.5
        %v595 = vmul.f32 %v563, -0.5
        %v628 = vunpack.c.l.b16 %v371
        %v629 = vunpack.c.l.b16 %v372
        %v630 = vunpack.c.l.b16 %v373
        %v631 = vunpack.c.l.b16 %v374
        %v632 = vunpack.c.l.b16 %v375
        %v633 = vunpack.c.l.b16 %v376
        %v634 = vunpack.c.l.b16 %v377
        %v635 = vunpack.c.l.b16 %v378
        %v636 = vunpack.c.l.b16 %v379
        %v637 = vunpack.c.l.b16 %v380
        %v638 = vunpack.c.l.b16 %v381
        %v639 = vunpack.c.l.b16 %v382
        %v640 = vunpack.c.l.b16 %v383
        %v641 = vunpack.c.l.b16 %v384
        %v642 = vunpack.c.l.b16 %v385
        %v643 = vunpack.c.l.b16 %v386
        %v644 = vunpack.c.l.b16 %v387
        %v645 = vunpack.c.l.b16 %v388
        %v646 = vunpack.c.l.b16 %v389
        %v647 = vunpack.c.l.b16 %v390
        %v648 = vunpack.c.l.b16 %v391
        %v649 = vunpack.c.l.b16 %v392
        %v650 = vunpack.c.l.b16 %v393
        %v651 = vunpack.c.l.b16 %v394
        %v652 = vunpack.c.l.b16 %v395
        %v653 = vunpack.c.l.b16 %v396
        %v654 = vunpack.c.l.b16 %v397
        %v655 = vunpack.c.l.b16 %v398
        %v656 = vunpack.c.l.b16 %v399
        %v657 = vunpack.c.l.b16 %v400
        %v658 = vunpack.c.l.b16 %v401
        %v659 = vunpack.c.l.b16 %v402
        %v660 = vpack.c.b16 %v629, %v628
        %v661 = vpack.c.b16 %v631, %v630
        %v662 = vpack.c.b16 %v633, %v632
        %v663 = vpack.c.b16 %v635, %v634
        %v664 = vpack.c.b16 %v637, %v636
        %v665 = vpack.c.b16 %v639, %v638
        %v666 = vpack.c.b16 %v641, %v640
        %v667 = vpack.c.b16 %v643, %v642
        %v668 = vpack.c.b16 %v645, %v644
        %v669 = vpack.c.b16 %v647, %v646
        %v670 = vpack.c.b16 %v649, %v648
        %v671 = vpack.c.b16 %v651, %v650
        %v672 = vpack.c.b16 %v653, %v652
        %v673 = vpack.c.b16 %v655, %v654
        %v674 = vpack.c.b16 %v657, %v656
        %v675 = vpack.c.b16 %v659, %v658
        %v677 = vunpack.c.l.b16 %v333
        %v678 = vunpack.c.h.b16 %v333
        %v679 = vpack.c.b16 %v677, %v677
        %v680 = vpack.c.b16 %v678, %v678
        %v682 = vsel %vm467, %v660, 0
        %v685 = vsel %vm467, %v661, 0
        %v688 = vsel %vm467, %v662, 0
        %v691 = vsel %vm467, %v663, 0
        %v694 = vsel %vm467, %v664, 0
        %v697 = vsel %vm467, %v665, 0
        %v700 = vsel %vm467, %v666, 0
        %v703 = vsel %vm467, %v667, 0
        %v706 = vsel %vm467, %v668, 0
        %v709 = vsel %vm467, %v669, 0
        %v712 = vsel %vm467, %v670, 0
        %v715 = vsel %vm467, %v671, 0
        %v718 = vsel %vm467, %v672, 0
        %v721 = vsel %vm467, %v673, 0
        %v724 = vsel %vm467, %v674, 0
        %v727 = vsel %vm467, %v675, 0
        %vm729 = vcmask 1043456
        %v731 = vsel %vm729, %v679, 0
        %v734 = vsel %vm729, %v680, 0
        %736 = vmatprep.subr.bf16.mxu0 %v734
        %737 = vmatpush1.bf16.msra.mxu0 %v731
        %738 = vmatprep.subr.bf16.mxu0 0
        %739 = vmatpush1.bf16.msra.mxu0 0
        %740 = vmatprep.subr.bf16.mxu0 0
        %741 = vmatpush1.bf16.msra.mxu0 0
        %742 = vmatprep.subr.bf16.mxu0 0
        %743 = vmatpush1.bf16.msra.mxu0 0
        %744 = vmatprep.subr.bf16.mxu0 0
        %745 = vmatpush1.bf16.msra.mxu0 0
        %746 = vmatprep.subr.bf16.mxu0 0
        %747 = vmatpush1.bf16.msra.mxu0 0
        %748 = vmatprep.subr.bf16.mxu0 0
        %749 = vmatpush1.bf16.msra.mxu0 0
        %750 = vmatprep.subr.bf16.mxu0 0
        %751 = vmatpush1.bf16.msra.mxu0 0
        %752 = vmatprep.subr.bf16.mxu0 0
        %753 = vmatpush1.bf16.msra.mxu0 0
        %754 = vmatprep.subr.bf16.mxu0 0
        %755 = vmatpush1.bf16.msra.mxu0 0
        %756 = vmatprep.subr.bf16.mxu0 0
        %757 = vmatpush1.bf16.msra.mxu0 0
        %758 = vmatprep.subr.bf16.mxu0 0
        %759 = vmatpush1.bf16.msra.mxu0 0
        %760 = vmatprep.subr.bf16.mxu0 0
        %761 = vmatpush1.bf16.msra.mxu0 0
        %762 = vmatprep.subr.bf16.mxu0 0
        %763 = vmatpush1.bf16.msra.mxu0 0
        %764 = vmatprep.subr.bf16.mxu0 0
        %765 = vmatpush1.bf16.msra.mxu0 0
        %766 = vmatprep.subr.bf16.mxu0 0
        %767 = vmatpush1.bf16.msra.mxu0 0
        %768 = vmatprep.mubr.bf16.mxu0 0
        %769 = vmatmul.mubr.bf16.gmra.mrb[0].mxu0 %v682
        %v770 = vpop.f32.mrb[0].mxu0
        %v771 = vadd.f32 %v564, %v770
        %v772 = vpop.f32.mrb[0].mxu0
        %v773 = vadd.f32 %v564, %v772
        %v774 = vpop.f32.mrb[0].mxu0
        %v775 = vadd.f32 %v565, %v774
        %v776 = vpop.f32.mrb[0].mxu0
        %v777 = vadd.f32 %v565, %v776
        %778 = vmatprep.mubr.bf16.mxu0 0
        %779 = vmatmul.mubr.bf16.gmra.mrb[0].mxu0 %v685
        %v780 = vpop.f32.mrb[0].mxu0
        %v781 = vadd.f32 %v566, %v780
        %v782 = vpop.f32.mrb[0].mxu0
        %v783 = vadd.f32 %v566, %v782
        %v784 = vpop.f32.mrb[0].mxu0
        %v785 = vadd.f32 %v567, %v784
        %v786 = vpop.f32.mrb[0].mxu0
        %v787 = vadd.f32 %v567, %v786
        %788 = vmatprep.mubr.bf16.mxu0 0
        %789 = vmatmul.mubr.bf16.gmra.mrb[0].mxu0 %v688
        %v790 = vpop.f32.mrb[0].mxu0
        %v791 = vadd.f32 %v568, %v790
        %v792 = vpop.f32.mrb[0].mxu0
        %v793 = vadd.f32 %v568, %v792
        %v794 = vpop.f32.mrb[0].mxu0
        %v795 = vadd.f32 %v569, %v794
        %v796 = vpop.f32.mrb[0].mxu0
        %v797 = vadd.f32 %v569, %v796
        %798 = vmatprep.mubr.bf16.mxu0 0
        %799 = vmatmul.mubr.bf16.gmra.mrb[0].mxu0 %v691
        %v800 = vpop.f32.mrb[0].mxu0
        %v801 = vadd.f32 %v570, %v800
        %v802 = vpop.f32.mrb[0].mxu0
        %v803 = vadd.f32 %v570, %v802
        %v804 = vpop.f32.mrb[0].mxu0
        %v805 = vadd.f32 %v571, %v804
        %v806 = vpop.f32.mrb[0].mxu0
        %v807 = vadd.f32 %v571, %v806
        %808 = vmatprep.mubr.bf16.mxu0 0
        %809 = vmatmul.mubr.bf16.gmra.mrb[0].mxu0 %v694
        %v810 = vpop.f32.mrb[0].mxu0
        %v811 = vadd.f32 %v572, %v810
        %v812 = vpop.f32.mrb[0].mxu0
        %v813 = vadd.f32 %v572, %v812
        %v814 = vpop.f32.mrb[0].mxu0
        %v815 = vadd.f32 %v573, %v814
        %v816 = vpop.f32.mrb[0].mxu0
        %v817 = vadd.f32 %v573, %v816
        %818 = vmatprep.mubr.bf16.mxu0 0
        %819 = vmatmul.mubr.bf16.gmra.mrb[0].mxu0 %v697
        %v820 = vpop.f32.mrb[0].mxu0
        %v821 = vadd.f32 %v574, %v820
        %v822 = vpop.f32.mrb[0].mxu0
        %v823 = vadd.f32 %v574, %v822
        %v824 = vpop.f32.mrb[0].mxu0
        %v825 = vadd.f32 %v575, %v824
        %v826 = vpop.f32.mrb[0].mxu0
        %v827 = vadd.f32 %v575, %v826
        %828 = vmatprep.mubr.bf16.mxu0 0
        %829 = vmatmul.mubr.bf16.gmra.mrb[0].mxu0 %v700
        %v830 = vpop.f32.mrb[0].mxu0
        %v831 = vadd.f32 %v576, %v830
        %v832 = vpop.f32.mrb[0].mxu0
        %v833 = vadd.f32 %v576, %v832
        %v834 = vpop.f32.mrb[0].mxu0
        %v835 = vadd.f32 %v577, %v834
        %v836 = vpop.f32.mrb[0].mxu0
        %v837 = vadd.f32 %v577, %v836
        %838 = vmatprep.mubr.bf16.mxu0 0
        %839 = vmatmul.mubr.bf16.gmra.mrb[0].mxu0 %v703
        %v840 = vpop.f32.mrb[0].mxu0
        %v841 = vadd.f32 %v578, %v840
        %v842 = vpop.f32.mrb[0].mxu0
        %v843 = vadd.f32 %v578, %v842
        %v844 = vpop.f32.mrb[0].mxu0
        %v845 = vadd.f32 %v579, %v844
        %v846 = vpop.f32.mrb[0].mxu0
        %v847 = vadd.f32 %v579, %v846
        %848 = vmatprep.mubr.bf16.mxu0 0
        %849 = vmatmul.mubr.bf16.gmra.mrb[0].mxu0 %v706
        %v850 = vpop.f32.mrb[0].mxu0
        %v851 = vadd.f32 %v580, %v850
        %v852 = vpop.f32.mrb[0].mxu0
        %v853 = vadd.f32 %v580, %v852
        %v854 = vpop.f32.mrb[0].mxu0
        %v855 = vadd.f32 %v581, %v854
        %v856 = vpop.f32.mrb[0].mxu0
        %v857 = vadd.f32 %v581, %v856
        %858 = vmatprep.mubr.bf16.mxu0 0
        %859 = vmatmul.mubr.bf16.gmra.mrb[0].mxu0 %v709
        %v860 = vpop.f32.mrb[0].mxu0
        %v861 = vadd.f32 %v582, %v860
        %v862 = vpop.f32.mrb[0].mxu0
        %v863 = vadd.f32 %v582, %v862
        %v864 = vpop.f32.mrb[0].mxu0
        %v865 = vadd.f32 %v583, %v864
        %v866 = vpop.f32.mrb[0].mxu0
        %v867 = vadd.f32 %v583, %v866
        %868 = vmatprep.mubr.bf16.mxu0 0
        %869 = vmatmul.mubr.bf16.gmra.mrb[0].mxu0 %v712
        %v870 = vpop.f32.mrb[0].mxu0
        %v871 = vadd.f32 %v584, %v870
        %v872 = vpop.f32.mrb[0].mxu0
        %v873 = vadd.f32 %v584, %v872
        %v874 = vpop.f32.mrb[0].mxu0
        %v875 = vadd.f32 %v585, %v874
        %v876 = vpop.f32.mrb[0].mxu0
        %v877 = vadd.f32 %v585, %v876
        %878 = vmatprep.mubr.bf16.mxu0 0
        %879 = vmatmul.mubr.bf16.gmra.mrb[0].mxu0 %v715
        %v880 = vpop.f32.mrb[0].mxu0
        %v881 = vadd.f32 %v586, %v880
        %v882 = vpop.f32.mrb[0].mxu0
        %v883 = vadd.f32 %v586, %v882
        %v884 = vpop.f32.mrb[0].mxu0
        %v885 = vadd.f32 %v587, %v884
        %v886 = vpop.f32.mrb[0].mxu0
        %v887 = vadd.f32 %v587, %v886
        %888 = vmatprep.mubr.bf16.mxu0 0
        %889 = vmatmul.mubr.bf16.gmra.mrb[0].mxu0 %v718
        %v890 = vpop.f32.mrb[0].mxu0
        %v891 = vadd.f32 %v588, %v890
        %v892 = vpop.f32.mrb[0].mxu0
        %v893 = vadd.f32 %v588, %v892
        %v894 = vpop.f32.mrb[0].mxu0
        %v895 = vadd.f32 %v589, %v894
        %v896 = vpop.f32.mrb[0].mxu0
        %v897 = vadd.f32 %v589, %v896
        %898 = vmatprep.mubr.bf16.mxu0 0
        %899 = vmatmul.mubr.bf16.gmra.mrb[0].mxu0 %v721
        %v900 = vpop.f32.mrb[0].mxu0
        %v901 = vadd.f32 %v590, %v900
        %v902 = vpop.f32.mrb[0].mxu0
        %v903 = vadd.f32 %v590, %v902
        %v904 = vpop.f32.mrb[0].mxu0
        %v905 = vadd.f32 %v591, %v904
        %v906 = vpop.f32.mrb[0].mxu0
        %v907 = vadd.f32 %v591, %v906
        %908 = vmatprep.mubr.bf16.mxu0 0
        %909 = vmatmul.mubr.bf16.gmra.mrb[0].mxu0 %v724
        %v910 = vpop.f32.mrb[0].mxu0
        %v911 = vadd.f32 %v592, %v910
        %v912 = vpop.f32.mrb[0].mxu0
        %v913 = vadd.f32 %v592, %v912
        %v914 = vpop.f32.mrb[0].mxu0
        %v915 = vadd.f32 %v593, %v914
        %v916 = vpop.f32.mrb[0].mxu0
        %v917 = vadd.f32 %v593, %v916
        %918 = vmatprep.mubr.bf16.mxu0 0
        %919 = vmatmul.mubr.bf16.gmra.mrb[0].mxu0 %v727
        %v920 = vpop.f32.mrb[0].mxu0
        %v921 = vadd.f32 %v594, %v920
        %v922 = vpop.f32.mrb[0].mxu0
        %v923 = vadd.f32 %v594, %v922
        %v924 = vpop.f32.mrb[0].mxu0
        %v925 = vadd.f32 %v595, %v924
        %v926 = vpop.f32.mrb[0].mxu0
        %v927 = vadd.f32 %v595, %v926
        %928 = vdwg.mxu0
        %v929 = vadd.f32 %v771, %v350
        %v930 = vadd.f32 %v773, %v351
        %v931 = vadd.f32 %v775, %v350
        %v932 = vadd.f32 %v777, %v351
        %v933 = vadd.f32 %v781, %v350
        %v934 = vadd.f32 %v783, %v351
        %v935 = vadd.f32 %v785, %v350
        %v936 = vadd.f32 %v787, %v351
        %v937 = vadd.f32 %v791, %v350
        %v938 = vadd.f32 %v793, %v351
        %v939 = vadd.f32 %v795, %v350
        %v940 = vadd.f32 %v797, %v351
        %v941 = vadd.f32 %v801, %v350
        %v942 = vadd.f32 %v803, %v351
        %v943 = vadd.f32 %v805, %v350
        %v944 = vadd.f32 %v807, %v351
        %v945 = vadd.f32 %v811, %v350
        %v946 = vadd.f32 %v813, %v351
        %v947 = vadd.f32 %v815, %v350
        %v948 = vadd.f32 %v817, %v351
        %v949 = vadd.f32 %v821, %v350
        %v950 = vadd.f32 %v823, %v351
        %v951 = vadd.f32 %v825, %v350
        %v952 = vadd.f32 %v827, %v351
        %v953 = vadd.f32 %v831, %v350
        %v954 = vadd.f32 %v833, %v351
        %v955 = vadd.f32 %v835, %v350
        %v956 = vadd.f32 %v837, %v351
        %v957 = vadd.f32 %v841, %v350
        %v958 = vadd.f32 %v843, %v351
        %v959 = vadd.f32 %v845, %v350
        %v960 = vadd.f32 %v847, %v351
        %v961 = vadd.f32 %v851, %v350
        %v962 = vadd.f32 %v853, %v351
        %v963 = vadd.f32 %v855, %v350
        %v964 = vadd.f32 %v857, %v351
        %v965 = vadd.f32 %v861, %v350
        %v966 = vadd.f32 %v863, %v351
        %v967 = vadd.f32 %v865, %v350
        %v968 = vadd.f32 %v867, %v351
        %v969 = vadd.f32 %v871, %v350
        %v970 = vadd.f32 %v873, %v351
        %v971 = vadd.f32 %v875, %v350
        %v972 = vadd.f32 %v877, %v351
        %v973 = vadd.f32 %v881, %v350
        %v974 = vadd.f32 %v883, %v351
        %v975 = vadd.f32 %v885, %v350
        %v976 = vadd.f32 %v887, %v351
        %v977 = vadd.f32 %v891, %v350
        %v978 = vadd.f32 %v893, %v351
        %v979 = vadd.f32 %v895, %v350
        %v980 = vadd.f32 %v897, %v351
        %v981 = vadd.f32 %v901, %v350
        %v982 = vadd.f32 %v903, %v351
        %v983 = vadd.f32 %v905, %v350
        %v984 = vadd.f32 %v907, %v351
        %v985 = vadd.f32 %v911, %v350
        %v986 = vadd.f32 %v913, %v351
        %v987 = vadd.f32 %v915, %v350
        %v988 = vadd.f32 %v917, %v351
        %v989 = vadd.f32 %v921, %v350
        %v990 = vadd.f32 %v923, %v351
        %v991 = vadd.f32 %v925, %v350
        %v992 = vadd.f32 %v927, %v351
        %v993 = vmin.f32 %v929, 0.0
        %v994 = vmin.f32 %v930, 0.0
        %v995 = vmin.f32 %v931, 0.0
        %v996 = vmin.f32 %v932, 0.0
        %v997 = vmin.f32 %v933, 0.0
        %v998 = vmin.f32 %v934, 0.0
        %v999 = vmin.f32 %v935, 0.0
        %v1000 = vmin.f32 %v936, 0.0
        %v1001 = vmin.f32 %v937, 0.0
        %v1002 = vmin.f32 %v938, 0.0
        %v1003 = vmin.f32 %v939, 0.0
        %v1004 = vmin.f32 %v940, 0.0
        %v1005 = vmin.f32 %v941, 0.0
        %v1006 = vmin.f32 %v942, 0.0
        %v1007 = vmin.f32 %v943, 0.0
        %v1008 = vmin.f32 %v944, 0.0
        %v1009 = vmin.f32 %v945, 0.0
        %v1010 = vmin.f32 %v946, 0.0
        %v1011 = vmin.f32 %v947, 0.0
        %v1012 = vmin.f32 %v948, 0.0
        %v1013 = vmin.f32 %v949, 0.0
        %v1014 = vmin.f32 %v950, 0.0
        %v1015 = vmin.f32 %v951, 0.0
        %v1016 = vmin.f32 %v952, 0.0
        %v1017 = vmin.f32 %v953, 0.0
        %v1018 = vmin.f32 %v954, 0.0
        %v1019 = vmin.f32 %v955, 0.0
        %v1020 = vmin.f32 %v956, 0.0
        %v1021 = vmin.f32 %v957, 0.0
        %v1022 = vmin.f32 %v958, 0.0
        %v1023 = vmin.f32 %v959, 0.0
        %v1024 = vmin.f32 %v960, 0.0
        %v1025 = vmin.f32 %v961, 0.0
        %v1026 = vmin.f32 %v962, 0.0
        %v1027 = vmin.f32 %v963, 0.0
        %v1028 = vmin.f32 %v964, 0.0
        %v1029 = vmin.f32 %v965, 0.0
        %v1030 = vmin.f32 %v966, 0.0
        %v1031 = vmin.f32 %v967, 0.0
        %v1032 = vmin.f32 %v968, 0.0
        %v1033 = vmin.f32 %v969, 0.0
        %v1034 = vmin.f32 %v970, 0.0
        %v1035 = vmin.f32 %v971, 0.0
        %v1036 = vmin.f32 %v972, 0.0
        %v1037 = vmin.f32 %v973, 0.0
        %v1038 = vmin.f32 %v974, 0.0
        %v1039 = vmin.f32 %v975, 0.0
        %v1040 = vmin.f32 %v976, 0.0
        %v1041 = vmin.f32 %v977, 0.0
        %v1042 = vmin.f32 %v978, 0.0
        %v1043 = vmin.f32 %v979, 0.0
        %v1044 = vmin.f32 %v980, 0.0
        %v1045 = vmin.f32 %v981, 0.0
        %v1046 = vmin.f32 %v982, 0.0
        %v1047 = vmin.f32 %v983, 0.0
        %v1048 = vmin.f32 %v984, 0.0
        %v1049 = vmin.f32 %v985, 0.0
        %v1050 = vmin.f32 %v986, 0.0
        %v1051 = vmin.f32 %v987, 0.0
        %v1052 = vmin.f32 %v988, 0.0
        %v1053 = vmin.f32 %v989, 0.0
        %v1054 = vmin.f32 %v990, 0.0
        %v1055 = vmin.f32 %v991, 0.0
        %v1056 = vmin.f32 %v992, 0.0
        %v1057 = vmul.f32 %v993, 1.442695
        %v1058 = vpow.pop %v1057
        %v1059 = vmul.f32 %v994, 1.442695
        %v1060 = vpow.pop %v1059
        %v1061 = vmul.f32 %v995, 1.442695
        %v1062 = vpow.pop %v1061
        %v1063 = vmul.f32 %v996, 1.442695
        %v1064 = vpow.pop %v1063
        %v1065 = vmul.f32 %v997, 1.442695
        %v1066 = vpow.pop %v1065
        %v1067 = vmul.f32 %v998, 1.442695
        %v1068 = vpow.pop %v1067
        %v1069 = vmul.f32 %v999, 1.442695
        %v1070 = vpow.pop %v1069
        %v1071 = vmul.f32 %v1000, 1.442695
        %v1072 = vpow.pop %v1071
        %v1073 = vmul.f32 %v1001, 1.442695
        %v1074 = vpow.pop %v1073
        %v1075 = vmul.f32 %v1002, 1.442695
        %v1076 = vpow.pop %v1075
        %v1077 = vmul.f32 %v1003, 1.442695
        %v1078 = vpow.pop %v1077
        %v1079 = vmul.f32 %v1004, 1.442695
        %v1080 = vpow.pop %v1079
        %v1081 = vmul.f32 %v1005, 1.442695
        %v1082 = vpow.pop %v1081
        %v1083 = vmul.f32 %v1006, 1.442695
        %v1084 = vpow.pop %v1083
        %v1085 = vmul.f32 %v1007, 1.442695
        %v1086 = vpow.pop %v1085
        %v1087 = vmul.f32 %v1008, 1.442695
        %v1088 = vpow.pop %v1087
        %v1089 = vmul.f32 %v1009, 1.442695
        %v1090 = vpow.pop %v1089
        %v1091 = vmul.f32 %v1010, 1.442695
        %v1092 = vpow.pop %v1091
        %v1093 = vmul.f32 %v1011, 1.442695
        %v1094 = vpow.pop %v1093
        %v1095 = vmul.f32 %v1012, 1.442695
        %v1096 = vpow.pop %v1095
        %v1097 = vmul.f32 %v1013, 1.442695
        %v1098 = vpow.pop %v1097
        %v1099 = vmul.f32 %v1014, 1.442695
        %v1100 = vpow.pop %v1099
        %v1101 = vmul.f32 %v1015, 1.442695
        %v1102 = vpow.pop %v1101
        %v1103 = vmul.f32 %v1016, 1.442695
        %v1104 = vpow.pop %v1103
        %v1105 = vmul.f32 %v1017, 1.442695
        %v1106 = vpow.pop %v1105
        %v1107 = vmul.f32 %v1018, 1.442695
        %v1108 = vpow.pop %v1107
        %v1109 = vmul.f32 %v1019, 1.442695
        %v1110 = vpow.pop %v1109
        %v1111 = vmul.f32 %v1020, 1.442695
        %v1112 = vpow.pop %v1111
        %v1113 = vmul.f32 %v1021, 1.442695
        %v1114 = vpow.pop %v1113
        %v1115 = vmul.f32 %v1022, 1.442695
        %v1116 = vpow.pop %v1115
        %v1117 = vmul.f32 %v1023, 1.442695
        %v1118 = vpow.pop %v1117
        %v1119 = vmul.f32 %v1024, 1.442695
        %v1120 = vpow.pop %v1119
        %v1121 = vmul.f32 %v1025, 1.442695
        %v1122 = vpow.pop %v1121
        %v1123 = vmul.f32 %v1026, 1.442695
        %v1124 = vpow.pop %v1123
        %v1125 = vmul.f32 %v1027, 1.442695
        %v1126 = vpow.pop %v1125
        %v1127 = vmul.f32 %v1028, 1.442695
        %v1128 = vpow.pop %v1127
        %v1129 = vmul.f32 %v1029, 1.442695
        %v1130 = vpow.pop %v1129
        %v1131 = vmul.f32 %v1030, 1.442695
        %v1132 = vpow.pop %v1131
        %v1133 = vmul.f32 %v1031, 1.442695
        %v1134 = vpow.pop %v1133
        %v1135 = vmul.f32 %v1032, 1.442695
        %v1136 = vpow.pop %v1135
        %v1137 = vmul.f32 %v1033, 1.442695
        %v1138 = vpow.pop %v1137
        %v1139 = vmul.f32 %v1034, 1.442695
        %v1140 = vpow.pop %v1139
        %v1141 = vmul.f32 %v1035, 1.442695
        %v1142 = vpow.pop %v1141
        %v1143 = vmul.f32 %v1036, 1.442695
        %v1144 = vpow.pop %v1143
        %v1145 = vmul.f32 %v1037, 1.442695
        %v1146 = vpow.pop %v1145
        %v1147 = vmul.f32 %v1038, 1.442695
        %v1148 = vpow.pop %v1147
        %v1149 = vmul.f32 %v1039, 1.442695
        %v1150 = vpow.pop %v1149
        %v1151 = vmul.f32 %v1040, 1.442695
        %v1152 = vpow.pop %v1151
        %v1153 = vmul.f32 %v1041, 1.442695
        %v1154 = vpow.pop %v1153
        %v1155 = vmul.f32 %v1042, 1.442695
        %v1156 = vpow.pop %v1155
        %v1157 = vmul.f32 %v1043, 1.442695
        %v1158 = vpow.pop %v1157
        %v1159 = vmul.f32 %v1044, 1.442695
        %v1160 = vpow.pop %v1159
        %v1161 = vmul.f32 %v1045, 1.442695
        %v1162 = vpow.pop %v1161
        %v1163 = vmul.f32 %v1046, 1.442695
        %v1164 = vpow.pop %v1163
        %v1165 = vmul.f32 %v1047, 1.442695
        %v1166 = vpow.pop %v1165
        %v1167 = vmul.f32 %v1048, 1.442695
        %v1168 = vpow.pop %v1167
        %v1169 = vmul.f32 %v1049, 1.442695
        %v1170 = vpow.pop %v1169
        %v1171 = vmul.f32 %v1050, 1.442695
        %v1172 = vpow.pop %v1171
        %v1173 = vmul.f32 %v1051, 1.442695
        %v1174 = vpow.pop %v1173
        %v1175 = vmul.f32 %v1052, 1.442695
        %v1176 = vpow.pop %v1175
        %v1177 = vmul.f32 %v1053, 1.442695
        %v1178 = vpow.pop %v1177
        %v1179 = vmul.f32 %v1054, 1.442695
        %v1180 = vpow.pop %v1179
        %v1181 = vmul.f32 %v1055, 1.442695
        %v1182 = vpow.pop %v1181
        %v1183 = vmul.f32 %v1056, 1.442695
        %v1184 = vpow.pop %v1183
        %v1185 = vld [vmem:[%s324] sm:$0xf]
        %v1186 = vld [vmem:[%s324 + $0x4] sm:$0xf]
        %v1187 = vld [vmem:[%s324 + $0x8] sm:$0xf]
        %v1188 = vld [vmem:[%s324 + $0xc] sm:$0xf]
        %v1189 = vld [vmem:[%s324 + $0x10] sm:$0xf]
        %v1190 = vld [vmem:[%s324 + $0x14] sm:$0xf]
        %v1191 = vld [vmem:[%s324 + $0x18] sm:$0xf]
        %v1192 = vld [vmem:[%s324 + $0x1c] sm:$0xf]
        %v1193 = vld [vmem:[%s324 + $0x20] sm:$0xf]
        %v1194 = vld [vmem:[%s324 + $0x24] sm:$0xf]
        %v1195 = vld [vmem:[%s324 + $0x28] sm:$0xf]
        %v1196 = vld [vmem:[%s324 + $0x2c] sm:$0xf]
        %v1197 = vld [vmem:[%s324 + $0x30] sm:$0xf]
        %v1198 = vld [vmem:[%s324 + $0x34] sm:$0xf]
        %v1199 = vld [vmem:[%s324 + $0x38] sm:$0xf]
        %v1200 = vld [vmem:[%s324 + $0x3c] sm:$0xf]
        %v1201 = vld [vmem:[%s324 + $0x40] sm:$0xf]
        %v1202 = vld [vmem:[%s324 + $0x44] sm:$0xf]
        %v1203 = vld [vmem:[%s324 + $0x48] sm:$0xf]
        %v1204 = vld [vmem:[%s324 + $0x4c] sm:$0xf]
        %v1205 = vld [vmem:[%s324 + $0x50] sm:$0xf]
        %v1206 = vld [vmem:[%s324 + $0x54] sm:$0xf]
        %v1207 = vld [vmem:[%s324 + $0x58] sm:$0xf]
        %v1208 = vld [vmem:[%s324 + $0x5c] sm:$0xf]
        %v1209 = vld [vmem:[%s324 + $0x60] sm:$0xf]
        %v1210 = vld [vmem:[%s324 + $0x64] sm:$0xf]
        %v1211 = vld [vmem:[%s324 + $0x68] sm:$0xf]
        %v1212 = vld [vmem:[%s324 + $0x6c] sm:$0xf]
        %v1213 = vld [vmem:[%s324 + $0x70] sm:$0xf]
        %v1214 = vld [vmem:[%s324 + $0x74] sm:$0xf]
        %v1215 = vld [vmem:[%s324 + $0x78] sm:$0xf]
        %v1216 = vld [vmem:[%s324 + $0x7c] sm:$0xf]
        %v1217 = vunpack.c.l.bf16 %v1185
        %v1218 = vunpack.c.l.bf16 %v1186
        %v1219 = vunpack.c.l.bf16 %v1187
        %v1220 = vunpack.c.l.bf16 %v1188
        %v1221 = vunpack.c.l.bf16 %v1189
        %v1222 = vunpack.c.l.bf16 %v1190
        %v1223 = vunpack.c.l.bf16 %v1191
        %v1224 = vunpack.c.l.bf16 %v1192
        %v1225 = vunpack.c.l.bf16 %v1193
        %v1226 = vunpack.c.l.bf16 %v1194
        %v1227 = vunpack.c.l.bf16 %v1195
        %v1228 = vunpack.c.l.bf16 %v1196
        %v1229 = vunpack.c.l.bf16 %v1197
        %v1230 = vunpack.c.l.bf16 %v1198
        %v1231 = vunpack.c.l.bf16 %v1199
        %v1232 = vunpack.c.l.bf16 %v1200
        %v1233 = vunpack.c.l.bf16 %v1201
        %v1234 = vunpack.c.l.bf16 %v1202
        %v1235 = vunpack.c.l.bf16 %v1203
        %v1236 = vunpack.c.l.bf16 %v1204
        %v1237 = vunpack.c.l.bf16 %v1205
        %v1238 = vunpack.c.l.bf16 %v1206
        %v1239 = vunpack.c.l.bf16 %v1207
        %v1240 = vunpack.c.l.bf16 %v1208
        %v1241 = vunpack.c.l.bf16 %v1209
        %v1242 = vunpack.c.l.bf16 %v1210
        %v1243 = vunpack.c.l.bf16 %v1211
        %v1244 = vunpack.c.l.bf16 %v1212
        %v1245 = vunpack.c.l.bf16 %v1213
        %v1246 = vunpack.c.l.bf16 %v1214
        %v1247 = vunpack.c.l.bf16 %v1215
        %v1248 = vunpack.c.l.bf16 %v1216
        %v1249 = vmul.f32 %v1217, %v1217
        %v1250 = vmul.f32 %v1218, %v1218
        %v1251 = vmul.f32 %v1219, %v1219
        %v1252 = vmul.f32 %v1220, %v1220
        %v1253 = vmul.f32 %v1221, %v1221
        %v1254 = vmul.f32 %v1222, %v1222
        %v1255 = vmul.f32 %v1223, %v1223
        %v1256 = vmul.f32 %v1224, %v1224
        %v1257 = vmul.f32 %v1225, %v1225
        %v1258 = vmul.f32 %v1226, %v1226
        %v1259 = vmul.f32 %v1227, %v1227
        %v1260 = vmul.f32 %v1228, %v1228
        %v1261 = vmul.f32 %v1229, %v1229
        %v1262 = vmul.f32 %v1230, %v1230
        %v1263 = vmul.f32 %v1231, %v1231
        %v1264 = vmul.f32 %v1232, %v1232
        %v1265 = vmul.f32 %v1233, %v1233
        %v1266 = vmul.f32 %v1234, %v1234
        %v1267 = vmul.f32 %v1235, %v1235
        %v1268 = vmul.f32 %v1236, %v1236
        %v1269 = vmul.f32 %v1237, %v1237
        %v1270 = vmul.f32 %v1238, %v1238
        %v1271 = vmul.f32 %v1239, %v1239
        %v1272 = vmul.f32 %v1240, %v1240
        %v1273 = vmul.f32 %v1241, %v1241
        %v1274 = vmul.f32 %v1242, %v1242
        %v1275 = vmul.f32 %v1243, %v1243
        %v1276 = vmul.f32 %v1244, %v1244
        %v1277 = vmul.f32 %v1245, %v1245
        %v1278 = vmul.f32 %v1246, %v1246
        %v1279 = vmul.f32 %v1247, %v1247
        %v1280 = vmul.f32 %v1248, %v1248
        %v1281 = vsel %vm467, %v1249, 0.0
        %1282 = vadd.xlane.f32.xlu0 %v1281
        %v1283 = vpop.xlane.xlu0 %1282
        %v1284 = vsel %vm467, %v1250, 0.0
        %1285 = vadd.xlane.f32.xlu0 %v1284
        %v1286 = vpop.xlane.xlu0 %1285
        %v1287 = vsel %vm467, %v1251, 0.0
        %1288 = vadd.xlane.f32.xlu0 %v1287
        %v1289 = vpop.xlane.xlu0 %1288
        %v1290 = vsel %vm467, %v1252, 0.0
        %1291 = vadd.xlane.f32.xlu0 %v1290
        %v1292 = vpop.xlane.xlu0 %1291
        %v1293 = vsel %vm467, %v1253, 0.0
        %1294 = vadd.xlane.f32.xlu0 %v1293
        %v1295 = vpop.xlane.xlu0 %1294
        %v1296 = vsel %vm467, %v1254, 0.0
        %1297 = vadd.xlane.f32.xlu0 %v1296
        %v1298 = vpop.xlane.xlu0 %1297
        %v1299 = vsel %vm467, %v1255, 0.0
        %1300 = vadd.xlane.f32.xlu0 %v1299
        %v1301 = vpop.xlane.xlu0 %1300
        %v1302 = vsel %vm467, %v1256, 0.0
        %1303 = vadd.xlane.f32.xlu0 %v1302
        %v1304 = vpop.xlane.xlu0 %1303
        %v1305 = vsel %vm467, %v1257, 0.0
        %1306 = vadd.xlane.f32.xlu0 %v1305
        %v1307 = vpop.xlane.xlu0 %1306
        %v1308 = vsel %vm467, %v1258, 0.0
        %1309 = vadd.xlane.f32.xlu0 %v1308
        %v1310 = vpop.xlane.xlu0 %1309
        %v1311 = vsel %vm467, %v1259, 0.0
        %1312 = vadd.xlane.f32.xlu0 %v1311
        %v1313 = vpop.xlane.xlu0 %1312
        %v1314 = vsel %vm467, %v1260, 0.0
        %1315 = vadd.xlane.f32.xlu0 %v1314
        %v1316 = vpop.xlane.xlu0 %1315
        %v1317 = vsel %vm467, %v1261, 0.0
        %1318 = vadd.xlane.f32.xlu0 %v1317
        %v1319 = vpop.xlane.xlu0 %1318
        %v1320 = vsel %vm467, %v1262, 0.0
        %1321 = vadd.xlane.f32.xlu0 %v1320
        %v1322 = vpop.xlane.xlu0 %1321
        %v1323 = vsel %vm467, %v1263, 0.0
        %1324 = vadd.xlane.f32.xlu0 %v1323
        %v1325 = vpop.xlane.xlu0 %1324
        %v1326 = vsel %vm467, %v1264, 0.0
        %1327 = vadd.xlane.f32.xlu0 %v1326
        %v1328 = vpop.xlane.xlu0 %1327
        %v1329 = vsel %vm467, %v1265, 0.0
        %1330 = vadd.xlane.f32.xlu0 %v1329
        %v1331 = vpop.xlane.xlu0 %1330
        %v1332 = vsel %vm467, %v1266, 0.0
        %1333 = vadd.xlane.f32.xlu0 %v1332
        %v1334 = vpop.xlane.xlu0 %1333
        %v1335 = vsel %vm467, %v1267, 0.0
        %1336 = vadd.xlane.f32.xlu0 %v1335
        %v1337 = vpop.xlane.xlu0 %1336
        %v1338 = vsel %vm467, %v1268, 0.0
        %1339 = vadd.xlane.f32.xlu0 %v1338
        %v1340 = vpop.xlane.xlu0 %1339
        %v1341 = vsel %vm467, %v1269, 0.0
        %1342 = vadd.xlane.f32.xlu0 %v1341
        %v1343 = vpop.xlane.xlu0 %1342
        %v1344 = vsel %vm467, %v1270, 0.0
        %1345 = vadd.xlane.f32.xlu0 %v1344
        %v1346 = vpop.xlane.xlu0 %1345
        %v1347 = vsel %vm467, %v1271, 0.0
        %1348 = vadd.xlane.f32.xlu0 %v1347
        %v1349 = vpop.xlane.xlu0 %1348
        %v1350 = vsel %vm467, %v1272, 0.0
        %1351 = vadd.xlane.f32.xlu0 %v1350
        %v1352 = vpop.xlane.xlu0 %1351
        %v1353 = vsel %vm467, %v1273, 0.0
        %1354 = vadd.xlane.f32.xlu0 %v1353
        %v1355 = vpop.xlane.xlu0 %1354
        %v1356 = vsel %vm467, %v1274, 0.0
        %1357 = vadd.xlane.f32.xlu0 %v1356
        %v1358 = vpop.xlane.xlu0 %1357
        %v1359 = vsel %vm467, %v1275, 0.0
        %1360 = vadd.xlane.f32.xlu0 %v1359
        %v1361 = vpop.xlane.xlu0 %1360
        %v1362 = vsel %vm467, %v1276, 0.0
        %1363 = vadd.xlane.f32.xlu0 %v1362
        %v1364 = vpop.xlane.xlu0 %1363
        %v1365 = vsel %vm467, %v1277, 0.0
        %1366 = vadd.xlane.f32.xlu0 %v1365
        %v1367 = vpop.xlane.xlu0 %1366
        %v1368 = vsel %vm467, %v1278, 0.0
        %1369 = vadd.xlane.f32.xlu0 %v1368
        %v1370 = vpop.xlane.xlu0 %1369
        %v1371 = vsel %vm467, %v1279, 0.0
        %1372 = vadd.xlane.f32.xlu0 %v1371
        %v1373 = vpop.xlane.xlu0 %1372
        %v1374 = vsel %vm467, %v1280, 0.0
        %1375 = vadd.xlane.f32.xlu0 %v1374
        %v1376 = vpop.xlane.xlu0 %1375
        %v1377 = vmul.f32 %v1283, -0.5
        %v1378 = vmul.f32 %v1286, -0.5
        %v1379 = vmul.f32 %v1289, -0.5
        %v1380 = vmul.f32 %v1292, -0.5
        %v1381 = vmul.f32 %v1295, -0.5
        %v1382 = vmul.f32 %v1298, -0.5
        %v1383 = vmul.f32 %v1301, -0.5
        %v1384 = vmul.f32 %v1304, -0.5
        %v1385 = vmul.f32 %v1307, -0.5
        %v1386 = vmul.f32 %v1310, -0.5
        %v1387 = vmul.f32 %v1313, -0.5
        %v1388 = vmul.f32 %v1316, -0.5
        %v1389 = vmul.f32 %v1319, -0.5
        %v1390 = vmul.f32 %v1322, -0.5
        %v1391 = vmul.f32 %v1325, -0.5
        %v1392 = vmul.f32 %v1328, -0.5
        %v1393 = vmul.f32 %v1331, -0.5
        %v1394 = vmul.f32 %v1334, -0.5
        %v1395 = vmul.f32 %v1337, -0.5
        %v1396 = vmul.f32 %v1340, -0.5
        %v1397 = vmul.f32 %v1343, -0.5
        %v1398 = vmul.f32 %v1346, -0.5
        %v1399 = vmul.f32 %v1349, -0.5
        %v1400 = vmul.f32 %v1352, -0.5
        %v1401 = vmul.f32 %v1355, -0.5
        %v1402 = vmul.f32 %v1358, -0.5
        %v1403 = vmul.f32 %v1361, -0.5
        %v1404 = vmul.f32 %v1364, -0.5
        %v1405 = vmul.f32 %v1367, -0.5
        %v1406 = vmul.f32 %v1370, -0.5
        %v1407 = vmul.f32 %v1373, -0.5
        %v1408 = vmul.f32 %v1376, -0.5
        %v1441 = vunpack.c.l.b16 %v1185
        %v1442 = vunpack.c.l.b16 %v1186
        %v1443 = vunpack.c.l.b16 %v1187
        %v1444 = vunpack.c.l.b16 %v1188
        %v1445 = vunpack.c.l.b16 %v1189
        %v1446 = vunpack.c.l.b16 %v1190
        %v1447 = vunpack.c.l.b16 %v1191
        %v1448 = vunpack.c.l.b16 %v1192
        %v1449 = vunpack.c.l.b16 %v1193
        %v1450 = vunpack.c.l.b16 %v1194
        %v1451 = vunpack.c.l.b16 %v1195
        %v1452 = vunpack.c.l.b16 %v1196
        %v1453 = vunpack.c.l.b16 %v1197
        %v1454 = vunpack.c.l.b16 %v1198
        %v1455 = vunpack.c.l.b16 %v1199
        %v1456 = vunpack.c.l.b16 %v1200
        %v1457 = vunpack.c.l.b16 %v1201
        %v1458 = vunpack.c.l.b16 %v1202
        %v1459 = vunpack.c.l.b16 %v1203
        %v1460 = vunpack.c.l.b16 %v1204
        %v1461 = vunpack.c.l.b16 %v1205
        %v1462 = vunpack.c.l.b16 %v1206
        %v1463 = vunpack.c.l.b16 %v1207
        %v1464 = vunpack.c.l.b16 %v1208
        %v1465 = vunpack.c.l.b16 %v1209
        %v1466 = vunpack.c.l.b16 %v1210
        %v1467 = vunpack.c.l.b16 %v1211
        %v1468 = vunpack.c.l.b16 %v1212
        %v1469 = vunpack.c.l.b16 %v1213
        %v1470 = vunpack.c.l.b16 %v1214
        %v1471 = vunpack.c.l.b16 %v1215
        %v1472 = vunpack.c.l.b16 %v1216
        %v1473 = vpack.c.b16 %v1442, %v1441
        %v1474 = vpack.c.b16 %v1444, %v1443
        %v1475 = vpack.c.b16 %v1446, %v1445
        %v1476 = vpack.c.b16 %v1448, %v1447
        %v1477 = vpack.c.b16 %v1450, %v1449
        %v1478 = vpack.c.b16 %v1452, %v1451
        %v1479 = vpack.c.b16 %v1454, %v1453
        %v1480 = vpack.c.b16 %v1456, %v1455
        %v1481 = vpack.c.b16 %v1458, %v1457
        %v1482 = vpack.c.b16 %v1460, %v1459
        %v1483 = vpack.c.b16 %v1462, %v1461
        %v1484 = vpack.c.b16 %v1464, %v1463
        %v1485 = vpack.c.b16 %v1466, %v1465
        %v1486 = vpack.c.b16 %v1468, %v1467
        %v1487 = vpack.c.b16 %v1470, %v1469
        %v1488 = vpack.c.b16 %v1472, %v1471
        %v1490 = vunpack.c.l.b16 %v352
        %v1491 = vunpack.c.h.b16 %v352
        %v1492 = vpack.c.b16 %v1490, %v1490
        %v1493 = vpack.c.b16 %v1491, %v1491
        %v1495 = vsel %vm467, %v1473, 0
        %v1498 = vsel %vm467, %v1474, 0
        %v1501 = vsel %vm467, %v1475, 0
        %v1504 = vsel %vm467, %v1476, 0
        %v1507 = vsel %vm467, %v1477, 0
        %v1510 = vsel %vm467, %v1478, 0
        %v1513 = vsel %vm467, %v1479, 0
        %v1516 = vsel %vm467, %v1480, 0
        %v1519 = vsel %vm467, %v1481, 0
        %v1522 = vsel %vm467, %v1482, 0
        %v1525 = vsel %vm467, %v1483, 0
        %v1528 = vsel %vm467, %v1484, 0
        %v1531 = vsel %vm467, %v1485, 0
        %v1534 = vsel %vm467, %v1486, 0
        %v1537 = vsel %vm467, %v1487, 0
        %v1540 = vsel %vm467, %v1488, 0
        %v1543 = vsel %vm729, %v1492, 0
        %v1546 = vsel %vm729, %v1493, 0
        %1548 = vmatprep.subr.bf16.mxu0 %v1546
        %1549 = vmatpush1.bf16.msra.mxu0 %v1543
        %1550 = vmatprep.subr.bf16.mxu0 0
        %1551 = vmatpush1.bf16.msra.mxu0 0
        %1552 = vmatprep.subr.bf16.mxu0 0
        %1553 = vmatpush1.bf16.msra.mxu0 0
        %1554 = vmatprep.subr.bf16.mxu0 0
        %1555 = vmatpush1.bf16.msra.mxu0 0
        %1556 = vmatprep.subr.bf16.mxu0 0
        %1557 = vmatpush1.bf16.msra.mxu0 0
        %1558 = vmatprep.subr.bf16.mxu0 0
        %1559 = vmatpush1.bf16.msra.mxu0 0
        %1560 = vmatprep.subr.bf16.mxu0 0
        %1561 = vmatpush1.bf16.msra.mxu0 0
        %1562 = vmatprep.subr.bf16.mxu0 0
        %1563 = vmatpush1.bf16.msra.mxu0 0
        %1564 = vmatprep.subr.bf16.mxu0 0
        %1565 = vmatpush1.bf16.msra.mxu0 0
        %1566 = vmatprep.subr.bf16.mxu0 0
        %1567 = vmatpush1.bf16.msra.mxu0 0
        %1568 = vmatprep.subr.bf16.mxu0 0
        %1569 = vmatpush1.bf16.msra.mxu0 0
        %1570 = vmatprep.subr.bf16.mxu0 0
        %1571 = vmatpush1.bf16.msra.mxu0 0
        %1572 = vmatprep.subr.bf16.mxu0 0
        %1573 = vmatpush1.bf16.msra.mxu0 0
        %1574 = vmatprep.subr.bf16.mxu0 0
        %1575 = vmatpush1.bf16.msra.mxu0 0
        %1576 = vmatprep.subr.bf16.mxu0 0
        %1577 = vmatpush1.bf16.msra.mxu0 0
        %1578 = vmatprep.subr.bf16.mxu0 0
        %1579 = vmatpush1.bf16.msra.mxu0 0
        %1580 = vmatprep.mubr.bf16.mxu0 0
        %1581 = vmatmul.mubr.bf16.gmra.mrb[0].mxu0 %v1495
        %v1582 = vpop.f32.mrb[0].mxu0
        %v1583 = vadd.f32 %v1377, %v1582
        %v1584 = vpop.f32.mrb[0].mxu0
        %v1585 = vadd.f32 %v1377, %v1584
        %v1586 = vpop.f32.mrb[0].mxu0
        %v1587 = vadd.f32 %v1378, %v1586
        %v1588 = vpop.f32.mrb[0].mxu0
        %v1589 = vadd.f32 %v1378, %v1588
        %1590 = vmatprep.mubr.bf16.mxu0 0
        %1591 = vmatmul.mubr.bf16.gmra.mrb[0].mxu0 %v1498
        %v1592 = vpop.f32.mrb[0].mxu0
        %v1593 = vadd.f32 %v1379, %v1592
        %v1594 = vpop.f32.mrb[0].mxu0
        %v1595 = vadd.f32 %v1379, %v1594
        %v1596 = vpop.f32.mrb[0].mxu0
        %v1597 = vadd.f32 %v1380, %v1596
        %v1598 = vpop.f32.mrb[0].mxu0
        %v1599 = vadd.f32 %v1380, %v1598
        %1600 = vmatprep.mubr.bf16.mxu0 0
        %1601 = vmatmul.mubr.bf16.gmra.mrb[0].mxu0 %v1501
        %v1602 = vpop.f32.mrb[0].mxu0
        %v1603 = vadd.f32 %v1381, %v1602
        %v1604 = vpop.f32.mrb[0].mxu0
        %v1605 = vadd.f32 %v1381, %v1604
        %v1606 = vpop.f32.mrb[0].mxu0
        %v1607 = vadd.f32 %v1382, %v1606
        %v1608 = vpop.f32.mrb[0].mxu0
        %v1609 = vadd.f32 %v1382, %v1608
        %1610 = vmatprep.mubr.bf16.mxu0 0
        %1611 = vmatmul.mubr.bf16.gmra.mrb[0].mxu0 %v1504
        %v1612 = vpop.f32.mrb[0].mxu0
        %v1613 = vadd.f32 %v1383, %v1612
        %v1614 = vpop.f32.mrb[0].mxu0
        %v1615 = vadd.f32 %v1383, %v1614
        %v1616 = vpop.f32.mrb[0].mxu0
        %v1617 = vadd.f32 %v1384, %v1616
        %v1618 = vpop.f32.mrb[0].mxu0
        %v1619 = vadd.f32 %v1384, %v1618
        %1620 = vmatprep.mubr.bf16.mxu0 0
        %1621 = vmatmul.mubr.bf16.gmra.mrb[0].mxu0 %v1507
        %v1622 = vpop.f32.mrb[0].mxu0
        %v1623 = vadd.f32 %v1385, %v1622
        %v1624 = vpop.f32.mrb[0].mxu0
        %v1625 = vadd.f32 %v1385, %v1624
        %v1626 = vpop.f32.mrb[0].mxu0
        %v1627 = vadd.f32 %v1386, %v1626
        %v1628 = vpop.f32.mrb[0].mxu0
        %v1629 = vadd.f32 %v1386, %v1628
        %1630 = vmatprep.mubr.bf16.mxu0 0
        %1631 = vmatmul.mubr.bf16.gmra.mrb[0].mxu0 %v1510
        %v1632 = vpop.f32.mrb[0].mxu0
        %v1633 = vadd.f32 %v1387, %v1632
        %v1634 = vpop.f32.mrb[0].mxu0
        %v1635 = vadd.f32 %v1387, %v1634
        %v1636 = vpop.f32.mrb[0].mxu0
        %v1637 = vadd.f32 %v1388, %v1636
        %v1638 = vpop.f32.mrb[0].mxu0
        %v1639 = vadd.f32 %v1388, %v1638
        %1640 = vmatprep.mubr.bf16.mxu0 0
        %1641 = vmatmul.mubr.bf16.gmra.mrb[0].mxu0 %v1513
        %v1642 = vpop.f32.mrb[0].mxu0
        %v1643 = vadd.f32 %v1389, %v1642
        %v1644 = vpop.f32.mrb[0].mxu0
        %v1645 = vadd.f32 %v1389, %v1644
        %v1646 = vpop.f32.mrb[0].mxu0
        %v1647 = vadd.f32 %v1390, %v1646
        %v1648 = vpop.f32.mrb[0].mxu0
        %v1649 = vadd.f32 %v1390, %v1648
        %1650 = vmatprep.mubr.bf16.mxu0 0
        %1651 = vmatmul.mubr.bf16.gmra.mrb[0].mxu0 %v1516
        %v1652 = vpop.f32.mrb[0].mxu0
        %v1653 = vadd.f32 %v1391, %v1652
        %v1654 = vpop.f32.mrb[0].mxu0
        %v1655 = vadd.f32 %v1391, %v1654
        %v1656 = vpop.f32.mrb[0].mxu0
        %v1657 = vadd.f32 %v1392, %v1656
        %v1658 = vpop.f32.mrb[0].mxu0
        %v1659 = vadd.f32 %v1392, %v1658
        %1660 = vmatprep.mubr.bf16.mxu0 0
        %1661 = vmatmul.mubr.bf16.gmra.mrb[0].mxu0 %v1519
        %v1662 = vpop.f32.mrb[0].mxu0
        %v1663 = vadd.f32 %v1393, %v1662
        %v1664 = vpop.f32.mrb[0].mxu0
        %v1665 = vadd.f32 %v1393, %v1664
        %v1666 = vpop.f32.mrb[0].mxu0
        %v1667 = vadd.f32 %v1394, %v1666
        %v1668 = vpop.f32.mrb[0].mxu0
        %v1669 = vadd.f32 %v1394, %v1668
        %1670 = vmatprep.mubr.bf16.mxu0 0
        %1671 = vmatmul.mubr.bf16.gmra.mrb[0].mxu0 %v1522
        %v1672 = vpop.f32.mrb[0].mxu0
        %v1673 = vadd.f32 %v1395, %v1672
        %v1674 = vpop.f32.mrb[0].mxu0
        %v1675 = vadd.f32 %v1395, %v1674
        %v1676 = vpop.f32.mrb[0].mxu0
        %v1677 = vadd.f32 %v1396, %v1676
        %v1678 = vpop.f32.mrb[0].mxu0
        %v1679 = vadd.f32 %v1396, %v1678
        %1680 = vmatprep.mubr.bf16.mxu0 0
        %1681 = vmatmul.mubr.bf16.gmra.mrb[0].mxu0 %v1525
        %v1682 = vpop.f32.mrb[0].mxu0
        %v1683 = vadd.f32 %v1397, %v1682
        %v1684 = vpop.f32.mrb[0].mxu0
        %v1685 = vadd.f32 %v1397, %v1684
        %v1686 = vpop.f32.mrb[0].mxu0
        %v1687 = vadd.f32 %v1398, %v1686
        %v1688 = vpop.f32.mrb[0].mxu0
        %v1689 = vadd.f32 %v1398, %v1688
        %1690 = vmatprep.mubr.bf16.mxu0 0
        %1691 = vmatmul.mubr.bf16.gmra.mrb[0].mxu0 %v1528
        %v1692 = vpop.f32.mrb[0].mxu0
        %v1693 = vadd.f32 %v1399, %v1692
        %v1694 = vpop.f32.mrb[0].mxu0
        %v1695 = vadd.f32 %v1399, %v1694
        %v1696 = vpop.f32.mrb[0].mxu0
        %v1697 = vadd.f32 %v1400, %v1696
        %v1698 = vpop.f32.mrb[0].mxu0
        %v1699 = vadd.f32 %v1400, %v1698
        %1700 = vmatprep.mubr.bf16.mxu0 0
        %1701 = vmatmul.mubr.bf16.gmra.mrb[0].mxu0 %v1531
        %v1702 = vpop.f32.mrb[0].mxu0
        %v1703 = vadd.f32 %v1401, %v1702
        %v1704 = vpop.f32.mrb[0].mxu0
        %v1705 = vadd.f32 %v1401, %v1704
        %v1706 = vpop.f32.mrb[0].mxu0
        %v1707 = vadd.f32 %v1402, %v1706
        %v1708 = vpop.f32.mrb[0].mxu0
        %v1709 = vadd.f32 %v1402, %v1708
        %1710 = vmatprep.mubr.bf16.mxu0 0
        %1711 = vmatmul.mubr.bf16.gmra.mrb[0].mxu0 %v1534
        %v1712 = vpop.f32.mrb[0].mxu0
        %v1713 = vadd.f32 %v1403, %v1712
        %v1714 = vpop.f32.mrb[0].mxu0
        %v1715 = vadd.f32 %v1403, %v1714
        %v1716 = vpop.f32.mrb[0].mxu0
        %v1717 = vadd.f32 %v1404, %v1716
        %v1718 = vpop.f32.mrb[0].mxu0
        %v1719 = vadd.f32 %v1404, %v1718
        %1720 = vmatprep.mubr.bf16.mxu0 0
        %1721 = vmatmul.mubr.bf16.gmra.mrb[0].mxu0 %v1537
        %v1722 = vpop.f32.mrb[0].mxu0
        %v1723 = vadd.f32 %v1405, %v1722
        %v1724 = vpop.f32.mrb[0].mxu0
        %v1725 = vadd.f32 %v1405, %v1724
        %v1726 = vpop.f32.mrb[0].mxu0
        %v1727 = vadd.f32 %v1406, %v1726
        %v1728 = vpop.f32.mrb[0].mxu0
        %v1729 = vadd.f32 %v1406, %v1728
        %1730 = vmatprep.mubr.bf16.mxu0 0
        %1731 = vmatmul.mubr.bf16.gmra.mrb[0].mxu0 %v1540
        %v1732 = vpop.f32.mrb[0].mxu0
        %v1733 = vadd.f32 %v1407, %v1732
        %v1734 = vpop.f32.mrb[0].mxu0
        %v1735 = vadd.f32 %v1407, %v1734
        %v1736 = vpop.f32.mrb[0].mxu0
        %v1737 = vadd.f32 %v1408, %v1736
        %v1738 = vpop.f32.mrb[0].mxu0
        %v1739 = vadd.f32 %v1408, %v1738
        %1740 = vdwg.mxu0
        %v1741 = vadd.f32 %v1583, %v369
        %v1742 = vadd.f32 %v1585, %v370
        %v1743 = vadd.f32 %v1587, %v369
        %v1744 = vadd.f32 %v1589, %v370
        %v1745 = vadd.f32 %v1593, %v369
        %v1746 = vadd.f32 %v1595, %v370
        %v1747 = vadd.f32 %v1597, %v369
        %v1748 = vadd.f32 %v1599, %v370
        %v1749 = vadd.f32 %v1603, %v369
        %v1750 = vadd.f32 %v1605, %v370
        %v1751 = vadd.f32 %v1607, %v369
        %v1752 = vadd.f32 %v1609, %v370
        %v1753 = vadd.f32 %v1613, %v369
        %v1754 = vadd.f32 %v1615, %v370
        %v1755 = vadd.f32 %v1617, %v369
        %v1756 = vadd.f32 %v1619, %v370
        %v1757 = vadd.f32 %v1623, %v369
        %v1758 = vadd.f32 %v1625, %v370
        %v1759 = vadd.f32 %v1627, %v369
        %v1760 = vadd.f32 %v1629, %v370
        %v1761 = vadd.f32 %v1633, %v369
        %v1762 = vadd.f32 %v1635, %v370
        %v1763 = vadd.f32 %v1637, %v369
        %v1764 = vadd.f32 %v1639, %v370
        %v1765 = vadd.f32 %v1643, %v369
        %v1766 = vadd.f32 %v1645, %v370
        %v1767 = vadd.f32 %v1647, %v369
        %v1768 = vadd.f32 %v1649, %v370
        %v1769 = vadd.f32 %v1653, %v369
        %v1770 = vadd.f32 %v1655, %v370
        %v1771 = vadd.f32 %v1657, %v369
        %v1772 = vadd.f32 %v1659, %v370
        %v1773 = vadd.f32 %v1663, %v369
        %v1774 = vadd.f32 %v1665, %v370
        %v1775 = vadd.f32 %v1667, %v369
        %v1776 = vadd.f32 %v1669, %v370
        %v1777 = vadd.f32 %v1673, %v369
        %v1778 = vadd.f32 %v1675, %v370
        %v1779 = vadd.f32 %v1677, %v369
        %v1780 = vadd.f32 %v1679, %v370
        %v1781 = vadd.f32 %v1683, %v369
        %v1782 = vadd.f32 %v1685, %v370
        %v1783 = vadd.f32 %v1687, %v369
        %v1784 = vadd.f32 %v1689, %v370
        %v1785 = vadd.f32 %v1693, %v369
        %v1786 = vadd.f32 %v1695, %v370
        %v1787 = vadd.f32 %v1697, %v369
        %v1788 = vadd.f32 %v1699, %v370
        %v1789 = vadd.f32 %v1703, %v369
        %v1790 = vadd.f32 %v1705, %v370
        %v1791 = vadd.f32 %v1707, %v369
        %v1792 = vadd.f32 %v1709, %v370
        %v1793 = vadd.f32 %v1713, %v369
        %v1794 = vadd.f32 %v1715, %v370
        %v1795 = vadd.f32 %v1717, %v369
        %v1796 = vadd.f32 %v1719, %v370
        %v1797 = vadd.f32 %v1723, %v369
        %v1798 = vadd.f32 %v1725, %v370
        %v1799 = vadd.f32 %v1727, %v369
        %v1800 = vadd.f32 %v1729, %v370
        %v1801 = vadd.f32 %v1733, %v369
        %v1802 = vadd.f32 %v1735, %v370
        %v1803 = vadd.f32 %v1737, %v369
        %v1804 = vadd.f32 %v1739, %v370
        %v1805 = vmin.f32 %v1741, 0.0
        %v1806 = vmin.f32 %v1742, 0.0
        %v1807 = vmin.f32 %v1743, 0.0
        %v1808 = vmin.f32 %v1744, 0.0
        %v1809 = vmin.f32 %v1745, 0.0
        %v1810 = vmin.f32 %v1746, 0.0
        %v1811 = vmin.f32 %v1747, 0.0
        %v1812 = vmin.f32 %v1748, 0.0
        %v1813 = vmin.f32 %v1749, 0.0
        %v1814 = vmin.f32 %v1750, 0.0
        %v1815 = vmin.f32 %v1751, 0.0
        %v1816 = vmin.f32 %v1752, 0.0
        %v1817 = vmin.f32 %v1753, 0.0
        %v1818 = vmin.f32 %v1754, 0.0
        %v1819 = vmin.f32 %v1755, 0.0
        %v1820 = vmin.f32 %v1756, 0.0
        %v1821 = vmin.f32 %v1757, 0.0
        %v1822 = vmin.f32 %v1758, 0.0
        %v1823 = vmin.f32 %v1759, 0.0
        %v1824 = vmin.f32 %v1760, 0.0
        %v1825 = vmin.f32 %v1761, 0.0
        %v1826 = vmin.f32 %v1762, 0.0
        %v1827 = vmin.f32 %v1763, 0.0
        %v1828 = vmin.f32 %v1764, 0.0
        %v1829 = vmin.f32 %v1765, 0.0
        %v1830 = vmin.f32 %v1766, 0.0
        %v1831 = vmin.f32 %v1767, 0.0
        %v1832 = vmin.f32 %v1768, 0.0
        %v1833 = vmin.f32 %v1769, 0.0
        %v1834 = vmin.f32 %v1770, 0.0
        %v1835 = vmin.f32 %v1771, 0.0
        %v1836 = vmin.f32 %v1772, 0.0
        %v1837 = vmin.f32 %v1773, 0.0
        %v1838 = vmin.f32 %v1774, 0.0
        %v1839 = vmin.f32 %v1775, 0.0
        %v1840 = vmin.f32 %v1776, 0.0
        %v1841 = vmin.f32 %v1777, 0.0
        %v1842 = vmin.f32 %v1778, 0.0
        %v1843 = vmin.f32 %v1779, 0.0
        %v1844 = vmin.f32 %v1780, 0.0
        %v1845 = vmin.f32 %v1781, 0.0
        %v1846 = vmin.f32 %v1782, 0.0
        %v1847 = vmin.f32 %v1783, 0.0
        %v1848 = vmin.f32 %v1784, 0.0
        %v1849 = vmin.f32 %v1785, 0.0
        %v1850 = vmin.f32 %v1786, 0.0
        %v1851 = vmin.f32 %v1787, 0.0
        %v1852 = vmin.f32 %v1788, 0.0
        %v1853 = vmin.f32 %v1789, 0.0
        %v1854 = vmin.f32 %v1790, 0.0
        %v1855 = vmin.f32 %v1791, 0.0
        %v1856 = vmin.f32 %v1792, 0.0
        %v1857 = vmin.f32 %v1793, 0.0
        %v1858 = vmin.f32 %v1794, 0.0
        %v1859 = vmin.f32 %v1795, 0.0
        %v1860 = vmin.f32 %v1796, 0.0
        %v1861 = vmin.f32 %v1797, 0.0
        %v1862 = vmin.f32 %v1798, 0.0
        %v1863 = vmin.f32 %v1799, 0.0
        %v1864 = vmin.f32 %v1800, 0.0
        %v1865 = vmin.f32 %v1801, 0.0
        %v1866 = vmin.f32 %v1802, 0.0
        %v1867 = vmin.f32 %v1803, 0.0
        %v1868 = vmin.f32 %v1804, 0.0
        %v1869 = vmul.f32 %v1805, 1.442695
        %v1870 = vpow.pop %v1869
        %v1871 = vmul.f32 %v1806, 1.442695
        %v1872 = vpow.pop %v1871
        %v1873 = vmul.f32 %v1807, 1.442695
        %v1874 = vpow.pop %v1873
        %v1875 = vmul.f32 %v1808, 1.442695
        %v1876 = vpow.pop %v1875
        %v1877 = vmul.f32 %v1809, 1.442695
        %v1878 = vpow.pop %v1877
        %v1879 = vmul.f32 %v1810, 1.442695
        %v1880 = vpow.pop %v1879
        %v1881 = vmul.f32 %v1811, 1.442695
        %v1882 = vpow.pop %v1881
        %v1883 = vmul.f32 %v1812, 1.442695
        %v1884 = vpow.pop %v1883
        %v1885 = vmul.f32 %v1813, 1.442695
        %v1886 = vpow.pop %v1885
        %v1887 = vmul.f32 %v1814, 1.442695
        %v1888 = vpow.pop %v1887
        %v1889 = vmul.f32 %v1815, 1.442695
        %v1890 = vpow.pop %v1889
        %v1891 = vmul.f32 %v1816, 1.442695
        %v1892 = vpow.pop %v1891
        %v1893 = vmul.f32 %v1817, 1.442695
        %v1894 = vpow.pop %v1893
        %v1895 = vmul.f32 %v1818, 1.442695
        %v1896 = vpow.pop %v1895
        %v1897 = vmul.f32 %v1819, 1.442695
        %v1898 = vpow.pop %v1897
        %v1899 = vmul.f32 %v1820, 1.442695
        %v1900 = vpow.pop %v1899
        %v1901 = vmul.f32 %v1821, 1.442695
        %v1902 = vpow.pop %v1901
        %v1903 = vmul.f32 %v1822, 1.442695
        %v1904 = vpow.pop %v1903
        %v1905 = vmul.f32 %v1823, 1.442695
        %v1906 = vpow.pop %v1905
        %v1907 = vmul.f32 %v1824, 1.442695
        %v1908 = vpow.pop %v1907
        %v1909 = vmul.f32 %v1825, 1.442695
        %v1910 = vpow.pop %v1909
        %v1911 = vmul.f32 %v1826, 1.442695
        %v1912 = vpow.pop %v1911
        %v1913 = vmul.f32 %v1827, 1.442695
        %v1914 = vpow.pop %v1913
        %v1915 = vmul.f32 %v1828, 1.442695
        %v1916 = vpow.pop %v1915
        %v1917 = vmul.f32 %v1829, 1.442695
        %v1918 = vpow.pop %v1917
        %v1919 = vmul.f32 %v1830, 1.442695
        %v1920 = vpow.pop %v1919
        %v1921 = vmul.f32 %v1831, 1.442695
        %v1922 = vpow.pop %v1921
        %v1923 = vmul.f32 %v1832, 1.442695
        %v1924 = vpow.pop %v1923
        %v1925 = vmul.f32 %v1833, 1.442695
        %v1926 = vpow.pop %v1925
        %v1927 = vmul.f32 %v1834, 1.442695
        %v1928 = vpow.pop %v1927
        %v1929 = vmul.f32 %v1835, 1.442695
        %v1930 = vpow.pop %v1929
        %v1931 = vmul.f32 %v1836, 1.442695
        %v1932 = vpow.pop %v1931
        %v1933 = vmul.f32 %v1837, 1.442695
        %v1934 = vpow.pop %v1933
        %v1935 = vmul.f32 %v1838, 1.442695
        %v1936 = vpow.pop %v1935
        %v1937 = vmul.f32 %v1839, 1.442695
        %v1938 = vpow.pop %v1937
        %v1939 = vmul.f32 %v1840, 1.442695
        %v1940 = vpow.pop %v1939
        %v1941 = vmul.f32 %v1841, 1.442695
        %v1942 = vpow.pop %v1941
        %v1943 = vmul.f32 %v1842, 1.442695
        %v1944 = vpow.pop %v1943
        %v1945 = vmul.f32 %v1843, 1.442695
        %v1946 = vpow.pop %v1945
        %v1947 = vmul.f32 %v1844, 1.442695
        %v1948 = vpow.pop %v1947
        %v1949 = vmul.f32 %v1845, 1.442695
        %v1950 = vpow.pop %v1949
        %v1951 = vmul.f32 %v1846, 1.442695
        %v1952 = vpow.pop %v1951
        %v1953 = vmul.f32 %v1847, 1.442695
        %v1954 = vpow.pop %v1953
        %v1955 = vmul.f32 %v1848, 1.442695
        %v1956 = vpow.pop %v1955
        %v1957 = vmul.f32 %v1849, 1.442695
        %v1958 = vpow.pop %v1957
        %v1959 = vmul.f32 %v1850, 1.442695
        %v1960 = vpow.pop %v1959
        %v1961 = vmul.f32 %v1851, 1.442695
        %v1962 = vpow.pop %v1961
        %v1963 = vmul.f32 %v1852, 1.442695
        %v1964 = vpow.pop %v1963
        %v1965 = vmul.f32 %v1853, 1.442695
        %v1966 = vpow.pop %v1965
        %v1967 = vmul.f32 %v1854, 1.442695
        %v1968 = vpow.pop %v1967
        %v1969 = vmul.f32 %v1855, 1.442695
        %v1970 = vpow.pop %v1969
        %v1971 = vmul.f32 %v1856, 1.442695
        %v1972 = vpow.pop %v1971
        %v1973 = vmul.f32 %v1857, 1.442695
        %v1974 = vpow.pop %v1973
        %v1975 = vmul.f32 %v1858, 1.442695
        %v1976 = vpow.pop %v1975
        %v1977 = vmul.f32 %v1859, 1.442695
        %v1978 = vpow.pop %v1977
        %v1979 = vmul.f32 %v1860, 1.442695
        %v1980 = vpow.pop %v1979
        %v1981 = vmul.f32 %v1861, 1.442695
        %v1982 = vpow.pop %v1981
        %v1983 = vmul.f32 %v1862, 1.442695
        %v1984 = vpow.pop %v1983
        %v1985 = vmul.f32 %v1863, 1.442695
        %v1986 = vpow.pop %v1985
        %v1987 = vmul.f32 %v1864, 1.442695
        %v1988 = vpow.pop %v1987
        %v1989 = vmul.f32 %v1865, 1.442695
        %v1990 = vpow.pop %v1989
        %v1991 = vmul.f32 %v1866, 1.442695
        %v1992 = vpow.pop %v1991
        %v1993 = vmul.f32 %v1867, 1.442695
        %v1994 = vpow.pop %v1993
        %v1995 = vmul.f32 %v1868, 1.442695
        %v1996 = vpow.pop %v1995
        %v1997 = vadd.f32 %v1058, %v1870
        %v1998 = vadd.f32 %v1060, %v1872
        %v1999 = vadd.f32 %v1062, %v1874
        %v2000 = vadd.f32 %v1064, %v1876
        %v2001 = vadd.f32 %v1066, %v1878
        %v2002 = vadd.f32 %v1068, %v1880
        %v2003 = vadd.f32 %v1070, %v1882
        %v2004 = vadd.f32 %v1072, %v1884
        %v2005 = vadd.f32 %v1074, %v1886
        %v2006 = vadd.f32 %v1076, %v1888
        %v2007 = vadd.f32 %v1078, %v1890
        %v2008 = vadd.f32 %v1080, %v1892
        %v2009 = vadd.f32 %v1082, %v1894
        %v2010 = vadd.f32 %v1084, %v1896
        %v2011 = vadd.f32 %v1086, %v1898
        %v2012 = vadd.f32 %v1088, %v1900
        %v2013 = vadd.f32 %v1090, %v1902
        %v2014 = vadd.f32 %v1092, %v1904
        %v2015 = vadd.f32 %v1094, %v1906
        %v2016 = vadd.f32 %v1096, %v1908
        %v2017 = vadd.f32 %v1098, %v1910
        %v2018 = vadd.f32 %v1100, %v1912
        %v2019 = vadd.f32 %v1102, %v1914
        %v2020 = vadd.f32 %v1104, %v1916
        %v2021 = vadd.f32 %v1106, %v1918
        %v2022 = vadd.f32 %v1108, %v1920
        %v2023 = vadd.f32 %v1110, %v1922
        %v2024 = vadd.f32 %v1112, %v1924
        %v2025 = vadd.f32 %v1114, %v1926
        %v2026 = vadd.f32 %v1116, %v1928
        %v2027 = vadd.f32 %v1118, %v1930
        %v2028 = vadd.f32 %v1120, %v1932
        %v2029 = vadd.f32 %v1122, %v1934
        %v2030 = vadd.f32 %v1124, %v1936
        %v2031 = vadd.f32 %v1126, %v1938
        %v2032 = vadd.f32 %v1128, %v1940
        %v2033 = vadd.f32 %v1130, %v1942
        %v2034 = vadd.f32 %v1132, %v1944
        %v2035 = vadd.f32 %v1134, %v1946
        %v2036 = vadd.f32 %v1136, %v1948
        %v2037 = vadd.f32 %v1138, %v1950
        %v2038 = vadd.f32 %v1140, %v1952
        %v2039 = vadd.f32 %v1142, %v1954
        %v2040 = vadd.f32 %v1144, %v1956
        %v2041 = vadd.f32 %v1146, %v1958
        %v2042 = vadd.f32 %v1148, %v1960
        %v2043 = vadd.f32 %v1150, %v1962
        %v2044 = vadd.f32 %v1152, %v1964
        %v2045 = vadd.f32 %v1154, %v1966
        %v2046 = vadd.f32 %v1156, %v1968
        %v2047 = vadd.f32 %v1158, %v1970
        %v2048 = vadd.f32 %v1160, %v1972
        %v2049 = vadd.f32 %v1162, %v1974
        %v2050 = vadd.f32 %v1164, %v1976
        %v2051 = vadd.f32 %v1166, %v1978
        %v2052 = vadd.f32 %v1168, %v1980
        %v2053 = vadd.f32 %v1170, %v1982
        %v2054 = vadd.f32 %v1172, %v1984
        %v2055 = vadd.f32 %v1174, %v1986
        %v2056 = vadd.f32 %v1176, %v1988
        %v2057 = vadd.f32 %v1178, %v1990
        %v2058 = vadd.f32 %v1180, %v1992
        %v2059 = vadd.f32 %v1182, %v1994
        %v2060 = vadd.f32 %v1184, %v1996
        %v2061 = vpack.c.bf16 %v1999, %v1997
        %v2062 = vpack.c.bf16 %v2000, %v1998
        %v2063 = vpack.c.bf16 %v2003, %v2001
        %v2064 = vpack.c.bf16 %v2004, %v2002
        %v2065 = vpack.c.bf16 %v2007, %v2005
        %v2066 = vpack.c.bf16 %v2008, %v2006
        %v2067 = vpack.c.bf16 %v2011, %v2009
        %v2068 = vpack.c.bf16 %v2012, %v2010
        %v2069 = vpack.c.bf16 %v2015, %v2013
        %v2070 = vpack.c.bf16 %v2016, %v2014
        %v2071 = vpack.c.bf16 %v2019, %v2017
        %v2072 = vpack.c.bf16 %v2020, %v2018
        %v2073 = vpack.c.bf16 %v2023, %v2021
        %v2074 = vpack.c.bf16 %v2024, %v2022
        %v2075 = vpack.c.bf16 %v2027, %v2025
        %v2076 = vpack.c.bf16 %v2028, %v2026
        %v2077 = vpack.c.bf16 %v2031, %v2029
        %v2078 = vpack.c.bf16 %v2032, %v2030
        %v2079 = vpack.c.bf16 %v2035, %v2033
        %v2080 = vpack.c.bf16 %v2036, %v2034
        %v2081 = vpack.c.bf16 %v2039, %v2037
        %v2082 = vpack.c.bf16 %v2040, %v2038
        %v2083 = vpack.c.bf16 %v2043, %v2041
        %v2084 = vpack.c.bf16 %v2044, %v2042
        %v2085 = vpack.c.bf16 %v2047, %v2045
        %v2086 = vpack.c.bf16 %v2048, %v2046
        %v2087 = vpack.c.bf16 %v2051, %v2049
        %v2088 = vpack.c.bf16 %v2052, %v2050
        %v2089 = vpack.c.bf16 %v2055, %v2053
        %v2090 = vpack.c.bf16 %v2056, %v2054
        %v2091 = vpack.c.bf16 %v2059, %v2057
        %v2092 = vpack.c.bf16 %v2060, %v2058
        %2093 = vst [vmem:[#allocation2] sm:$0xff] %v2061
        %2094 = vst [vmem:[#allocation2 + $0x8] sm:$0xff] %v2062
        %2095 = vst [vmem:[#allocation2 + $0x10] sm:$0xff] %v2063
        %2096 = vst [vmem:[#allocation2 + $0x18] sm:$0xff] %v2064
        %2097 = vst [vmem:[#allocation2 + $0x20] sm:$0xff] %v2065
        %2098 = vst [vmem:[#allocation2 + $0x28] sm:$0xff] %v2066
        %2099 = vst [vmem:[#allocation2 + $0x30] sm:$0xff] %v2067
        %2100 = vst [vmem:[#allocation2 + $0x38] sm:$0xff] %v2068
        %2101 = vst [vmem:[#allocation2 + $0x40] sm:$0xff] %v2069
        %2102 = vst [vmem:[#allocation2 + $0x48] sm:$0xff] %v2070
        %2103 = vst [vmem:[#allocation2 + $0x50] sm:$0xff] %v2071
        %2104 = vst [vmem:[#allocation2 + $0x58] sm:$0xff] %v2072
        %2105 = vst [vmem:[#allocation2 + $0x60] sm:$0xff] %v2073
        %2106 = vst [vmem:[#allocation2 + $0x68] sm:$0xff] %v2074
        %2107 = vst [vmem:[#allocation2 + $0x70] sm:$0xff] %v2075
        %2108 = vst [vmem:[#allocation2 + $0x78] sm:$0xff] %v2076
        %2109 = vst [vmem:[#allocation2 + $0x80] sm:$0xff] %v2077
        %2110 = vst [vmem:[#allocation2 + $0x88] sm:$0xff] %v2078
        %2111 = vst [vmem:[#allocation2 + $0x90] sm:$0xff] %v2079
        %2112 = vst [vmem:[#allocation2 + $0x98] sm:$0xff] %v2080
        %2113 = vst [vmem:[#allocation2 + $0xa0] sm:$0xff] %v2081
        %2114 = vst [vmem:[#allocation2 + $0xa8] sm:$0xff] %v2082
        %2115 = vst [vmem:[#allocation2 + $0xb0] sm:$0xff] %v2083
        %2116 = vst [vmem:[#allocation2 + $0xb8] sm:$0xff] %v2084
        %2117 = vst [vmem:[#allocation2 + $0xc0] sm:$0xff] %v2085
        %2118 = vst [vmem:[#allocation2 + $0xc8] sm:$0xff] %v2086
        %2119 = vst [vmem:[#allocation2 + $0xd0] sm:$0xff] %v2087
        %2120 = vst [vmem:[#allocation2 + $0xd8] sm:$0xff] %v2088
        %2121 = vst [vmem:[#allocation2 + $0xe0] sm:$0xff] %v2089
        %2122 = vst [vmem:[#allocation2 + $0xe8] sm:$0xff] %v2090
        %2123 = vst [vmem:[#allocation2 + $0xf0] sm:$0xff] %v2091
        %2124 = vst [vmem:[#allocation2 + $0xf8] sm:$0xff] %v2092
        %v2126 = vcombine.high %v331, %v331
        %v2128 = vsel %vm729, %v331, -inf
        %v2129 = vrot.slane %v2128, 4
        %v2130 = vmax.f32 %v2128, %v2129
        %v2131 = vrot.slane %v2130, 2
        %v2132 = vmax.f32 %v2130, %v2131
        %v2133 = vrot.slane %v2132, 1
        %v2134 = vmax.f32 %v2132, %v2133
        %v2135 = vsel %vm729, %v2126, -inf
        %v2136 = vrot.slane %v2135, 4
        %v2137 = vmax.f32 %v2135, %v2136
        %v2138 = vrot.slane %v2137, 2
        %v2139 = vmax.f32 %v2137, %v2138
        %v2140 = vrot.slane %v2139, 1
        %v2141 = vmax.f32 %v2139, %v2140
        %v2144 = vcombine.low %v2134, %v2141
        %v2146 = vsub.f32 %v331, %v2144
        %v2147 = vmul.f32 %v2146, 1.442695
        %v2148 = vpow.pop %v2147
        %v2150 = vcombine.high %v2148, %v2148
        %v2152 = vsel %vm729, %v2148, 0.0
        %v2153 = vrot.slane %v2152, 4
        %v2154 = vadd.f32 %v2152, %v2153
        %v2155 = vrot.slane %v2154, 2
        %v2156 = vadd.f32 %v2154, %v2155
        %v2157 = vrot.slane %v2156, 1
        %v2158 = vadd.f32 %v2156, %v2157
        %v2159 = vsel %vm729, %v2150, 0.0
        %v2160 = vrot.slane %v2159, 4
        %v2161 = vadd.f32 %v2159, %v2160
        %v2162 = vrot.slane %v2161, 2
        %v2163 = vadd.f32 %v2161, %v2162
        %v2164 = vrot.slane %v2163, 1
        %v2165 = vadd.f32 %v2163, %v2164
        %v2166 = vrcp.pop %v2158
        %v2167 = vrcp.pop %v2165
        %v2170 = vcombine.low %v2166, %v2167
        %v2172 = vmul.f32 %v2148, %v2170
        %v2174 = vcombine.high %v2172, %v2172
        %v2176 = vpack.c.bf16 %v2172, %v2172
        %v2177 = vpack.c.bf16 %v2174, %v2174
        %v2178 = vld [vmem:[#allocation2] sm:$0xff]
        %v2179 = vld [vmem:[#allocation2 + $0x8] sm:$0xff]
        %v2180 = vld [vmem:[#allocation2 + $0x10] sm:$0xff]
        %v2181 = vld [vmem:[#allocation2 + $0x18] sm:$0xff]
        %v2182 = vld [vmem:[#allocation2 + $0x20] sm:$0xff]
        %v2183 = vld [vmem:[#allocation2 + $0x28] sm:$0xff]
        %v2184 = vld [vmem:[#allocation2 + $0x30] sm:$0xff]
        %v2185 = vld [vmem:[#allocation2 + $0x38] sm:$0xff]
        %v2186 = vld [vmem:[#allocation2 + $0x40] sm:$0xff]
        %v2187 = vld [vmem:[#allocation2 + $0x48] sm:$0xff]
        %v2188 = vld [vmem:[#allocation2 + $0x50] sm:$0xff]
        %v2189 = vld [vmem:[#allocation2 + $0x58] sm:$0xff]
        %v2190 = vld [vmem:[#allocation2 + $0x60] sm:$0xff]
        %v2191 = vld [vmem:[#allocation2 + $0x68] sm:$0xff]
        %v2192 = vld [vmem:[#allocation2 + $0x70] sm:$0xff]
        %v2193 = vld [vmem:[#allocation2 + $0x78] sm:$0xff]
        %v2194 = vld [vmem:[#allocation2 + $0x80] sm:$0xff]
        %v2195 = vld [vmem:[#allocation2 + $0x88] sm:$0xff]
        %v2196 = vld [vmem:[#allocation2 + $0x90] sm:$0xff]
        %v2197 = vld [vmem:[#allocation2 + $0x98] sm:$0xff]
        %v2198 = vld [vmem:[#allocation2 + $0xa0] sm:$0xff]
        %v2199 = vld [vmem:[#allocation2 + $0xa8] sm:$0xff]
        %v2200 = vld [vmem:[#allocation2 + $0xb0] sm:$0xff]
        %v2201 = vld [vmem:[#allocation2 + $0xb8] sm:$0xff]
        %v2202 = vld [vmem:[#allocation2 + $0xc0] sm:$0xff]
        %v2203 = vld [vmem:[#allocation2 + $0xc8] sm:$0xff]
        %v2204 = vld [vmem:[#allocation2 + $0xd0] sm:$0xff]
        %v2205 = vld [vmem:[#allocation2 + $0xd8] sm:$0xff]
        %v2206 = vld [vmem:[#allocation2 + $0xe0] sm:$0xff]
        %v2207 = vld [vmem:[#allocation2 + $0xe8] sm:$0xff]
        %v2208 = vld [vmem:[#allocation2 + $0xf0] sm:$0xff]
        %v2209 = vld [vmem:[#allocation2 + $0xf8] sm:$0xff]
        %2210 = vmatprep.subr.bf16.mxu0 %v2179
        %2211 = vmatpush1.bf16.msra.mxu0 %v2178
        %2212 = vmatprep.subr.bf16.mxu0 %v2181
        %2213 = vmatpush1.bf16.msra.mxu0 %v2180
        %2214 = vmatprep.subr.bf16.mxu0 %v2183
        %2215 = vmatpush1.bf16.msra.mxu0 %v2182
        %2216 = vmatprep.subr.bf16.mxu0 %v2185
        %2217 = vmatpush1.bf16.msra.mxu0 %v2184
        %2218 = vmatprep.subr.bf16.mxu0 %v2187
        %2219 = vmatpush1.bf16.msra.mxu0 %v2186
        %2220 = vmatprep.subr.bf16.mxu0 %v2189
        %2221 = vmatpush1.bf16.msra.mxu0 %v2188
        %2222 = vmatprep.subr.bf16.mxu0 %v2191
        %2223 = vmatpush1.bf16.msra.mxu0 %v2190
        %2224 = vmatprep.subr.bf16.mxu0 %v2193
        %2225 = vmatpush1.bf16.msra.mxu0 %v2192
        %2226 = vmatprep.subr.bf16.mxu0 %v2195
        %2227 = vmatpush1.bf16.msra.mxu0 %v2194
        %2228 = vmatprep.subr.bf16.mxu0 %v2197
        %2229 = vmatpush1.bf16.msra.mxu0 %v2196
        %2230 = vmatprep.subr.bf16.mxu0 %v2199
        %2231 = vmatpush1.bf16.msra.mxu0 %v2198
        %2232 = vmatprep.subr.bf16.mxu0 %v2201
        %2233 = vmatpush1.bf16.msra.mxu0 %v2200
        %2234 = vmatprep.subr.bf16.mxu0 %v2203
        %2235 = vmatpush1.bf16.msra.mxu0 %v2202
        %2236 = vmatprep.subr.bf16.mxu0 %v2205
        %2237 = vmatpush1.bf16.msra.mxu0 %v2204
        %2238 = vmatprep.subr.bf16.mxu0 %v2207
        %2239 = vmatpush1.bf16.msra.mxu0 %v2206
        %2240 = vmatprep.subr.bf16.mxu0 %v2209
        %2241 = vmatpush1.bf16.msra.mxu0 %v2208
        %2242 = vmatprep.mubr.bf16.mxu0 %v2177
        %2243 = vmatmul.mubr.bf16.gmra.mrb[0].mxu0 %v2176
        %v2244 = vpop.f32.mrb[0].mxu0
        %v2245 = vadd.f32 0.0, %v2244
        %v2246 = vpop.f32.mrb[0].mxu0
        %v2247 = vadd.f32 0.0, %v2246
        %v2248 = vpop.f32.mrb[0].mxu0
        %v2249 = vpop.f32.mrb[0].mxu0
        %2250 = vdwg.mxu0
        %vm2251 = vcmask 31744
        %v2253 = vsel %vm2251, %v332, 0
        %v2256 = vsel %vm729, %v2245, 0
        %v2259 = vsel %vm729, %v2247, 0
        %2261 = vmatprep.subr.mxu0 %v2259
        %2262 = vmatpush1.msra.mxu0 %v2256
        %2263 = vmatprep.subr.mxu0 0.0
        %2264 = vmatpush1.msra.mxu0 0.0
        %2265 = vmatprep.subr.mxu0 0.0
        %2266 = vmatpush1.msra.mxu0 0.0
        %2267 = vmatprep.subr.mxu0 0.0
        %2268 = vmatpush1.msra.mxu0 0.0
        %2269 = vmatprep.subr.mxu0 0.0
        %2270 = vmatpush1.msra.mxu0 0.0
        %2271 = vmatprep.subr.mxu0 0.0
        %2272 = vmatpush1.msra.mxu0 0.0
        %2273 = vmatprep.subr.mxu0 0.0
        %2274 = vmatpush1.msra.mxu0 0.0
        %2275 = vmatprep.subr.mxu0 0.0
        %2276 = vmatpush1.msra.mxu0 0.0
        %2277 = vmatprep.subr.mxu0 0.0
        %2278 = vmatpush1.msra.mxu0 0.0
        %2279 = vmatprep.subr.mxu0 0.0
        %2280 = vmatpush1.msra.mxu0 0.0
        %2281 = vmatprep.subr.mxu0 0.0
        %2282 = vmatpush1.msra.mxu0 0.0
        %2283 = vmatprep.subr.mxu0 0.0
        %2284 = vmatpush1.msra.mxu0 0.0
        %2285 = vmatprep.subr.mxu0 0.0
        %2286 = vmatpush1.msra.mxu0 0.0
        %2287 = vmatprep.subr.mxu0 0.0
        %2288 = vmatpush1.msra.mxu0 0.0
        %2289 = vmatprep.subr.mxu0 0.0
        %2290 = vmatpush1.msra.mxu0 0.0
        %2291 = vmatprep.subr.mxu0 0.0
        %2292 = vmatpush1.msra.mxu0 0.0
        %2293 = vmatprep.subr.mxu0 0.0
        %2294 = vmatpush1.msra.mxu0 0.0
        %2295 = vmatprep.subr.mxu0 0.0
        %2296 = vmatpush1.msra.mxu0 0.0
        %2297 = vmatprep.subr.mxu0 0.0
        %2298 = vmatpush1.msra.mxu0 0.0
        %2299 = vmatprep.subr.mxu0 0.0
        %2300 = vmatpush1.msra.mxu0 0.0
        %2301 = vmatprep.subr.mxu0 0.0
        %2302 = vmatpush1.msra.mxu0 0.0
        %2303 = vmatprep.subr.mxu0 0.0
        %2304 = vmatpush1.msra.mxu0 0.0
        %2305 = vmatprep.subr.mxu0 0.0
        %2306 = vmatpush1.msra.mxu0 0.0
        %2307 = vmatprep.subr.mxu0 0.0
        %2308 = vmatpush1.msra.mxu0 0.0
        %2309 = vmatprep.subr.mxu0 0.0
        %2310 = vmatpush1.msra.mxu0 0.0
        %2311 = vmatprep.subr.mxu0 0.0
        %2312 = vmatpush1.msra.mxu0 0.0
        %2313 = vmatprep.subr.mxu0 0.0
        %2314 = vmatpush1.msra.mxu0 0.0
        %2315 = vmatprep.subr.mxu0 0.0
        %2316 = vmatpush1.msra.mxu0 0.0
        %2317 = vmatprep.subr.mxu0 0.0
        %2318 = vmatpush1.msra.mxu0 0.0
        %2319 = vmatprep.subr.mxu0 0.0
        %2320 = vmatpush1.msra.mxu0 0.0
        %2321 = vmatprep.subr.mxu0 0.0
        %2322 = vmatpush1.msra.mxu0 0.0
        %2323 = vmatprep.subr.mxu0 0.0
        %2324 = vmatpush1.msra.mxu0 0.0
        %2325 = vmatprep.mubr.f32.mxu0 0.0
        %2326 = vmatmul.mubr.f32.gmra.mrb[0].mxu0 %v2253
        %v2327 = vpop.f32.mrb[0].mxu0
        %v2328 = vadd.f32 0.0, %v2327
        %v2329 = vpop.f32.mrb[0].mxu0
        %v2330 = vadd.f32 0.0, %v2329
        %2331 = vdwg.mxu0
        %v2334 = vcombine.low %v2328, %v2330
        %v2336 = vadd.f32 %v331, %v2334
        %v2338 = vcombine.high %v2336, %v2336
        %v2340 = vsel %vm729, %v2336, -inf
        %v2341 = vrot.slane %v2340, 4
        %v2342 = vmax.f32 %v2340, %v2341
        %v2343 = vrot.slane %v2342, 2
        %v2344 = vmax.f32 %v2342, %v2343
        %v2345 = vrot.slane %v2344, 1
        %v2346 = vmax.f32 %v2344, %v2345
        %v2347 = vsel %vm729, %v2338, -inf
        %v2348 = vrot.slane %v2347, 4
        %v2349 = vmax.f32 %v2347, %v2348
        %v2350 = vrot.slane %v2349, 2
        %v2351 = vmax.f32 %v2349, %v2350
        %v2352 = vrot.slane %v2351, 1
        %v2353 = vmax.f32 %v2351, %v2352
        %v2356 = vcombine.low %v2346, %v2353
        %v2358 = vsub.f32 %v2336, %v2356
        %v2359 = vmul.f32 %v2358, 1.442695
        %v2360 = vpow.pop %v2359
        %v2362 = vcombine.high %v2360, %v2360
        %v2364 = vsel %vm729, %v2360, 0.0
        %v2365 = vrot.slane %v2364, 4
        %v2366 = vadd.f32 %v2364, %v2365
        %v2367 = vrot.slane %v2366, 2
        %v2368 = vadd.f32 %v2366, %v2367
        %v2369 = vrot.slane %v2368, 1
        %v2370 = vadd.f32 %v2368, %v2369
        %v2371 = vsel %vm729, %v2362, 0.0
        %v2372 = vrot.slane %v2371, 4
        %v2373 = vadd.f32 %v2371, %v2372
        %v2374 = vrot.slane %v2373, 2
        %v2375 = vadd.f32 %v2373, %v2374
        %v2376 = vrot.slane %v2375, 1
        %v2377 = vadd.f32 %v2375, %v2376
        %v2378 = vrcp.pop %v2370
        %v2379 = vrcp.pop %v2377
        %v2382 = vcombine.low %v2378, %v2379
        %v2384 = vmul.f32 %v2360, %v2382
        %v2386 = vcombine.high %v2384, %v2384
        %v2388 = vpack.c.bf16 %v2384, %v2384
        %v2389 = vpack.c.bf16 %v2386, %v2386
        %2390 = vmatprep.subr.bf16.mxu0 %v2179
        %2391 = vmatpush1.bf16.msra.mxu0 %v2178
        %2392 = vmatprep.subr.bf16.mxu0 %v2181
        %2393 = vmatpush1.bf16.msra.mxu0 %v2180
        %2394 = vmatprep.subr.bf16.mxu0 %v2183
        %2395 = vmatpush1.bf16.msra.mxu0 %v2182
        %2396 = vmatprep.subr.bf16.mxu0 %v2185
        %2397 = vmatpush1.bf16.msra.mxu0 %v2184
        %2398 = vmatprep.subr.bf16.mxu0 %v2187
        %2399 = vmatpush1.bf16.msra.mxu0 %v2186
        %2400 = vmatprep.subr.bf16.mxu0 %v2189
        %2401 = vmatpush1.bf16.msra.mxu0 %v2188
        %2402 = vmatprep.subr.bf16.mxu0 %v2191
        %2403 = vmatpush1.bf16.msra.mxu0 %v2190
        %2404 = vmatprep.subr.bf16.mxu0 %v2193
        %2405 = vmatpush1.bf16.msra.mxu0 %v2192
        %2406 = vmatprep.subr.bf16.mxu0 %v2195
        %2407 = vmatpush1.bf16.msra.mxu0 %v2194
        %2408 = vmatprep.subr.bf16.mxu0 %v2197
        %2409 = vmatpush1.bf16.msra.mxu0 %v2196
        %2410 = vmatprep.subr.bf16.mxu0 %v2199
        %2411 = vmatpush1.bf16.msra.mxu0 %v2198
        %2412 = vmatprep.subr.bf16.mxu0 %v2201
        %2413 = vmatpush1.bf16.msra.mxu0 %v2200
        %2414 = vmatprep.subr.bf16.mxu0 %v2203
        %2415 = vmatpush1.bf16.msra.mxu0 %v2202
        %2416 = vmatprep.subr.bf16.mxu0 %v2205
        %2417 = vmatpush1.bf16.msra.mxu0 %v2204
        %2418 = vmatprep.subr.bf16.mxu0 %v2207
        %2419 = vmatpush1.bf16.msra.mxu0 %v2206
        %2420 = vmatprep.subr.bf16.mxu0 %v2209
        %2421 = vmatpush1.bf16.msra.mxu0 %v2208
        %2422 = vmatprep.mubr.bf16.mxu0 %v2389
        %2423 = vmatmul.mubr.bf16.gmra.mrb[0].mxu0 %v2388
        %v2424 = vpop.f32.mrb[0].mxu0
        %v2425 = vadd.f32 0.0, %v2424
        %v2426 = vpop.f32.mrb[0].mxu0
        %v2427 = vadd.f32 0.0, %v2426
        %v2428 = vpop.f32.mrb[0].mxu0
        %v2429 = vpop.f32.mrb[0].mxu0
        %2430 = vdwg.mxu0
        %v2432 = vsel %vm729, %v2425, 0
        %v2435 = vsel %vm729, %v2427, 0
        %2437 = vmatprep.subr.mxu0 %v2435
        %2438 = vmatpush1.msra.mxu0 %v2432
        %2439 = vmatprep.subr.mxu0 0.0
        %2440 = vmatpush1.msra.mxu0 0.0
        %2441 = vmatprep.subr.mxu0 0.0
        %2442 = vmatpush1.msra.mxu0 0.0
        %2443 = vmatprep.subr.mxu0 0.0
        %2444 = vmatpush1.msra.mxu0 0.0
        %2445 = vmatprep.subr.mxu0 0.0
        %2446 = vmatpush1.msra.mxu0 0.0
        %2447 = vmatprep.subr.mxu0 0.0
        %2448 = vmatpush1.msra.mxu0 0.0
        %2449 = vmatprep.subr.mxu0 0.0
        %2450 = vmatpush1.msra.mxu0 0.0
        %2451 = vmatprep.subr.mxu0 0.0
        %2452 = vmatpush1.msra.mxu0 0.0
        %2453 = vmatprep.subr.mxu0 0.0
        %2454 = vmatpush1.msra.mxu0 0.0
        %2455 = vmatprep.subr.mxu0 0.0
        %2456 = vmatpush1.msra.mxu0 0.0
        %2457 = vmatprep.subr.mxu0 0.0
        %2458 = vmatpush1.msra.mxu0 0.0
        %2459 = vmatprep.subr.mxu0 0.0
        %2460 = vmatpush1.msra.mxu0 0.0
        %2461 = vmatprep.subr.mxu0 0.0
        %2462 = vmatpush1.msra.mxu0 0.0
        %2463 = vmatprep.subr.mxu0 0.0
        %2464 = vmatpush1.msra.mxu0 0.0
        %2465 = vmatprep.subr.mxu0 0.0
        %2466 = vmatpush1.msra.mxu0 0.0
        %2467 = vmatprep.subr.mxu0 0.0
        %2468 = vmatpush1.msra.mxu0 0.0
        %2469 = vmatprep.subr.mxu0 0.0
        %2470 = vmatpush1.msra.mxu0 0.0
        %2471 = vmatprep.subr.mxu0 0.0
        %2472 = vmatpush1.msra.mxu0 0.0
        %2473 = vmatprep.subr.mxu0 0.0
        %2474 = vmatpush1.msra.mxu0 0.0
        %2475 = vmatprep.subr.mxu0 0.0
        %2476 = vmatpush1.msra.mxu0 0.0
        %2477 = vmatprep.subr.mxu0 0.0
        %2478 = vmatpush1.msra.mxu0 0.0
        %2479 = vmatprep.subr.mxu0 0.0
        %2480 = vmatpush1.msra.mxu0 0.0
        %2481 = vmatprep.subr.mxu0 0.0
        %2482 = vmatpush1.msra.mxu0 0.0
        %2483 = vmatprep.subr.mxu0 0.0
        %2484 = vmatpush1.msra.mxu0 0.0
        %2485 = vmatprep.subr.mxu0 0.0
        %2486 = vmatpush1.msra.mxu0 0.0
        %2487 = vmatprep.subr.mxu0 0.0
        %2488 = vmatpush1.msra.mxu0 0.0
        %2489 = vmatprep.subr.mxu0 0.0
        %2490 = vmatpush1.msra.mxu0 0.0
        %2491 = vmatprep.subr.mxu0 0.0
        %2492 = vmatpush1.msra.mxu0 0.0
        %2493 = vmatprep.subr.mxu0 0.0
        %2494 = vmatpush1.msra.mxu0 0.0
        %2495 = vmatprep.subr.mxu0 0.0
        %2496 = vmatpush1.msra.mxu0 0.0
        %2497 = vmatprep.subr.mxu0 0.0
        %2498 = vmatpush1.msra.mxu0 0.0
        %2499 = vmatprep.subr.mxu0 0.0
        %2500 = vmatpush1.msra.mxu0 0.0
        %2501 = vmatprep.mubr.f32.mxu0 0.0
        %2502 = vmatmul.mubr.f32.gmra.mrb[0].mxu0 %v2253
        %v2503 = vpop.f32.mrb[0].mxu0
        %v2504 = vadd.f32 0.0, %v2503
        %v2505 = vpop.f32.mrb[0].mxu0
        %v2506 = vadd.f32 0.0, %v2505
        %2507 = vdwg.mxu0
        %v2510 = vcombine.low %v2504, %v2506
        %v2512 = vadd.f32 %v331, %v2510
        %v2514 = vcombine.high %v2512, %v2512
        %v2516 = vsel %vm729, %v2512, -inf
        %v2517 = vrot.slane %v2516, 4
        %v2518 = vmax.f32 %v2516, %v2517
        %v2519 = vrot.slane %v2518, 2
        %v2520 = vmax.f32 %v2518, %v2519
        %v2521 = vrot.slane %v2520, 1
        %v2522 = vmax.f32 %v2520, %v2521
        %v2523 = vsel %vm729, %v2514, -inf
        %v2524 = vrot.slane %v2523, 4
        %v2525 = vmax.f32 %v2523, %v2524
        %v2526 = vrot.slane %v2525, 2
        %v2527 = vmax.f32 %v2525, %v2526
        %v2528 = vrot.slane %v2527, 1
        %v2529 = vmax.f32 %v2527, %v2528
        %v2532 = vcombine.low %v2522, %v2529
        %v2534 = vsub.f32 %v2512, %v2532
        %v2535 = vmul.f32 %v2534, 1.442695
        %v2536 = vpow.pop %v2535
        %v2538 = vcombine.high %v2536, %v2536
        %v2540 = vsel %vm729, %v2536, 0.0
        %v2541 = vrot.slane %v2540, 4
        %v2542 = vadd.f32 %v2540, %v2541
        %v2543 = vrot.slane %v2542, 2
        %v2544 = vadd.f32 %v2542, %v2543
        %v2545 = vrot.slane %v2544, 1
        %v2546 = vadd.f32 %v2544, %v2545
        %v2547 = vsel %vm729, %v2538, 0.0
        %v2548 = vrot.slane %v2547, 4
        %v2549 = vadd.f32 %v2547, %v2548
        %v2550 = vrot.slane %v2549, 2
        %v2551 = vadd.f32 %v2549, %v2550
        %v2552 = vrot.slane %v2551, 1
        %v2553 = vadd.f32 %v2551, %v2552
        %v2554 = vrcp.pop %v2546
        %v2555 = vrcp.pop %v2553
        %v2558 = vcombine.low %v2554, %v2555
        %v2560 = vmul.f32 %v2536, %v2558
        %v2562 = vcombine.high %v2560, %v2560
        %v2564 = vpack.c.bf16 %v2560, %v2560
        %v2565 = vpack.c.bf16 %v2562, %v2562
        %2566 = vmatprep.subr.bf16.mxu0 %v2179
        %2567 = vmatpush1.bf16.msra.mxu0 %v2178
        %2568 = vmatprep.subr.bf16.mxu0 %v2181
        %2569 = vmatpush1.bf16.msra.mxu0 %v2180
        %2570 = vmatprep.subr.bf16.mxu0 %v2183
        %2571 = vmatpush1.bf16.msra.mxu0 %v2182
        %2572 = vmatprep.subr.bf16.mxu0 %v2185
        %2573 = vmatpush1.bf16.msra.mxu0 %v2184
        %2574 = vmatprep.subr.bf16.mxu0 %v2187
        %2575 = vmatpush1.bf16.msra.mxu0 %v2186
        %2576 = vmatprep.subr.bf16.mxu0 %v2189
        %2577 = vmatpush1.bf16.msra.mxu0 %v2188
        %2578 = vmatprep.subr.bf16.mxu0 %v2191
        %2579 = vmatpush1.bf16.msra.mxu0 %v2190
        %2580 = vmatprep.subr.bf16.mxu0 %v2193
        %2581 = vmatpush1.bf16.msra.mxu0 %v2192
        %2582 = vmatprep.subr.bf16.mxu0 %v2195
        %2583 = vmatpush1.bf16.msra.mxu0 %v2194
        %2584 = vmatprep.subr.bf16.mxu0 %v2197
        %2585 = vmatpush1.bf16.msra.mxu0 %v2196
        %2586 = vmatprep.subr.bf16.mxu0 %v2199
        %2587 = vmatpush1.bf16.msra.mxu0 %v2198
        %2588 = vmatprep.subr.bf16.mxu0 %v2201
        %2589 = vmatpush1.bf16.msra.mxu0 %v2200
        %2590 = vmatprep.subr.bf16.mxu0 %v2203
        %2591 = vmatpush1.bf16.msra.mxu0 %v2202
        %2592 = vmatprep.subr.bf16.mxu0 %v2205
        %2593 = vmatpush1.bf16.msra.mxu0 %v2204
        %2594 = vmatprep.subr.bf16.mxu0 %v2207
        %2595 = vmatpush1.bf16.msra.mxu0 %v2206
        %2596 = vmatprep.subr.bf16.mxu0 %v2209
        %2597 = vmatpush1.bf16.msra.mxu0 %v2208
        %2598 = vmatprep.mubr.bf16.mxu0 %v2565
        %2599 = vmatmul.mubr.bf16.gmra.mrb[0].mxu0 %v2564
        %v2600 = vpop.f32.mrb[0].mxu0
        %v2601 = vadd.f32 0.0, %v2600
        %v2602 = vpop.f32.mrb[0].mxu0
        %v2603 = vadd.f32 0.0, %v2602
        %v2604 = vpop.f32.mrb[0].mxu0
        %v2605 = vpop.f32.mrb[0].mxu0
        %2606 = vdwg.mxu0
        %v2608 = vsel %vm729, %v2601, 0
        %v2611 = vsel %vm729, %v2603, 0
        %2613 = vmatprep.subr.mxu0 %v2611
        %2614 = vmatpush1.msra.mxu0 %v2608
        %2615 = vmatprep.subr.mxu0 0.0
        %2616 = vmatpush1.msra.mxu0 0.0
        %2617 = vmatprep.subr.mxu0 0.0
        %2618 = vmatpush1.msra.mxu0 0.0
        %2619 = vmatprep.subr.mxu0 0.0
        %2620 = vmatpush1.msra.mxu0 0.0
        %2621 = vmatprep.subr.mxu0 0.0
        %2622 = vmatpush1.msra.mxu0 0.0
        %2623 = vmatprep.subr.mxu0 0.0
        %2624 = vmatpush1.msra.mxu0 0.0
        %2625 = vmatprep.subr.mxu0 0.0
        %2626 = vmatpush1.msra.mxu0 0.0
        %2627 = vmatprep.subr.mxu0 0.0
        %2628 = vmatpush1.msra.mxu0 0.0
        %2629 = vmatprep.subr.mxu0 0.0
        %2630 = vmatpush1.msra.mxu0 0.0
        %2631 = vmatprep.subr.mxu0 0.0
        %2632 = vmatpush1.msra.mxu0 0.0
        %2633 = vmatprep.subr.mxu0 0.0
        %2634 = vmatpush1.msra.mxu0 0.0
        %2635 = vmatprep.subr.mxu0 0.0
        %2636 = vmatpush1.msra.mxu0 0.0
        %2637 = vmatprep.subr.mxu0 0.0
        %2638 = vmatpush1.msra.mxu0 0.0
        %2639 = vmatprep.subr.mxu0 0.0
        %2640 = vmatpush1.msra.mxu0 0.0
        %2641 = vmatprep.subr.mxu0 0.0
        %2642 = vmatpush1.msra.mxu0 0.0
        %2643 = vmatprep.subr.mxu0 0.0
        %2644 = vmatpush1.msra.mxu0 0.0
        %2645 = vmatprep.subr.mxu0 0.0
        %2646 = vmatpush1.msra.mxu0 0.0
        %2647 = vmatprep.subr.mxu0 0.0
        %2648 = vmatpush1.msra.mxu0 0.0
        %2649 = vmatprep.subr.mxu0 0.0
        %2650 = vmatpush1.msra.mxu0 0.0
        %2651 = vmatprep.subr.mxu0 0.0
        %2652 = vmatpush1.msra.mxu0 0.0
        %2653 = vmatprep.subr.mxu0 0.0
        %2654 = vmatpush1.msra.mxu0 0.0
        %2655 = vmatprep.subr.mxu0 0.0
        %2656 = vmatpush1.msra.mxu0 0.0
        %2657 = vmatprep.subr.mxu0 0.0
        %2658 = vmatpush1.msra.mxu0 0.0
        %2659 = vmatprep.subr.mxu0 0.0
        %2660 = vmatpush1.msra.mxu0 0.0
        %2661 = vmatprep.subr.mxu0 0.0
        %2662 = vmatpush1.msra.mxu0 0.0
        %2663 = vmatprep.subr.mxu0 0.0
        %2664 = vmatpush1.msra.mxu0 0.0
        %2665 = vmatprep.subr.mxu0 0.0
        %2666 = vmatpush1.msra.mxu0 0.0
        %2667 = vmatprep.subr.mxu0 0.0
        %2668 = vmatpush1.msra.mxu0 0.0
        %2669 = vmatprep.subr.mxu0 0.0
        %2670 = vmatpush1.msra.mxu0 0.0
        %2671 = vmatprep.subr.mxu0 0.0
        %2672 = vmatpush1.msra.mxu0 0.0
        %2673 = vmatprep.subr.mxu0 0.0
        %2674 = vmatpush1.msra.mxu0 0.0
        %2675 = vmatprep.subr.mxu0 0.0
        %2676 = vmatpush1.msra.mxu0 0.0
        %2677 = vmatprep.mubr.f32.mxu0 0.0
        %2678 = vmatmul.mubr.f32.gmra.mrb[0].mxu0 %v2253
        %v2679 = vpop.f32.mrb[0].mxu0
        %v2680 = vadd.f32 0.0, %v2679
        %v2681 = vpop.f32.mrb[0].mxu0
        %v2682 = vadd.f32 0.0, %v2681
        %2683 = vdwg.mxu0
        %v2686 = vcombine.low %v2680, %v2682
        %v2688 = vadd.f32 %v331, %v2686
        %v2690 = vcombine.high %v2688, %v2688
        %v2692 = vsel %vm729, %v2688, -inf
        %v2693 = vrot.slane %v2692, 4
        %v2694 = vmax.f32 %v2692, %v2693
        %v2695 = vrot.slane %v2694, 2
        %v2696 = vmax.f32 %v2694, %v2695
        %v2697 = vrot.slane %v2696, 1
        %v2698 = vmax.f32 %v2696, %v2697
        %v2699 = vsel %vm729, %v2690, -inf
        %v2700 = vrot.slane %v2699, 4
        %v2701 = vmax.f32 %v2699, %v2700
        %v2702 = vrot.slane %v2701, 2
        %v2703 = vmax.f32 %v2701, %v2702
        %v2704 = vrot.slane %v2703, 1
        %v2705 = vmax.f32 %v2703, %v2704
        %v2708 = vcombine.low %v2698, %v2705
        %v2710 = vsub.f32 %v2688, %v2708
        %v2711 = vmul.f32 %v2710, 1.442695
        %v2712 = vpow.pop %v2711
        %v2714 = vcombine.high %v2712, %v2712
        %v2716 = vsel %vm729, %v2712, 0.0
        %v2717 = vrot.slane %v2716, 4
        %v2718 = vadd.f32 %v2716, %v2717
        %v2719 = vrot.slane %v2718, 2
        %v2720 = vadd.f32 %v2718, %v2719
        %v2721 = vrot.slane %v2720, 1
        %v2722 = vadd.f32 %v2720, %v2721
        %v2723 = vsel %vm729, %v2714, 0.0
        %v2724 = vrot.slane %v2723, 4
        %v2725 = vadd.f32 %v2723, %v2724
        %v2726 = vrot.slane %v2725, 2
        %v2727 = vadd.f32 %v2725, %v2726
        %v2728 = vrot.slane %v2727, 1
        %v2729 = vadd.f32 %v2727, %v2728
        %v2730 = vrcp.pop %v2722
        %v2731 = vrcp.pop %v2729
        %v2734 = vcombine.low %v2730, %v2731
        %v2736 = vmul.f32 %v2712, %v2734
        %v2738 = vcombine.high %v2736, %v2736
        %v2740 = vpack.c.bf16 %v2736, %v2736
        %v2741 = vpack.c.bf16 %v2738, %v2738
        %2742 = vmatprep.subr.bf16.mxu0 %v2179
        %2743 = vmatpush1.bf16.msra.mxu0 %v2178
        %2744 = vmatprep.subr.bf16.mxu0 %v2181
        %2745 = vmatpush1.bf16.msra.mxu0 %v2180
        %2746 = vmatprep.subr.bf16.mxu0 %v2183
        %2747 = vmatpush1.bf16.msra.mxu0 %v2182
        %2748 = vmatprep.subr.bf16.mxu0 %v2185
        %2749 = vmatpush1.bf16.msra.mxu0 %v2184
        %2750 = vmatprep.subr.bf16.mxu0 %v2187
        %2751 = vmatpush1.bf16.msra.mxu0 %v2186
        %2752 = vmatprep.subr.bf16.mxu0 %v2189
        %2753 = vmatpush1.bf16.msra.mxu0 %v2188
        %2754 = vmatprep.subr.bf16.mxu0 %v2191
        %2755 = vmatpush1.bf16.msra.mxu0 %v2190
        %2756 = vmatprep.subr.bf16.mxu0 %v2193
        %2757 = vmatpush1.bf16.msra.mxu0 %v2192
        %2758 = vmatprep.subr.bf16.mxu0 %v2195
        %2759 = vmatpush1.bf16.msra.mxu0 %v2194
        %2760 = vmatprep.subr.bf16.mxu0 %v2197
        %2761 = vmatpush1.bf16.msra.mxu0 %v2196
        %2762 = vmatprep.subr.bf16.mxu0 %v2199
        %2763 = vmatpush1.bf16.msra.mxu0 %v2198
        %2764 = vmatprep.subr.bf16.mxu0 %v2201
        %2765 = vmatpush1.bf16.msra.mxu0 %v2200
        %2766 = vmatprep.subr.bf16.mxu0 %v2203
        %2767 = vmatpush1.bf16.msra.mxu0 %v2202
        %2768 = vmatprep.subr.bf16.mxu0 %v2205
        %2769 = vmatpush1.bf16.msra.mxu0 %v2204
        %2770 = vmatprep.subr.bf16.mxu0 %v2207
        %2771 = vmatpush1.bf16.msra.mxu0 %v2206
        %2772 = vmatprep.subr.bf16.mxu0 %v2209
        %2773 = vmatpush1.bf16.msra.mxu0 %v2208
        %2774 = vmatprep.mubr.bf16.mxu0 %v2741
        %2775 = vmatmul.mubr.bf16.gmra.mrb[0].mxu0 %v2740
        %v2776 = vpop.f32.mrb[0].mxu0
        %v2777 = vadd.f32 0.0, %v2776
        %v2778 = vpop.f32.mrb[0].mxu0
        %v2779 = vadd.f32 0.0, %v2778
        %v2780 = vpop.f32.mrb[0].mxu0
        %v2781 = vpop.f32.mrb[0].mxu0
        %2782 = vdwg.mxu0
        %v2784 = vsel %vm729, %v2777, 0
        %v2787 = vsel %vm729, %v2779, 0
        %2789 = vmatprep.subr.mxu0 %v2787
        %2790 = vmatpush1.msra.mxu0 %v2784
        %2791 = vmatprep.subr.mxu0 0.0
        %2792 = vmatpush1.msra.mxu0 0.0
        %2793 = vmatprep.subr.mxu0 0.0
        %2794 = vmatpush1.msra.mxu0 0.0
        %2795 = vmatprep.subr.mxu0 0.0
        %2796 = vmatpush1.msra.mxu0 0.0
        %2797 = vmatprep.subr.mxu0 0.0
        %2798 = vmatpush1.msra.mxu0 0.0
        %2799 = vmatprep.subr.mxu0 0.0
        %2800 = vmatpush1.msra.mxu0 0.0
        %2801 = vmatprep.subr.mxu0 0.0
        %2802 = vmatpush1.msra.mxu0 0.0
        %2803 = vmatprep.subr.mxu0 0.0
        %2804 = vmatpush1.msra.mxu0 0.0
        %2805 = vmatprep.subr.mxu0 0.0
        %2806 = vmatpush1.msra.mxu0 0.0
        %2807 = vmatprep.subr.mxu0 0.0
        %2808 = vmatpush1.msra.mxu0 0.0
        %2809 = vmatprep.subr.mxu0 0.0
        %2810 = vmatpush1.msra.mxu0 0.0
        %2811 = vmatprep.subr.mxu0 0.0
        %2812 = vmatpush1.msra.mxu0 0.0
        %2813 = vmatprep.subr.mxu0 0.0
        %2814 = vmatpush1.msra.mxu0 0.0
        %2815 = vmatprep.subr.mxu0 0.0
        %2816 = vmatpush1.msra.mxu0 0.0
        %2817 = vmatprep.subr.mxu0 0.0
        %2818 = vmatpush1.msra.mxu0 0.0
        %2819 = vmatprep.subr.mxu0 0.0
        %2820 = vmatpush1.msra.mxu0 0.0
        %2821 = vmatprep.subr.mxu0 0.0
        %2822 = vmatpush1.msra.mxu0 0.0
        %2823 = vmatprep.subr.mxu0 0.0
        %2824 = vmatpush1.msra.mxu0 0.0
        %2825 = vmatprep.subr.mxu0 0.0
        %2826 = vmatpush1.msra.mxu0 0.0
        %2827 = vmatprep.subr.mxu0 0.0
        %2828 = vmatpush1.msra.mxu0 0.0
        %2829 = vmatprep.subr.mxu0 0.0
        %2830 = vmatpush1.msra.mxu0 0.0
        %2831 = vmatprep.subr.mxu0 0.0
        %2832 = vmatpush1.msra.mxu0 0.0
        %2833 = vmatprep.subr.mxu0 0.0
        %2834 = vmatpush1.msra.mxu0 0.0
        %2835 = vmatprep.subr.mxu0 0.0
        %2836 = vmatpush1.msra.mxu0 0.0
        %2837 = vmatprep.subr.mxu0 0.0
        %2838 = vmatpush1.msra.mxu0 0.0
        %2839 = vmatprep.subr.mxu0 0.0
        %2840 = vmatpush1.msra.mxu0 0.0
        %2841 = vmatprep.subr.mxu0 0.0
        %2842 = vmatpush1.msra.mxu0 0.0
        %2843 = vmatprep.subr.mxu0 0.0
        %2844 = vmatpush1.msra.mxu0 0.0
        %2845 = vmatprep.subr.mxu0 0.0
        %2846 = vmatpush1.msra.mxu0 0.0
        %2847 = vmatprep.subr.mxu0 0.0
        %2848 = vmatpush1.msra.mxu0 0.0
        %2849 = vmatprep.subr.mxu0 0.0
        %2850 = vmatpush1.msra.mxu0 0.0
        %2851 = vmatprep.subr.mxu0 0.0
        %2852 = vmatpush1.msra.mxu0 0.0
        %2853 = vmatprep.mubr.f32.mxu0 0.0
        %2854 = vmatmul.mubr.f32.gmra.mrb[0].mxu0 %v2253
        %v2855 = vpop.f32.mrb[0].mxu0
        %v2856 = vadd.f32 0.0, %v2855
        %v2857 = vpop.f32.mrb[0].mxu0
        %v2858 = vadd.f32 0.0, %v2857
        %2859 = vdwg.mxu0
        %v2862 = vcombine.low %v2856, %v2858
        %v2864 = vadd.f32 %v331, %v2862
        %v2866 = vcombine.high %v2864, %v2864
        %v2868 = vsel %vm729, %v2864, -inf
        %v2869 = vrot.slane %v2868, 4
        %v2870 = vmax.f32 %v2868, %v2869
        %v2871 = vrot.slane %v2870, 2
        %v2872 = vmax.f32 %v2870, %v2871
        %v2873 = vrot.slane %v2872, 1
        %v2874 = vmax.f32 %v2872, %v2873
        %v2875 = vsel %vm729, %v2866, -inf
        %v2876 = vrot.slane %v2875, 4
        %v2877 = vmax.f32 %v2875, %v2876
        %v2878 = vrot.slane %v2877, 2
        %v2879 = vmax.f32 %v2877, %v2878
        %v2880 = vrot.slane %v2879, 1
        %v2881 = vmax.f32 %v2879, %v2880
        %v2884 = vcombine.low %v2874, %v2881
        %v2886 = vsub.f32 %v2864, %v2884
        %v2887 = vmul.f32 %v2886, 1.442695
        %v2888 = vpow.pop %v2887
        %v2890 = vcombine.high %v2888, %v2888
        %v2892 = vsel %vm729, %v2888, 0.0
        %v2893 = vrot.slane %v2892, 4
        %v2894 = vadd.f32 %v2892, %v2893
        %v2895 = vrot.slane %v2894, 2
        %v2896 = vadd.f32 %v2894, %v2895
        %v2897 = vrot.slane %v2896, 1
        %v2898 = vadd.f32 %v2896, %v2897
        %v2899 = vsel %vm729, %v2890, 0.0
        %v2900 = vrot.slane %v2899, 4
        %v2901 = vadd.f32 %v2899, %v2900
        %v2902 = vrot.slane %v2901, 2
        %v2903 = vadd.f32 %v2901, %v2902
        %v2904 = vrot.slane %v2903, 1
        %v2905 = vadd.f32 %v2903, %v2904
        %v2906 = vrcp.pop %v2898
        %v2907 = vrcp.pop %v2905
        %v2910 = vcombine.low %v2906, %v2907
        %v2912 = vmul.f32 %v2888, %v2910
        %v2914 = vcombine.high %v2912, %v2912
        %v2916 = vpack.c.bf16 %v2912, %v2912
        %v2917 = vpack.c.bf16 %v2914, %v2914
        %2918 = vmatprep.subr.bf16.mxu0 %v2179
        %2919 = vmatpush1.bf16.msra.mxu0 %v2178
        %2920 = vmatprep.subr.bf16.mxu0 %v2181
        %2921 = vmatpush1.bf16.msra.mxu0 %v2180
        %2922 = vmatprep.subr.bf16.mxu0 %v2183
        %2923 = vmatpush1.bf16.msra.mxu0 %v2182
        %2924 = vmatprep.subr.bf16.mxu0 %v2185
        %2925 = vmatpush1.bf16.msra.mxu0 %v2184
        %2926 = vmatprep.subr.bf16.mxu0 %v2187
        %2927 = vmatpush1.bf16.msra.mxu0 %v2186
        %2928 = vmatprep.subr.bf16.mxu0 %v2189
        %2929 = vmatpush1.bf16.msra.mxu0 %v2188
        %2930 = vmatprep.subr.bf16.mxu0 %v2191
        %2931 = vmatpush1.bf16.msra.mxu0 %v2190
        %2932 = vmatprep.subr.bf16.mxu0 %v2193
        %2933 = vmatpush1.bf16.msra.mxu0 %v2192
        %2934 = vmatprep.subr.bf16.mxu0 %v2195
        %2935 = vmatpush1.bf16.msra.mxu0 %v2194
        %2936 = vmatprep.subr.bf16.mxu0 %v2197
        %2937 = vmatpush1.bf16.msra.mxu0 %v2196
        %2938 = vmatprep.subr.bf16.mxu0 %v2199
        %2939 = vmatpush1.bf16.msra.mxu0 %v2198
        %2940 = vmatprep.subr.bf16.mxu0 %v2201
        %2941 = vmatpush1.bf16.msra.mxu0 %v2200
        %2942 = vmatprep.subr.bf16.mxu0 %v2203
        %2943 = vmatpush1.bf16.msra.mxu0 %v2202
        %2944 = vmatprep.subr.bf16.mxu0 %v2205
        %2945 = vmatpush1.bf16.msra.mxu0 %v2204
        %2946 = vmatprep.subr.bf16.mxu0 %v2207
        %2947 = vmatpush1.bf16.msra.mxu0 %v2206
        %2948 = vmatprep.subr.bf16.mxu0 %v2209
        %2949 = vmatpush1.bf16.msra.mxu0 %v2208
        %2950 = vmatprep.mubr.bf16.mxu0 %v2917
        %2951 = vmatmul.mubr.bf16.gmra.mrb[0].mxu0 %v2916
        %v2952 = vpop.f32.mrb[0].mxu0
        %v2953 = vadd.f32 0.0, %v2952
        %v2954 = vpop.f32.mrb[0].mxu0
        %v2955 = vadd.f32 0.0, %v2954
        %v2956 = vpop.f32.mrb[0].mxu0
        %v2957 = vpop.f32.mrb[0].mxu0
        %2958 = vdwg.mxu0
        %v2960 = vsel %vm729, %v2953, 0
        %v2963 = vsel %vm729, %v2955, 0
        %2965 = vmatprep.subr.mxu0 %v2963
        %2966 = vmatpush1.msra.mxu0 %v2960
        %2967 = vmatprep.subr.mxu0 0.0
        %2968 = vmatpush1.msra.mxu0 0.0
        %2969 = vmatprep.subr.mxu0 0.0
        %2970 = vmatpush1.msra.mxu0 0.0
        %2971 = vmatprep.subr.mxu0 0.0
        %2972 = vmatpush1.msra.mxu0 0.0
        %2973 = vmatprep.subr.mxu0 0.0
        %2974 = vmatpush1.msra.mxu0 0.0
        %2975 = vmatprep.subr.mxu0 0.0
        %2976 = vmatpush1.msra.mxu0 0.0
        %2977 = vmatprep.subr.mxu0 0.0
        %2978 = vmatpush1.msra.mxu0 0.0
        %2979 = vmatprep.subr.mxu0 0.0
        %2980 = vmatpush1.msra.mxu0 0.0
        %2981 = vmatprep.subr.mxu0 0.0
        %2982 = vmatpush1.msra.mxu0 0.0
        %2983 = vmatprep.subr.mxu0 0.0
        %2984 = vmatpush1.msra.mxu0 0.0
        %2985 = vmatprep.subr.mxu0 0.0
        %2986 = vmatpush1.msra.mxu0 0.0
        %2987 = vmatprep.subr.mxu0 0.0
        %2988 = vmatpush1.msra.mxu0 0.0
        %2989 = vmatprep.subr.mxu0 0.0
        %2990 = vmatpush1.msra.mxu0 0.0
        %2991 = vmatprep.subr.mxu0 0.0
        %2992 = vmatpush1.msra.mxu0 0.0
        %2993 = vmatprep.subr.mxu0 0.0
        %2994 = vmatpush1.msra.mxu0 0.0
        %2995 = vmatprep.subr.mxu0 0.0
        %2996 = vmatpush1.msra.mxu0 0.0
        %2997 = vmatprep.subr.mxu0 0.0
        %2998 = vmatpush1.msra.mxu0 0.0
        %2999 = vmatprep.subr.mxu0 0.0
        %3000 = vmatpush1.msra.mxu0 0.0
        %3001 = vmatprep.subr.mxu0 0.0
        %3002 = vmatpush1.msra.mxu0 0.0
        %3003 = vmatprep.subr.mxu0 0.0
        %3004 = vmatpush1.msra.mxu0 0.0
        %3005 = vmatprep.subr.mxu0 0.0
        %3006 = vmatpush1.msra.mxu0 0.0
        %3007 = vmatprep.subr.mxu0 0.0
        %3008 = vmatpush1.msra.mxu0 0.0
        %3009 = vmatprep.subr.mxu0 0.0
        %3010 = vmatpush1.msra.mxu0 0.0
        %3011 = vmatprep.subr.mxu0 0.0
        %3012 = vmatpush1.msra.mxu0 0.0
        %3013 = vmatprep.subr.mxu0 0.0
        %3014 = vmatpush1.msra.mxu0 0.0
        %3015 = vmatprep.subr.mxu0 0.0
        %3016 = vmatpush1.msra.mxu0 0.0
        %3017 = vmatprep.subr.mxu0 0.0
        %3018 = vmatpush1.msra.mxu0 0.0
        %3019 = vmatprep.subr.mxu0 0.0
        %3020 = vmatpush1.msra.mxu0 0.0
        %3021 = vmatprep.subr.mxu0 0.0
        %3022 = vmatpush1.msra.mxu0 0.0
        %3023 = vmatprep.subr.mxu0 0.0
        %3024 = vmatpush1.msra.mxu0 0.0
        %3025 = vmatprep.subr.mxu0 0.0
        %3026 = vmatpush1.msra.mxu0 0.0
        %3027 = vmatprep.subr.mxu0 0.0
        %3028 = vmatpush1.msra.mxu0 0.0
        %3029 = vmatprep.mubr.f32.mxu0 0.0
        %3030 = vmatmul.mubr.f32.gmra.mrb[0].mxu0 %v2253
        %v3031 = vpop.f32.mrb[0].mxu0
        %v3032 = vadd.f32 0.0, %v3031
        %v3033 = vpop.f32.mrb[0].mxu0
        %v3034 = vadd.f32 0.0, %v3033
        %3035 = vdwg.mxu0
        %v3038 = vcombine.low %v3032, %v3034
        %v3040 = vadd.f32 %v331, %v3038
        %v3042 = vcombine.high %v3040, %v3040
        %v3044 = vsel %vm729, %v3040, -inf
        %v3045 = vrot.slane %v3044, 4
        %v3046 = vmax.f32 %v3044, %v3045
        %v3047 = vrot.slane %v3046, 2
        %v3048 = vmax.f32 %v3046, %v3047
        %v3049 = vrot.slane %v3048, 1
        %v3050 = vmax.f32 %v3048, %v3049
        %v3051 = vsel %vm729, %v3042, -inf
        %v3052 = vrot.slane %v3051, 4
        %v3053 = vmax.f32 %v3051, %v3052
        %v3054 = vrot.slane %v3053, 2
        %v3055 = vmax.f32 %v3053, %v3054
        %v3056 = vrot.slane %v3055, 1
        %v3057 = vmax.f32 %v3055, %v3056
        %v3060 = vcombine.low %v3050, %v3057
        %v3062 = vsub.f32 %v3040, %v3060
        %v3063 = vmul.f32 %v3062, 1.442695
        %v3064 = vpow.pop %v3063
        %v3066 = vcombine.high %v3064, %v3064
        %v3068 = vsel %vm729, %v3064, 0.0
        %v3069 = vrot.slane %v3068, 4
        %v3070 = vadd.f32 %v3068, %v3069
        %v3071 = vrot.slane %v3070, 2
        %v3072 = vadd.f32 %v3070, %v3071
        %v3073 = vrot.slane %v3072, 1
        %v3074 = vadd.f32 %v3072, %v3073
        %v3075 = vsel %vm729, %v3066, 0.0
        %v3076 = vrot.slane %v3075, 4
        %v3077 = vadd.f32 %v3075, %v3076
        %v3078 = vrot.slane %v3077, 2
        %v3079 = vadd.f32 %v3077, %v3078
        %v3080 = vrot.slane %v3079, 1
        %v3081 = vadd.f32 %v3079, %v3080
        %v3082 = vrcp.pop %v3074
        %v3083 = vrcp.pop %v3081
        %v3086 = vcombine.low %v3082, %v3083
        %v3088 = vmul.f32 %v3064, %v3086
        %3089 = vst [vmem:[%s304] sm:$0xff] %v3088
        %s3090 = sand.u32 %s179, 1
        %s3091 = scalar_lea.sflag [#allocation4], %s3090
        %s3092 = sand.u32 %s179, 1
        %s3093 = smul.addr %s3092, 8
        %s3094 = scalar_lea.vmem [#allocation3], %s3093
        // Predicated region
        $region45: #{tpu_custom_call.1} parent=43 // pred_check
          %p3095 = pneg %p189
        $region46: #{tpu_custom_call.1} parent=43 // pred_check_branch
          %3097 = sbr.rel (%p3095) target = $region48
        $region47: #{tpu_custom_call.1} parent=43 // pred_region
          %s3099 = ssub.s32 128, 128
          %3100 = vsyncadd %s3091, %s3099
          %s3101 = smul.addr %s20, 2
          %s3102 = smul.addr %s3101, 64
          %s3103 = scalar_lea.hbm %s6, %s3102
          %s3105 = sshll.u32 %s3094, 4
          %s3106 = int_to_ptr.vmem [resolvable:$true] %s3105
          %3108 = dma.vmem_to_hbm [thread:$0]  %s3106, 128, %s3103, %s3091
        $region48: #{tpu_custom_call.1} parent=43 // pred_fallthru
          _
      $region44: #{tpu_custom_call.1} parent=5 // pred_fallthru
        _
      %p3109 = scmp.le.s32.totalorder 2, %s15
      // Predicated region
      $region49: #{tpu_custom_call.1} parent=5 // pred_check
        %p3110 = pneg %p3109
      $region50: #{tpu_custom_call.1} parent=5 // pred_check_branch
        %3112 = sbr.rel (%p3110) target = $region52
      $region51: #{tpu_custom_call.1} parent=5 // pred_region
        %s3113 = ssub.s32 %s15, 2
        // Predicated region
        $region53: #{tpu_custom_call.1} parent=51 // pred_check
          %p3114 = pneg %p195
        $region54: #{tpu_custom_call.1} parent=51 // pred_check_branch
          %3116 = sbr.rel (%p3114) target = $region56
        $region55: #{tpu_custom_call.1} parent=51 // pred_region
          %s3117 = sand.u32 %s180, 1
          %s3118 = scalar_lea.sflag [#allocation4], %s3117
          %s3119 = sand.u32 %s180, 1
          %s3120 = smul.addr %s3119, 8
          %s3121 = scalar_lea.vmem [#allocation3], %s3120
          %3122 = dma.done %s3118, 128
        $region56: #{tpu_custom_call.1} parent=51 // pred_fallthru
          _
      $region52: #{tpu_custom_call.1} parent=5 // pred_fallthru
        _
    $region6: #{tpu_custom_call.1} parent=1 // loop_footer
      %s19 = sadd.s32 1, %s15
    $region7: #{tpu_custom_call.1} parent=1 // loop_footer_branch
      %14 = sbr.rel target = $region3
    $region8: #{tpu_custom_call.1} parent=1 // loop_exit
      _
    %3123 = vsyncpa [#allocation4], 1
    %s3124 = scalar_lea.sflag [#allocation4], 1
    %3125 = vsyncpa %s3124, 1

</llo_original>
